<compile_context>
chip_gen: v5e
topology: v5e:2x2
jax: 0.10.0
libtpu: 0.0.40
codegen_flags: <defaults>
</compile_context>

<pallas_src>
import functools
import math

import jax
import jax.numpy as jnp
from jax.experimental import pallas as pl
from jax.experimental.pallas import tpu as pltpu

LN_EPS = 1e-12


def _layernorm(x, g, b, eps):
    mean = jnp.mean(x, axis=-1, keepdims=True)
    var = jnp.mean(jnp.square(x - mean), axis=-1, keepdims=True)
    return (x - mean) * jax.lax.rsqrt(var + eps) * g + b


# ----------------------------- kernels --------------------------------------

def embed_kernel(we_ref, pe_ref, g_ref, b_ref, o_ref, *, eps):
    # Embed: LayerNorm(word_emb + pos_emb); dropout is identity in eval mode.
    x = we_ref[...].astype(jnp.float32) + pe_ref[...].astype(jnp.float32)
    o_ref[...] = _layernorm(x, g_ref[...], b_ref[...], eps).astype(o_ref.dtype)


def attn_block_kernel(x_ref, g_ref, b_ref, wqkv_ref, bqkv_ref,
                      wproj_ref, bproj_ref, o_ref, *, num_heads, eps):
    # Fused causal self-attention block for one batch element:
    #   out = x + c_proj(softmax(mask(Q K^T / sqrt(hd))) V),  QKV = LN(x) Wqkv + b
    x = x_ref[...].astype(jnp.float32)                       # (T, H)
    t, h = x.shape
    hd = h // num_heads
    scale = 1.0 / math.sqrt(hd)

    y = _layernorm(x, g_ref[...], b_ref[...], eps)
    qkv = jnp.dot(y, wqkv_ref[...], preferred_element_type=jnp.float32) + bqkv_ref[...]

    row = jax.lax.broadcasted_iota(jnp.int32, (t, t), 0)
    col = jax.lax.broadcasted_iota(jnp.int32, (t, t), 1)
    causal = col <= row

    ctx_heads = []
    for hi in range(num_heads):                              # static head loop
        q_h = qkv[:, hi * hd:(hi + 1) * hd]                  # (T, hd)
        k_h = qkv[:, h + hi * hd:h + (hi + 1) * hd]
        v_h = qkv[:, 2 * h + hi * hd:2 * h + (hi + 1) * hd]
        s = jax.lax.dot_general(q_h, k_h, (((1,), (1,)), ((), ())),
                                preferred_element_type=jnp.float32) * scale
        s = jnp.where(causal, s, jnp.float32(-1e30))
        s_max = jnp.max(s, axis=-1, keepdims=True)
        p = jnp.exp(s - s_max)
        denom = jnp.sum(p, axis=-1, keepdims=True)
        p = p * pl.reciprocal(denom, approx=True)            # EUP, not VALU divide
        # TODO(synk): attention dropout not implemented (eval-mode identity).
        ctx_heads.append(jnp.dot(p, v_h, preferred_element_type=jnp.float32))
    ctx = jnp.concatenate(ctx_heads, axis=-1)                # (T, H)

    out = jnp.dot(ctx, wproj_ref[...], preferred_element_type=jnp.float32) + bproj_ref[...]
    # resid dropout is identity in eval mode.
    o_ref[...] = (out + x).astype(o_ref.dtype)


def mlp_block_kernel(x_ref, g_ref, b_ref, w1_ref, b1_ref, w2_ref, b2_ref, o_ref, *, eps):
    # Fused MLP block: out = x + fc2(GELU(fc1(LN(x)))).
    # The (tm, intermediate) activation stays in VMEM/vregs (never hits HBM).
    x = x_ref[...].astype(jnp.float32)
    y = _layernorm(x, g_ref[...], b_ref[...], eps)
    hmid = jnp.dot(y, w1_ref[...], preferred_element_type=jnp.float32) + b1_ref[...]
    # TODO(synk): PyTorch nn.GELU() default is the exact erf form; tanh approx used here.
    hmid = jax.nn.gelu(hmid, approximate=True)
    out = jnp.dot(hmid, w2_ref[...], preferred_element_type=jnp.float32) + b2_ref[...]
    o_ref[...] = (out + x).astype(o_ref.dtype)


def mlm_head_kernel(x_ref, g_ref, b_ref, wt_ref, bias_ref, xn_ref, logits_ref,
                    y_ref, *, eps):
    # Fused ln_f + tied-embedding MLM head, tiled over vocab.  The normalized
    # hidden states (also returned by Transformer.forward) are computed once
    # per token tile (first vocab step) and kept in a VMEM scratch.
    @pl.when(pl.program_id(1) == 0)
    def _():
        y = _layernorm(x_ref[...].astype(jnp.float32), g_ref[...], b_ref[...], eps)
        y_ref[...] = y
        xn_ref[...] = y.astype(xn_ref.dtype)
    logits_ref[...] = (
        jnp.dot(y_ref[...], wt_ref[...], preferred_element_type=jnp.float32)
        + bias_ref[...]).astype(logits_ref.dtype)


# ----------------------------- wrappers --------------------------------------

_TILE_CANDIDATES = (256, 128, 64, 32, 16, 8)


def _token_tile(m, cap=256):
    # Prefer >=2 grid steps (feed both v7x TensorCores); cap tiles at 256 for
    # v7x's 64 MiB VMEM (v5e/v6e could go to 512).
    for tm in _TILE_CANDIDATES:
        if tm <= cap and m % tm == 0 and m // tm >= 2:
            return tm
    for tm in _TILE_CANDIDATES:
        if tm <= cap and m % tm == 0:
            return tm
    return m


def _embed_tile(m, t, cap=256):
    # Token tile for the embed stage must also divide T so pos_emb can be
    # indexed modulo T (no jnp.tile materialization).
    for tm in _TILE_CANDIDATES:
        if tm <= cap and t % tm == 0 and m // tm >= 2:
            return tm
    for tm in _TILE_CANDIDATES:
        if tm <= cap and t % tm == 0:
            return tm
    return t


def _vocab_tile(v, cap=1024):
    for tn in (1024, 512, 256, 128):
        if tn <= cap and v % tn == 0:
            return tn
    return v


def _cparams(sem):
    return pltpu.CompilerParams(dimension_semantics=sem,
                                vmem_limit_bytes=32 * 1024 * 1024)


def embed(we, pe, g, beta, *, eps=LN_EPS):
    m, d = we.shape
    t = pe.shape[0]
    tm = _embed_tile(m, t)
    n_pos_tiles = t // tm
    return pl.pallas_call(
        functools.partial(embed_kernel, eps=eps),
        out_shape=jax.ShapeDtypeStruct((m, d), jnp.float32),
        grid_spec=pltpu.PrefetchScalarGridSpec(
            num_scalar_prefetch=0, grid=(m // tm,),
            in_specs=[
                pl.BlockSpec((tm, d), lambda i: (i, 0)),
                pl.BlockSpec((tm, d), lambda i: (i % n_pos_tiles, 0)),  # pos, mod T
                pl.BlockSpec((1, d), lambda i: (0, 0)),
                pl.BlockSpec((1, d), lambda i: (0, 0)),
            ],
            out_specs=pl.BlockSpec((tm, d), lambda i: (i, 0))),
        compiler_params=_cparams(("parallel",)),
    )(we, pe, g.reshape(1, d), beta.reshape(1, d))


def attention_block(x, g, beta, w_qkv_t, b_qkv, w_proj_t, b_proj, *,
                    num_heads, seq_len, eps=LN_EPS):
    m, d = x.shape
    t = seq_len
    b = m // t
    h3 = w_qkv_t.shape[1]
    return pl.pallas_call(
        functools.partial(attn_block_kernel, num_heads=num_heads, eps=eps),
        out_shape=jax.ShapeDtypeStruct((m, d), jnp.float32),
        grid_spec=pltpu.PrefetchScalarGridSpec(
            num_scalar_prefetch=0, grid=(b,),
            in_specs=[
                pl.BlockSpec((t, d), lambda i: (i, 0)),          # batch i's rows
                pl.BlockSpec((1, d), lambda i: (0, 0)),
                pl.BlockSpec((1, d), lambda i: (0, 0)),
                pl.BlockSpec((d, h3), lambda i: (0, 0)),         # resident QKV weight
                pl.BlockSpec((1, h3), lambda i: (0, 0)),
                pl.BlockSpec((d, d), lambda i: (0, 0)),          # resident proj weight
                pl.BlockSpec((1, d), lambda i: (0, 0)),
            ],
            out_specs=pl.BlockSpec((t, d), lambda i: (i, 0))),
        compiler_params=_cparams(("parallel",)),
    )(x, g.reshape(1, d), beta.reshape(1, d),
      w_qkv_t, b_qkv.reshape(1, h3), w_proj_t, b_proj.reshape(1, d))


def mlp_block(x, g, beta, w1_t, b1, w2_t, b2, *, eps=LN_EPS):
    m, d = x.shape
    inter = w1_t.shape[1]
    tm = _token_tile(m)
    return pl.pallas_call(
        functools.partial(mlp_block_kernel, eps=eps),
        out_shape=jax.ShapeDtypeStruct((m, d), jnp.float32),
        grid_spec=pltpu.PrefetchScalarGridSpec(
            num_scalar_prefetch=0, grid=(m // tm,),
            in_specs=[
                pl.BlockSpec((tm, d), lambda i: (i, 0)),
                pl.BlockSpec((1, d), lambda i: (0, 0)),
                pl.BlockSpec((1, d), lambda i: (0, 0)),
                pl.BlockSpec((d, inter), lambda i: (0, 0)),      # resident fc1 weight
                pl.BlockSpec((1, inter), lambda i: (0, 0)),
                pl.BlockSpec((inter, d), lambda i: (0, 0)),      # resident fc2 weight
                pl.BlockSpec((1, d), lambda i: (0, 0)),
            ],
            out_specs=pl.BlockSpec((tm, d), lambda i: (i, 0))),
        compiler_params=_cparams(("parallel",)),
    )(x, g.reshape(1, d), beta.reshape(1, d),
      w1_t, b1.reshape(1, inter), w2_t, b2.reshape(1, d))


def mlm_head(x, g, beta, w_t, bias, *, eps=LN_EPS):
    m, d = x.shape
    v = w_t.shape[1]
    tm = _token_tile(m)
    tn = _vocab_tile(v)
    return pl.pallas_call(
        functools.partial(mlm_head_kernel, eps=eps),
        out_shape=(jax.ShapeDtypeStruct((m, d), jnp.float32),
                   jax.ShapeDtypeStruct((m, v), jnp.float32)),
        grid_spec=pltpu.PrefetchScalarGridSpec(
            num_scalar_prefetch=0, grid=(m // tm, v // tn),
            in_specs=[
                pl.BlockSpec((tm, d), lambda i, j: (i, 0)),
                pl.BlockSpec((1, d), lambda i, j: (0, 0)),
                pl.BlockSpec((1, d), lambda i, j: (0, 0)),
                pl.BlockSpec((d, tn), lambda i, j: (0, j)),      # vocab-tiled tied weight
                pl.BlockSpec((1, tn), lambda i, j: (0, j)),
            ],
            out_specs=(pl.BlockSpec((tm, d), lambda i, j: (i, 0)),
                       pl.BlockSpec((tm, tn), lambda i, j: (i, j))),
            scratch_shapes=[pltpu.VMEM((tm, d), jnp.float32)]),
        compiler_params=_cparams(("parallel", "arbitrary")),
    )(x, g.reshape(1, d), beta.reshape(1, d), w_t, bias.reshape(1, v))


# ------------------------- full forward pass ---------------------------------

def transformer_forward(input_ids, params, *, num_heads):
    b, t = input_ids.shape
    word_emb = params["word_emb"]
    h = word_emb.shape[1]
    m = b * t

    flat_ids = input_ids.reshape(-1).astype(jnp.int32)
    # Embedding gather hoisted to XLA -> dense (B*T, H) slab into the kernel.
    we = jnp.take(word_emb, flat_ids, axis=0)                          # [M, H]
    x = embed(we, params["pos_emb"][:t], params["emb_g"], params["emb_b"])
    # TODO(synk): embedding / hidden / attention dropouts are eval-mode identity.
    # (Embed.hidden_mapping is None inside Transformer: embed_dim == hidden_size)

    for lp in params["layers"]:
        x = attention_block(x, lp["ln1_g"], lp["ln1_b"],
                            lp["w_attn_t"], lp["b_attn"],
                            lp["w_proj_t"], lp["b_proj"],
                            num_heads=num_heads, seq_len=t)
        x = mlp_block(x, lp["ln2_g"], lp["ln2_b"],
                      lp["w_fc1_t"], lp["b_fc1"],
                      lp["w_fc2_t"], lp["b_fc2"])

    xn, logits = mlm_head(x, params["lnf_g"], params["lnf_b"],
                          params["word_emb_t"], params["mlm_bias"])
    return logits.reshape(b, t, -1), xn.reshape(b, t, h)


# ----------------------------- reference -------------------------------------

def reference_forward(input_ids, params, *, num_heads):
    b, t = input_ids.shape
    word_emb = params["word_emb"]
    h = word_emb.shape[1]
    hd = h // num_heads

    def ln(x, g, bb):
        mu = x.mean(-1, keepdims=True)
        va = ((x - mu) ** 2).mean(-1, keepdims=True)
        return (x - mu) / jnp.sqrt(va + LN_EPS) * g + bb

    x = word_emb[input_ids] + params["pos_emb"][:t][None]
    x = ln(x, params["emb_g"], params["emb_b"])
    for lp in params["layers"]:
        hx = ln(x, lp["ln1_g"], lp["ln1_b"])
        qkv = hx @ lp["w_attn_t"] + lp["b_attn"]
        q, k, v = jnp.split(qkv, 3, axis=-1)
        q = q.reshape(b, t, num_heads, hd).transpose(0, 2, 1, 3)
        k = k.reshape(b, t, num_heads, hd).transpose(0, 2, 1, 3)
        v = v.reshape(b, t, num_heads, hd).transpose(0, 2, 1, 3)
        att = jnp.einsum("bhtd,bhsd->bhts", q, k) / math.sqrt(hd)
        mask = jnp.tril(jnp.ones((t, t), bool))
        att = jnp.where(mask[None, None], att, -jnp.inf)
        att = jax.nn.softmax(att, axis=-1)
        y = jnp.einsum("bhts,bhsd->bhtd", att, v)
        y = y.transpose(0, 2, 1, 3).reshape(b, t, h)
        y = y @ lp["w_proj_t"] + lp["b_proj"]
        x = y + x
        hx = ln(x, lp["ln2_g"], lp["ln2_b"])
        hx = jax.nn.gelu(hx @ lp["w_fc1_t"] + lp["b_fc1"], approximate=True)
        hx = hx @ lp["w_fc2_t"] + lp["b_fc2"]
        x = hx + x
    xn = ln(x, params["lnf_g"], params["lnf_b"])
    logits = xn @ params["word_emb_t"] + params["mlm_bias"]
    return logits, xn


def trunc_normal(key, shape, std=0.02, a=-0.04, b=0.04):
    return std * jax.random.truncated_normal(key, a / std, b / std, shape, jnp.float32)


if __name__ == "__main__":
    vocab_size = 128          # multiple of 128 -> lane-dense logits
    hidden = 128              # multiple of 128 -> lane-dense activations
    num_heads = 4             # head_dim = 32
    intermediate = 256
    num_layers = 2
    max_pos = 64
    B, T = 2, 16

    key = jax.random.PRNGKey(0)
    keys = iter(jax.random.split(key, 64))

    def linear_init(kw, kb, out_f, in_f):
        # PyTorch layout (out, in) for init fidelity; stored pre-transposed.
        w = trunc_normal(kw, (out_f, in_f))
        bound = 1.0 / math.sqrt(in_f)
        bvec = jax.random.uniform(kb, (out_f,), jnp.float32, -bound, bound)
        return w, bvec

    word_emb = trunc_normal(next(keys), (vocab_size, hidden))
    params = {
        "word_emb": word_emb,
        "word_emb_t": word_emb.T,        # pre-transposed once for the tied head
        "pos_emb": trunc_normal(next(keys), (max_pos, hidden)),
        "emb_g": jnp.ones((hidden,), jnp.float32),
        "emb_b": jnp.zeros((hidden,), jnp.float32),
        "lnf_g": jnp.ones((hidden,), jnp.float32),
        "lnf_b": jnp.zeros((hidden,), jnp.float32),
        "mlm_bias": jnp.zeros((vocab_size,), jnp.float32),
        "layers": [],
    }
    for _ in range(num_layers):
        w_attn, b_attn = linear_init(next(keys), next(keys), 3 * hidden, hidden)
        w_proj, b_proj = linear_init(next(keys), next(keys), hidden, hidden)
        w_fc1, b_fc1 = linear_init(next(keys), next(keys), intermediate, hidden)
        w_fc2, b_fc2 = linear_init(next(keys), next(keys), hidden, intermediate)
        params["layers"].append({
            "ln1_g": jnp.ones((hidden,), jnp.float32),
            "ln1_b": jnp.zeros((hidden,), jnp.float32),
            "ln2_g": jnp.ones((hidden,), jnp.float32),
            "ln2_b": jnp.zeros((hidden,), jnp.float32),
            # weights stored pre-transposed (in_features, out_features)
            "w_attn_t": w_attn.T, "b_attn": b_attn,
            "w_proj_t": w_proj.T, "b_proj": b_proj,
            "w_fc1_t": w_fc1.T, "b_fc1": b_fc1,
            "w_fc2_t": w_fc2.T, "b_fc2": b_fc2,
        })

    input_ids = jax.random.randint(next(keys), (B, T), 0, vocab_size, dtype=jnp.int32)

    fwd = jax.jit(functools.partial(transformer_forward, num_heads=num_heads))
    logits, hidden_states = fwd(input_ids, params)
    logits = jax.block_until_ready(logits)
    hidden_states = jax.block_until_ready(hidden_states)

    ref_logits, ref_hidden = reference_forward(input_ids, params, num_heads=num_heads)

    assert logits.shape == (B, T, vocab_size)
    assert hidden_states.shape == (B, T, hidden)
    assert jnp.allclose(hidden_states, ref_hidden, atol=2e-2, rtol=2e-2), (
        "hidden mismatch, max abs diff = "
        f"{float(jnp.max(jnp.abs(hidden_states - ref_hidden)))}")
    assert jnp.allclose(logits, ref_logits, atol=2e-2, rtol=2e-2), (
        "logits mismatch, max abs diff = "
        f"{float(jnp.max(jnp.abs(logits - ref_logits)))}")
    print("KERNEL_OK")
</pallas_src>

<mosaic_0001>
module attributes {stable_mosaic.version = 11 : i64} {
  func.func @mlp_block_kernel(%arg0: i32, %arg1: memref<16x128xf32, #tpu.memory_space<vmem>>, %arg2: memref<1x128xf32, #tpu.memory_space<vmem>>, %arg3: memref<1x128xf32, #tpu.memory_space<vmem>>, %arg4: memref<128x256xf32, #tpu.memory_space<vmem>>, %arg5: memref<1x256xf32, #tpu.memory_space<vmem>>, %arg6: memref<256x128xf32, #tpu.memory_space<vmem>>, %arg7: memref<1x128xf32, #tpu.memory_space<vmem>>, %arg8: memref<16x128xf32, #tpu.memory_space<vmem>>) attributes {dimension_semantics = [#tpu.dimension_semantics<parallel>], iteration_bounds = array<i64: 2>, scalar_prefetch = 0 : i64, scratch_operands = 0 : i64, tpu.core_type = #tpu.core_type<tc>, window_params = [{transform_indices = @transform_0, window_bounds = array<i64: 16, 128>}, {pipeline_mode = #tpu.pipeline_mode<synchronous>, transform_indices = @transform_1, window_bounds = array<i64: 1, 128>}, {pipeline_mode = #tpu.pipeline_mode<synchronous>, transform_indices = @transform_2, window_bounds = array<i64: 1, 128>}, {pipeline_mode = #tpu.pipeline_mode<synchronous>, transform_indices = @transform_3, window_bounds = array<i64: 128, 256>}, {pipeline_mode = #tpu.pipeline_mode<synchronous>, transform_indices = @transform_4, window_bounds = array<i64: 1, 256>}, {pipeline_mode = #tpu.pipeline_mode<synchronous>, transform_indices = @transform_5, window_bounds = array<i64: 256, 128>}, {pipeline_mode = #tpu.pipeline_mode<synchronous>, transform_indices = @transform_6, window_bounds = array<i64: 1, 128>}, {transform_indices = @transform_7, window_bounds = array<i64: 16, 128>}]} {
    %c0 = arith.constant 0 : index
    %c0_0 = arith.constant 0 : index
    %0 = vector.load %arg1[%c0, %c0_0] : memref<16x128xf32, #tpu.memory_space<vmem>>, vector<16x128xf32>
    %c0_1 = arith.constant 0 : index
    %c0_2 = arith.constant 0 : index
    %1 = vector.load %arg2[%c0_1, %c0_2] : memref<1x128xf32, #tpu.memory_space<vmem>>, vector<1x128xf32>
    %c0_3 = arith.constant 0 : index
    %c0_4 = arith.constant 0 : index
    %2 = vector.load %arg3[%c0_3, %c0_4] : memref<1x128xf32, #tpu.memory_space<vmem>>, vector<1x128xf32>
    %cst = arith.constant dense<0.000000e+00> : vector<16xf32>
    %3 = vector.multi_reduction <add>, %0, %cst [1] : vector<16x128xf32> to vector<16xf32>
    %4 = vector.shape_cast %3 : vector<16xf32> to vector<16x1xf32>
    %cst_5 = arith.constant 1.280000e+02 : f32
    %5 = vector.broadcast %cst_5 : f32 to vector<16x1xf32>
    %6 = arith.divf %4, %5 : vector<16x1xf32>
    %7 = vector.broadcast %6 : vector<16x1xf32> to vector<16x128xf32>
    %8 = arith.subf %0, %7 : vector<16x128xf32>
    %9 = arith.mulf %8, %8 : vector<16x128xf32>
    %cst_6 = arith.constant dense<0.000000e+00> : vector<16xf32>
    %10 = vector.multi_reduction <add>, %9, %cst_6 [1] : vector<16x128xf32> to vector<16xf32>
    %11 = vector.shape_cast %10 : vector<16xf32> to vector<16x1xf32>
    %cst_7 = arith.constant 1.280000e+02 : f32
    %12 = vector.broadcast %cst_7 : f32 to vector<16x1xf32>
    %13 = arith.divf %11, %12 : vector<16x1xf32>
    %14 = vector.broadcast %6 : vector<16x1xf32> to vector<16x128xf32>
    %15 = arith.subf %0, %14 : vector<16x128xf32>
    %cst_8 = arith.constant 9.99999996E-13 : f32
    %16 = vector.broadcast %cst_8 : f32 to vector<16x1xf32>
    %17 = arith.addf %13, %16 : vector<16x1xf32>
    %18 = math.rsqrt %17 : vector<16x1xf32>
    %19 = vector.broadcast %18 : vector<16x1xf32> to vector<16x128xf32>
    %20 = arith.mulf %15, %19 : vector<16x128xf32>
    %21 = vector.broadcast %1 : vector<1x128xf32> to vector<16x128xf32>
    %22 = arith.mulf %20, %21 : vector<16x128xf32>
    %23 = vector.broadcast %2 : vector<1x128xf32> to vector<16x128xf32>
    %24 = arith.addf %22, %23 : vector<16x128xf32>
    %c0_9 = arith.constant 0 : index
    %c0_10 = arith.constant 0 : index
    %25 = vector.load %arg4[%c0_9, %c0_10] : memref<128x256xf32, #tpu.memory_space<vmem>>, vector<128x256xf32>
    %cst_11 = arith.constant dense<0.000000e+00> : vector<16x256xf32>
    %26 = tpu.matmul %24, %25, %cst_11 {dimension_numbers = #tpu.dot_dimension_numbers<[1], [0], [0], [1], [0, 0, 1, 1], [], []>} : vector<16x128xf32>, vector<128x256xf32>, vector<16x256xf32> -> vector<16x256xf32>
    %c0_12 = arith.constant 0 : index
    %c0_13 = arith.constant 0 : index
    %27 = vector.load %arg5[%c0_12, %c0_13] : memref<1x256xf32, #tpu.memory_space<vmem>>, vector<1x256xf32>
    %28 = vector.broadcast %27 : vector<1x256xf32> to vector<16x256xf32>
    %29 = arith.addf %26, %28 : vector<16x256xf32>
    %30 = arith.mulf %29, %29 : vector<16x256xf32>
    %31 = arith.mulf %29, %30 : vector<16x256xf32>
    %cst_14 = arith.constant 4.471500e-02 : f32
    %32 = vector.broadcast %cst_14 : f32 to vector<16x256xf32>
    %33 = arith.mulf %32, %31 : vector<16x256xf32>
    %34 = arith.addf %29, %33 : vector<16x256xf32>
    %cst_15 = arith.constant 0.797884583 : f32
    %35 = vector.broadcast %cst_15 : f32 to vector<16x256xf32>
    %36 = arith.mulf %35, %34 : vector<16x256xf32>
    %37 = math.tanh %36 : vector<16x256xf32>
    %cst_16 = arith.constant 1.000000e+00 : f32
    %38 = vector.broadcast %cst_16 : f32 to vector<16x256xf32>
    %39 = arith.addf %38, %37 : vector<16x256xf32>
    %cst_17 = arith.constant 5.000000e-01 : f32
    %40 = vector.broadcast %cst_17 : f32 to vector<16x256xf32>
    %41 = arith.mulf %40, %39 : vector<16x256xf32>
    %42 = arith.mulf %29, %41 : vector<16x256xf32>
    %c0_18 = arith.constant 0 : index
    %c0_19 = arith.constant 0 : index
    %43 = vector.load %arg6[%c0_18, %c0_19] : memref<256x128xf32, #tpu.memory_space<vmem>>, vector<256x128xf32>
    %cst_20 = arith.constant dense<0.000000e+00> : vector<16x128xf32>
    %44 = tpu.matmul %42, %43, %cst_20 {dimension_numbers = #tpu.dot_dimension_numbers<[1], [0], [0], [1], [0, 0, 1, 1], [], []>} : vector<16x256xf32>, vector<256x128xf32>, vector<16x128xf32> -> vector<16x128xf32>
    %c0_21 = arith.constant 0 : index
    %c0_22 = arith.constant 0 : index
    %45 = vector.load %arg7[%c0_21, %c0_22] : memref<1x128xf32, #tpu.memory_space<vmem>>, vector<1x128xf32>
    %46 = vector.broadcast %45 : vector<1x128xf32> to vector<16x128xf32>
    %47 = arith.addf %44, %46 : vector<16x128xf32>
    %48 = arith.addf %47, %0 : vector<16x128xf32>
    %c0_23 = arith.constant 0 : index
    %c0_24 = arith.constant 0 : index
    %49 = vector.load %arg8[%c0_23, %c0_24] : memref<16x128xf32, #tpu.memory_space<vmem>>, vector<16x128xf32>
    tpu.vector_store %arg8[%c0_23, %c0_24], %48 {strides = array<i32>} : memref<16x128xf32, #tpu.memory_space<vmem>>, vector<16x128xf32>,
    return
  }
  func.func @transform_0(%arg0: i32) -> (i32, i32) {
    %c0_i32 = arith.constant 0 : i32
    %c0_i32_0 = arith.constant 0 : i32
    return %arg0, %c0_i32 : i32, i32
  }
  func.func @transform_1(%arg0: i32) -> (i32, i32) {
    %c0_i32 = arith.constant 0 : i32
    %c0_i32_0 = arith.constant 0 : i32
    %c0_i32_1 = arith.constant 0 : i32
    return %c0_i32, %c0_i32_0 : i32, i32
  }
  func.func @transform_2(%arg0: i32) -> (i32, i32) {
    %c0_i32 = arith.constant 0 : i32
    %c0_i32_0 = arith.constant 0 : i32
    %c0_i32_1 = arith.constant 0 : i32
    return %c0_i32, %c0_i32_0 : i32, i32
  }
  func.func @transform_3(%arg0: i32) -> (i32, i32) {
    %c0_i32 = arith.constant 0 : i32
    %c0_i32_0 = arith.constant 0 : i32
    %c0_i32_1 = arith.constant 0 : i32
    return %c0_i32, %c0_i32_0 : i32, i32
  }
  func.func @transform_4(%arg0: i32) -> (i32, i32) {
    %c0_i32 = arith.constant 0 : i32
    %c0_i32_0 = arith.constant 0 : i32
    %c0_i32_1 = arith.constant 0 : i32
    return %c0_i32, %c0_i32_0 : i32, i32
  }
  func.func @transform_5(%arg0: i32) -> (i32, i32) {
    %c0_i32 = arith.constant 0 : i32
    %c0_i32_0 = arith.constant 0 : i32
    %c0_i32_1 = arith.constant 0 : i32
    return %c0_i32, %c0_i32_0 : i32, i32
  }
  func.func @transform_6(%arg0: i32) -> (i32, i32) {
    %c0_i32 = arith.constant 0 : i32
    %c0_i32_0 = arith.constant 0 : i32
    %c0_i32_1 = arith.constant 0 : i32
    return %c0_i32, %c0_i32_0 : i32, i32
  }
  func.func @transform_7(%arg0: i32) -> (i32, i32) {
    %c0_i32 = arith.constant 0 : i32
    %c0_i32_0 = arith.constant 0 : i32
    return %arg0, %c0_i32 : i32, i32
  }
}

module attributes {stable_mosaic.version = 11 : i64} {
  func.func @embed_kernel(%arg0: i32, %arg1: memref<16x128xf32, #tpu.memory_space<vmem>>, %arg2: memref<16x128xf32, #tpu.memory_space<vmem>>, %arg3: memref<1x128xf32, #tpu.memory_space<vmem>>, %arg4: memref<1x128xf32, #tpu.memory_space<vmem>>, %arg5: memref<16x128xf32, #tpu.memory_space<vmem>>) attributes {dimension_semantics = [#tpu.dimension_semantics<parallel>], iteration_bounds = array<i64: 2>, scalar_prefetch = 0 : i64, scratch_operands = 0 : i64, tpu.core_type = #tpu.core_type<tc>, window_params = [{transform_indices = @transform_0, window_bounds = array<i64: 16, 128>}, {transform_indices = @transform_1, window_bounds = array<i64: 16, 128>}, {pipeline_mode = #tpu.pipeline_mode<synchronous>, transform_indices = @transform_2, window_bounds = array<i64: 1, 128>}, {pipeline_mode = #tpu.pipeline_mode<synchronous>, transform_indices = @transform_3, window_bounds = array<i64: 1, 128>}, {transform_indices = @transform_4, window_bounds = array<i64: 16, 128>}]} {
    %c0 = arith.constant 0 : index
    %c0_0 = arith.constant 0 : index
    %0 = vector.load %arg1[%c0, %c0_0] : memref<16x128xf32, #tpu.memory_space<vmem>>, vector<16x128xf32>
    %c0_1 = arith.constant 0 : index
    %c0_2 = arith.constant 0 : index
    %1 = vector.load %arg2[%c0_1, %c0_2] : memref<16x128xf32, #tpu.memory_space<vmem>>, vector<16x128xf32>
    %2 = arith.addf %0, %1 : vector<16x128xf32>
    %c0_3 = arith.constant 0 : index
    %c0_4 = arith.constant 0 : index
    %3 = vector.load %arg3[%c0_3, %c0_4] : memref<1x128xf32, #tpu.memory_space<vmem>>, vector<1x128xf32>
    %c0_5 = arith.constant 0 : index
    %c0_6 = arith.constant 0 : index
    %4 = vector.load %arg4[%c0_5, %c0_6] : memref<1x128xf32, #tpu.memory_space<vmem>>, vector<1x128xf32>
    %cst = arith.constant dense<0.000000e+00> : vector<16xf32>
    %5 = vector.multi_reduction <add>, %2, %cst [1] : vector<16x128xf32> to vector<16xf32>
    %6 = vector.shape_cast %5 : vector<16xf32> to vector<16x1xf32>
    %cst_7 = arith.constant 1.280000e+02 : f32
    %7 = vector.broadcast %cst_7 : f32 to vector<16x1xf32>
    %8 = arith.divf %6, %7 : vector<16x1xf32>
    %9 = vector.broadcast %8 : vector<16x1xf32> to vector<16x128xf32>
    %10 = arith.subf %2, %9 : vector<16x128xf32>
    %11 = arith.mulf %10, %10 : vector<16x128xf32>
    %cst_8 = arith.constant dense<0.000000e+00> : vector<16xf32>
    %12 = vector.multi_reduction <add>, %11, %cst_8 [1] : vector<16x128xf32> to vector<16xf32>
    %13 = vector.shape_cast %12 : vector<16xf32> to vector<16x1xf32>
    %cst_9 = arith.constant 1.280000e+02 : f32
    %14 = vector.broadcast %cst_9 : f32 to vector<16x1xf32>
    %15 = arith.divf %13, %14 : vector<16x1xf32>
    %16 = vector.broadcast %8 : vector<16x1xf32> to vector<16x128xf32>
    %17 = arith.subf %2, %16 : vector<16x128xf32>
    %cst_10 = arith.constant 9.99999996E-13 : f32
    %18 = vector.broadcast %cst_10 : f32 to vector<16x1xf32>
    %19 = arith.addf %15, %18 : vector<16x1xf32>
    %20 = math.rsqrt %19 : vector<16x1xf32>
    %21 = vector.broadcast %20 : vector<16x1xf32> to vector<16x128xf32>
    %22 = arith.mulf %17, %21 : vector<16x128xf32>
    %23 = vector.broadcast %3 : vector<1x128xf32> to vector<16x128xf32>
    %24 = arith.mulf %22, %23 : vector<16x128xf32>
    %25 = vector.broadcast %4 : vector<1x128xf32> to vector<16x128xf32>
    %26 = arith.addf %24, %25 : vector<16x128xf32>
    %c0_11 = arith.constant 0 : index
    %c0_12 = arith.constant 0 : index
    %27 = vector.load %arg5[%c0_11, %c0_12] : memref<16x128xf32, #tpu.memory_space<vmem>>, vector<16x128xf32>
    tpu.vector_store %arg5[%c0_11, %c0_12], %26 {strides = array<i32>} : memref<16x128xf32, #tpu.memory_space<vmem>>, vector<16x128xf32>,
    return
  }
  func.func @transform_0(%arg0: i32) -> (i32, i32) {
    %c0_i32 = arith.constant 0 : i32
    %c0_i32_0 = arith.constant 0 : i32
    return %arg0, %c0_i32 : i32, i32
  }
  func.func @transform_1(%arg0: i32) -> (i32, i32) {
    %c1_i32 = arith.constant 1 : i32
    %c0_i32 = arith.constant 0 : i32
    %0 = arith.cmpi eq, %c1_i32, %c0_i32 : i32
    %c1_i32_0 = arith.constant 1 : i32
    %1 = arith.select %0, %c1_i32_0, %c1_i32 : i32
    %2 = arith.remsi %arg0, %1 : i32
    %c0_i32_1 = arith.constant 0 : i32
    %3 = arith.cmpi ne, %2, %c0_i32_1 : i32
    %c0_i32_2 = arith.constant 0 : i32
    %4 = arith.cmpi slt, %2, %c0_i32_2 : i32
    %c0_i32_3 = arith.constant 0 : i32
    %5 = arith.cmpi slt, %1, %c0_i32_3 : i32
    %6 = arith.xori %4, %5 : i1
    %7 = arith.andi %6, %3 : i1
    %8 = arith.addi %2, %1 : i32
    %9 = arith.select %7, %8, %2 : i32
    %c0_i32_4 = arith.constant 0 : i32
    %c0_i32_5 = arith.constant 0 : i32
    return %9, %c0_i32_4 : i32, i32
  }
  func.func @transform_2(%arg0: i32) -> (i32, i32) {
    %c0_i32 = arith.constant 0 : i32
    %c0_i32_0 = arith.constant 0 : i32
    %c0_i32_1 = arith.constant 0 : i32
    return %c0_i32, %c0_i32_0 : i32, i32
  }
  func.func @transform_3(%arg0: i32) -> (i32, i32) {
    %c0_i32 = arith.constant 0 : i32
    %c0_i32_0 = arith.constant 0 : i32
    %c0_i32_1 = arith.constant 0 : i32
    return %c0_i32, %c0_i32_0 : i32, i32
  }
  func.func @transform_4(%arg0: i32) -> (i32, i32) {
    %c0_i32 = arith.constant 0 : i32
    %c0_i32_0 = arith.constant 0 : i32
    return %arg0, %c0_i32 : i32, i32
  }
}

module attributes {stable_mosaic.version = 11 : i64} {
  func.func @attn_block_kernel(%arg0: i32, %arg1: memref<16x128xf32, #tpu.memory_space<vmem>>, %arg2: memref<1x128xf32, #tpu.memory_space<vmem>>, %arg3: memref<1x128xf32, #tpu.memory_space<vmem>>, %arg4: memref<128x384xf32, #tpu.memory_space<vmem>>, %arg5: memref<1x384xf32, #tpu.memory_space<vmem>>, %arg6: memref<128x128xf32, #tpu.memory_space<vmem>>, %arg7: memref<1x128xf32, #tpu.memory_space<vmem>>, %arg8: memref<16x128xf32, #tpu.memory_space<vmem>>) attributes {dimension_semantics = [#tpu.dimension_semantics<parallel>], iteration_bounds = array<i64: 2>, scalar_prefetch = 0 : i64, scratch_operands = 0 : i64, tpu.core_type = #tpu.core_type<tc>, window_params = [{transform_indices = @transform_0, window_bounds = array<i64: 16, 128>}, {pipeline_mode = #tpu.pipeline_mode<synchronous>, transform_indices = @transform_1, window_bounds = array<i64: 1, 128>}, {pipeline_mode = #tpu.pipeline_mode<synchronous>, transform_indices = @transform_2, window_bounds = array<i64: 1, 128>}, {pipeline_mode = #tpu.pipeline_mode<synchronous>, transform_indices = @transform_3, window_bounds = array<i64: 128, 384>}, {pipeline_mode = #tpu.pipeline_mode<synchronous>, transform_indices = @transform_4, window_bounds = array<i64: 1, 384>}, {pipeline_mode = #tpu.pipeline_mode<synchronous>, transform_indices = @transform_5, window_bounds = array<i64: 128, 128>}, {pipeline_mode = #tpu.pipeline_mode<synchronous>, transform_indices = @transform_6, window_bounds = array<i64: 1, 128>}, {transform_indices = @transform_7, window_bounds = array<i64: 16, 128>}]} {
    %c0 = arith.constant 0 : index
    %c0_0 = arith.constant 0 : index
    %0 = vector.load %arg1[%c0, %c0_0] : memref<16x128xf32, #tpu.memory_space<vmem>>, vector<16x128xf32>
    %c0_1 = arith.constant 0 : index
    %c0_2 = arith.constant 0 : index
    %1 = vector.load %arg2[%c0_1, %c0_2] : memref<1x128xf32, #tpu.memory_space<vmem>>, vector<1x128xf32>
    %c0_3 = arith.constant 0 : index
    %c0_4 = arith.constant 0 : index
    %2 = vector.load %arg3[%c0_3, %c0_4] : memref<1x128xf32, #tpu.memory_space<vmem>>, vector<1x128xf32>
    %cst = arith.constant dense<0.000000e+00> : vector<16xf32>
    %3 = vector.multi_reduction <add>, %0, %cst [1] : vector<16x128xf32> to vector<16xf32>
    %4 = vector.shape_cast %3 : vector<16xf32> to vector<16x1xf32>
    %cst_5 = arith.constant 1.280000e+02 : f32
    %5 = vector.broadcast %cst_5 : f32 to vector<16x1xf32>
    %6 = arith.divf %4, %5 : vector<16x1xf32>
    %7 = vector.broadcast %6 : vector<16x1xf32> to vector<16x128xf32>
    %8 = arith.subf %0, %7 : vector<16x128xf32>
    %9 = arith.mulf %8, %8 : vector<16x128xf32>
    %cst_6 = arith.constant dense<0.000000e+00> : vector<16xf32>
    %10 = vector.multi_reduction <add>, %9, %cst_6 [1] : vector<16x128xf32> to vector<16xf32>
    %11 = vector.shape_cast %10 : vector<16xf32> to vector<16x1xf32>
    %cst_7 = arith.constant 1.280000e+02 : f32
    %12 = vector.broadcast %cst_7 : f32 to vector<16x1xf32>
    %13 = arith.divf %11, %12 : vector<16x1xf32>
    %14 = vector.broadcast %6 : vector<16x1xf32> to vector<16x128xf32>
    %15 = arith.subf %0, %14 : vector<16x128xf32>
    %cst_8 = arith.constant 9.99999996E-13 : f32
    %16 = vector.broadcast %cst_8 : f32 to vector<16x1xf32>
    %17 = arith.addf %13, %16 : vector<16x1xf32>
    %18 = math.rsqrt %17 : vector<16x1xf32>
    %19 = vector.broadcast %18 : vector<16x1xf32> to vector<16x128xf32>
    %20 = arith.mulf %15, %19 : vector<16x128xf32>
    %21 = vector.broadcast %1 : vector<1x128xf32> to vector<16x128xf32>
    %22 = arith.mulf %20, %21 : vector<16x128xf32>
    %23 = vector.broadcast %2 : vector<1x128xf32> to vector<16x128xf32>
    %24 = arith.addf %22, %23 : vector<16x128xf32>
    %c0_9 = arith.constant 0 : index
    %c0_10 = arith.constant 0 : index
    %25 = vector.load %arg4[%c0_9, %c0_10] : memref<128x384xf32, #tpu.memory_space<vmem>>, vector<128x384xf32>
    %cst_11 = arith.constant dense<0.000000e+00> : vector<16x384xf32>
    %26 = tpu.matmul %24, %25, %cst_11 {dimension_numbers = #tpu.dot_dimension_numbers<[1], [0], [0], [1], [0, 0, 1, 1], [], []>} : vector<16x128xf32>, vector<128x384xf32>, vector<16x384xf32> -> vector<16x384xf32>
    %c0_12 = arith.constant 0 : index
    %c0_13 = arith.constant 0 : index
    %27 = vector.load %arg5[%c0_12, %c0_13] : memref<1x384xf32, #tpu.memory_space<vmem>>, vector<1x384xf32>
    %28 = vector.broadcast %27 : vector<1x384xf32> to vector<16x384xf32>
    %29 = arith.addf %26, %28 : vector<16x384xf32>
    %30 = tpu.iota {dimensions = array<i32: 0>} : vector<16x16xi32>
    %31 = tpu.iota {dimensions = array<i32: 1>} : vector<16x16xi32>
    %32 = arith.cmpi sle, %31, %30 : vector<16x16xi32>
    %33 = vector.extract_strided_slice %29 {offsets = [0, 0], sizes = [16, 32], strides = [1, 1]} : vector<16x384xf32> to vector<16x32xf32>
    %34 = vector.extract_strided_slice %29 {offsets = [0, 128], sizes = [16, 32], strides = [1, 1]} : vector<16x384xf32> to vector<16x32xf32>
    %35 = vector.extract_strided_slice %29 {offsets = [0, 256], sizes = [16, 32], strides = [1, 1]} : vector<16x384xf32> to vector<16x32xf32>
    %cst_14 = arith.constant dense<0.000000e+00> : vector<16x16xf32>
    %36 = tpu.matmul %33, %34, %cst_14 {dimension_numbers = #tpu.dot_dimension_numbers<[1], [1], [0], [0], [0, 0, 1, 0], [], []>} : vector<16x32xf32>, vector<16x32xf32>, vector<16x16xf32> -> vector<16x16xf32>
    %cst_15 = arith.constant 0.176776692 : f32
    %37 = vector.broadcast %cst_15 : f32 to vector<16x16xf32>
    %38 = arith.mulf %36, %37 : vector<16x16xf32>
    %cst_16 = arith.constant -1.000000e+30 : f32
    %39 = vector.broadcast %cst_16 : f32 to vector<16x16xf32>
    %40 = arith.select %32, %38, %39 : vector<16x16xi1>, vector<16x16xf32>
    %cst_17 = arith.constant dense<0xFF800000> : vector<16xf32>
    %41 = vector.multi_reduction <maximumf>, %40, %cst_17 [1] : vector<16x16xf32> to vector<16xf32>
    %42 = vector.shape_cast %41 : vector<16xf32> to vector<16x1xf32>
    %43 = vector.broadcast %42 : vector<16x1xf32> to vector<16x16xf32>
    %44 = arith.subf %40, %43 : vector<16x16xf32>
    %45 = math.exp %44 : vector<16x16xf32>
    %cst_18 = arith.constant dense<0.000000e+00> : vector<16xf32>
    %46 = vector.multi_reduction <add>, %45, %cst_18 [1] : vector<16x16xf32> to vector<16xf32>
    %47 = vector.shape_cast %46 : vector<16xf32> to vector<16x1xf32>
    %48 = tpu.reciprocal %47 {approx = true} : vector<16x1xf32> -> vector<16x1xf32>
    %49 = vector.broadcast %48 : vector<16x1xf32> to vector<16x16xf32>
    %50 = arith.mulf %45, %49 : vector<16x16xf32>
    %cst_19 = arith.constant dense<0.000000e+00> : vector<16x32xf32>
    %51 = tpu.matmul %50, %35, %cst_19 {dimension_numbers = #tpu.dot_dimension_numbers<[1], [0], [0], [1], [0, 0, 1, 1], [], []>} : vector<16x16xf32>, vector<16x32xf32>, vector<16x32xf32> -> vector<16x32xf32>
    %52 = vector.extract_strided_slice %29 {offsets = [0, 32], sizes = [16, 32], strides = [1, 1]} : vector<16x384xf32> to vector<16x32xf32>
    %53 = vector.extract_strided_slice %29 {offsets = [0, 160], sizes = [16, 32], strides = [1, 1]} : vector<16x384xf32> to vector<16x32xf32>
    %54 = vector.extract_strided_slice %29 {offsets = [0, 288], sizes = [16, 32], strides = [1, 1]} : vector<16x384xf32> to vector<16x32xf32>
    %cst_20 = arith.constant dense<0.000000e+00> : vector<16x16xf32>
    %55 = tpu.matmul %52, %53, %cst_20 {dimension_numbers = #tpu.dot_dimension_numbers<[1], [1], [0], [0], [0, 0, 1, 0], [], []>} : vector<16x32xf32>, vector<16x32xf32>, vector<16x16xf32> -> vector<16x16xf32>
    %cst_21 = arith.constant 0.176776692 : f32
    %56 = vector.broadcast %cst_21 : f32 to vector<16x16xf32>
    %57 = arith.mulf %55, %56 : vector<16x16xf32>
    %cst_22 = arith.constant -1.000000e+30 : f32
    %58 = vector.broadcast %cst_22 : f32 to vector<16x16xf32>
    %59 = arith.select %32, %57, %58 : vector<16x16xi1>, vector<16x16xf32>
    %cst_23 = arith.constant dense<0xFF800000> : vector<16xf32>
    %60 = vector.multi_reduction <maximumf>, %59, %cst_23 [1] : vector<16x16xf32> to vector<16xf32>
    %61 = vector.shape_cast %60 : vector<16xf32> to vector<16x1xf32>
    %62 = vector.broadcast %61 : vector<16x1xf32> to vector<16x16xf32>
    %63 = arith.subf %59, %62 : vector<16x16xf32>
    %64 = math.exp %63 : vector<16x16xf32>
    %cst_24 = arith.constant dense<0.000000e+00> : vector<16xf32>
    %65 = vector.multi_reduction <add>, %64, %cst_24 [1] : vector<16x16xf32> to vector<16xf32>
    %66 = vector.shape_cast %65 : vector<16xf32> to vector<16x1xf32>
    %67 = tpu.reciprocal %66 {approx = true} : vector<16x1xf32> -> vector<16x1xf32>
    %68 = vector.broadcast %67 : vector<16x1xf32> to vector<16x16xf32>
    %69 = arith.mulf %64, %68 : vector<16x16xf32>
    %cst_25 = arith.constant dense<0.000000e+00> : vector<16x32xf32>
    %70 = tpu.matmul %69, %54, %cst_25 {dimension_numbers = #tpu.dot_dimension_numbers<[1], [0], [0], [1], [0, 0, 1, 1], [], []>} : vector<16x16xf32>, vector<16x32xf32>, vector<16x32xf32> -> vector<16x32xf32>
    %71 = vector.extract_strided_slice %29 {offsets = [0, 64], sizes = [16, 32], strides = [1, 1]} : vector<16x384xf32> to vector<16x32xf32>
    %72 = vector.extract_strided_slice %29 {offsets = [0, 192], sizes = [16, 32], strides = [1, 1]} : vector<16x384xf32> to vector<16x32xf32>
    %73 = vector.extract_strided_slice %29 {offsets = [0, 320], sizes = [16, 32], strides = [1, 1]} : vector<16x384xf32> to vector<16x32xf32>
    %cst_26 = arith.constant dense<0.000000e+00> : vector<16x16xf32>
    %74 = tpu.matmul %71, %72, %cst_26 {dimension_numbers = #tpu.dot_dimension_numbers<[1], [1], [0], [0], [0, 0, 1, 0], [], []>} : vector<16x32xf32>, vector<16x32xf32>, vector<16x16xf32> -> vector<16x16xf32>
    %cst_27 = arith.constant 0.176776692 : f32
    %75 = vector.broadcast %cst_27 : f32 to vector<16x16xf32>
    %76 = arith.mulf %74, %75 : vector<16x16xf32>
    %cst_28 = arith.constant -1.000000e+30 : f32
    %77 = vector.broadcast %cst_28 : f32 to vector<16x16xf32>
    %78 = arith.select %32, %76, %77 : vector<16x16xi1>, vector<16x16xf32>
    %cst_29 = arith.constant dense<0xFF800000> : vector<16xf32>
    %79 = vector.multi_reduction <maximumf>, %78, %cst_29 [1] : vector<16x16xf32> to vector<16xf32>
    %80 = vector.shape_cast %79 : vector<16xf32> to vector<16x1xf32>
    %81 = vector.broadcast %80 : vector<16x1xf32> to vector<16x16xf32>
    %82 = arith.subf %78, %81 : vector<16x16xf32>
    %83 = math.exp %82 : vector<16x16xf32>
    %cst_30 = arith.constant dense<0.000000e+00> : vector<16xf32>
    %84 = vector.multi_reduction <add>, %83, %cst_30 [1] : vector<16x16xf32> to vector<16xf32>
    %85 = vector.shape_cast %84 : vector<16xf32> to vector<16x1xf32>
    %86 = tpu.reciprocal %85 {approx = true} : vector<16x1xf32> -> vector<16x1xf32>
    %87 = vector.broadcast %86 : vector<16x1xf32> to vector<16x16xf32>
    %88 = arith.mulf %83, %87 : vector<16x16xf32>
    %cst_31 = arith.constant dense<0.000000e+00> : vector<16x32xf32>
    %89 = tpu.matmul %88, %73, %cst_31 {dimension_numbers = #tpu.dot_dimension_numbers<[1], [0], [0], [1], [0, 0, 1, 1], [], []>} : vector<16x16xf32>, vector<16x32xf32>, vector<16x32xf32> -> vector<16x32xf32>
    %90 = vector.extract_strided_slice %29 {offsets = [0, 96], sizes = [16, 32], strides = [1, 1]} : vector<16x384xf32> to vector<16x32xf32>
    %91 = vector.extract_strided_slice %29 {offsets = [0, 224], sizes = [16, 32], strides = [1, 1]} : vector<16x384xf32> to vector<16x32xf32>
    %92 = vector.extract_strided_slice %29 {offsets = [0, 352], sizes = [16, 32], strides = [1, 1]} : vector<16x384xf32> to vector<16x32xf32>
    %cst_32 = arith.constant dense<0.000000e+00> : vector<16x16xf32>
    %93 = tpu.matmul %90, %91, %cst_32 {dimension_numbers = #tpu.dot_dimension_numbers<[1], [1], [0], [0], [0, 0, 1, 0], [], []>} : vector<16x32xf32>, vector<16x32xf32>, vector<16x16xf32> -> vector<16x16xf32>
    %cst_33 = arith.constant 0.176776692 : f32
    %94 = vector.broadcast %cst_33 : f32 to vector<16x16xf32>
    %95 = arith.mulf %93, %94 : vector<16x16xf32>
    %cst_34 = arith.constant -1.000000e+30 : f32
    %96 = vector.broadcast %cst_34 : f32 to vector<16x16xf32>
    %97 = arith.select %32, %95, %96 : vector<16x16xi1>, vector<16x16xf32>
    %cst_35 = arith.constant dense<0xFF800000> : vector<16xf32>
    %98 = vector.multi_reduction <maximumf>, %97, %cst_35 [1] : vector<16x16xf32> to vector<16xf32>
    %99 = vector.shape_cast %98 : vector<16xf32> to vector<16x1xf32>
    %100 = vector.broadcast %99 : vector<16x1xf32> to vector<16x16xf32>
    %101 = arith.subf %97, %100 : vector<16x16xf32>
    %102 = math.exp %101 : vector<16x16xf32>
    %cst_36 = arith.constant dense<0.000000e+00> : vector<16xf32>
    %103 = vector.multi_reduction <add>, %102, %cst_36 [1] : vector<16x16xf32> to vector<16xf32>
    %104 = vector.shape_cast %103 : vector<16xf32> to vector<16x1xf32>
    %105 = tpu.reciprocal %104 {approx = true} : vector<16x1xf32> -> vector<16x1xf32>
    %106 = vector.broadcast %105 : vector<16x1xf32> to vector<16x16xf32>
    %107 = arith.mulf %102, %106 : vector<16x16xf32>
    %cst_37 = arith.constant dense<0.000000e+00> : vector<16x32xf32>
    %108 = tpu.matmul %107, %92, %cst_37 {dimension_numbers = #tpu.dot_dimension_numbers<[1], [0], [0], [1], [0, 0, 1, 1], [], []>} : vector<16x16xf32>, vector<16x32xf32>, vector<16x32xf32> -> vector<16x32xf32>
    %109 = tpu.concatenate %51, %70, %89, %108 in 1 : vector<16x32xf32>, vector<16x32xf32>, vector<16x32xf32>, vector<16x32xf32> -> vector<16x128xf32>
    %c0_38 = arith.constant 0 : index
    %c0_39 = arith.constant 0 : index
    %110 = vector.load %arg6[%c0_38, %c0_39] : memref<128x128xf32, #tpu.memory_space<vmem>>, vector<128x128xf32>
    %cst_40 = arith.constant dense<0.000000e+00> : vector<16x128xf32>
    %111 = tpu.matmul %109, %110, %cst_40 {dimension_numbers = #tpu.dot_dimension_numbers<[1], [0], [0], [1], [0, 0, 1, 1], [], []>} : vector<16x128xf32>, vector<128x128xf32>, vector<16x128xf32> -> vector<16x128xf32>
    %c0_41 = arith.constant 0 : index
    %c0_42 = arith.constant 0 : index
    %112 = vector.load %arg7[%c0_41, %c0_42] : memref<1x128xf32, #tpu.memory_space<vmem>>, vector<1x128xf32>
    %113 = vector.broadcast %112 : vector<1x128xf32> to vector<16x128xf32>
    %114 = arith.addf %111, %113 : vector<16x128xf32>
    %115 = arith.addf %114, %0 : vector<16x128xf32>
    %c0_43 = arith.constant 0 : index
    %c0_44 = arith.constant 0 : index
    %116 = vector.load %arg8[%c0_43, %c0_44] : memref<16x128xf32, #tpu.memory_space<vmem>>, vector<16x128xf32>
    tpu.vector_store %arg8[%c0_43, %c0_44], %115 {strides = array<i32>} : memref<16x128xf32, #tpu.memory_space<vmem>>, vector<16x128xf32>,
    return
  }
  func.func @transform_0(%arg0: i32) -> (i32, i32) {
    %c0_i32 = arith.constant 0 : i32
    %c0_i32_0 = arith.constant 0 : i32
    return %arg0, %c0_i32 : i32, i32
  }
  func.func @transform_1(%arg0: i32) -> (i32, i32) {
    %c0_i32 = arith.constant 0 : i32
    %c0_i32_0 = arith.constant 0 : i32
    %c0_i32_1 = arith.constant 0 : i32
    return %c0_i32, %c0_i32_0 : i32, i32
  }
  func.func @transform_2(%arg0: i32) -> (i32, i32) {
    %c0_i32 = arith.constant 0 : i32
    %c0_i32_0 = arith.constant 0 : i32
    %c0_i32_1 = arith.constant 0 : i32
    return %c0_i32, %c0_i32_0 : i32, i32
  }
  func.func @transform_3(%arg0: i32) -> (i32, i32) {
    %c0_i32 = arith.constant 0 : i32
    %c0_i32_0 = arith.constant 0 : i32
    %c0_i32_1 = arith.constant 0 : i32
    return %c0_i32, %c0_i32_0 : i32, i32
  }
  func.func @transform_4(%arg0: i32) -> (i32, i32) {
    %c0_i32 = arith.constant 0 : i32
    %c0_i32_0 = arith.constant 0 : i32
    %c0_i32_1 = arith.constant 0 : i32
    return %c0_i32, %c0_i32_0 : i32, i32
  }
  func.func @transform_5(%arg0: i32) -> (i32, i32) {
    %c0_i32 = arith.constant 0 : i32
    %c0_i32_0 = arith.constant 0 : i32
    %c0_i32_1 = arith.constant 0 : i32
    return %c0_i32, %c0_i32_0 : i32, i32
  }
  func.func @transform_6(%arg0: i32) -> (i32, i32) {
    %c0_i32 = arith.constant 0 : i32
    %c0_i32_0 = arith.constant 0 : i32
    %c0_i32_1 = arith.constant 0 : i32
    return %c0_i32, %c0_i32_0 : i32, i32
  }
  func.func @transform_7(%arg0: i32) -> (i32, i32) {
    %c0_i32 = arith.constant 0 : i32
    %c0_i32_0 = arith.constant 0 : i32
    return %arg0, %c0_i32 : i32, i32
  }
}

module attributes {stable_mosaic.version = 11 : i64} {
  func.func @attn_block_kernel(%arg0: i32, %arg1: memref<16x128xf32, #tpu.memory_space<vmem>>, %arg2: memref<1x128xf32, #tpu.memory_space<vmem>>, %arg3: memref<1x128xf32, #tpu.memory_space<vmem>>, %arg4: memref<128x384xf32, #tpu.memory_space<vmem>>, %arg5: memref<1x384xf32, #tpu.memory_space<vmem>>, %arg6: memref<128x128xf32, #tpu.memory_space<vmem>>, %arg7: memref<1x128xf32, #tpu.memory_space<vmem>>, %arg8: memref<16x128xf32, #tpu.memory_space<vmem>>) attributes {dimension_semantics = [#tpu.dimension_semantics<parallel>], iteration_bounds = array<i64: 2>, scalar_prefetch = 0 : i64, scratch_operands = 0 : i64, tpu.core_type = #tpu.core_type<tc>, window_params = [{transform_indices = @transform_0, window_bounds = array<i64: 16, 128>}, {pipeline_mode = #tpu.pipeline_mode<synchronous>, transform_indices = @transform_1, window_bounds = array<i64: 1, 128>}, {pipeline_mode = #tpu.pipeline_mode<synchronous>, transform_indices = @transform_2, window_bounds = array<i64: 1, 128>}, {pipeline_mode = #tpu.pipeline_mode<synchronous>, transform_indices = @transform_3, window_bounds = array<i64: 128, 384>}, {pipeline_mode = #tpu.pipeline_mode<synchronous>, transform_indices = @transform_4, window_bounds = array<i64: 1, 384>}, {pipeline_mode = #tpu.pipeline_mode<synchronous>, transform_indices = @transform_5, window_bounds = array<i64: 128, 128>}, {pipeline_mode = #tpu.pipeline_mode<synchronous>, transform_indices = @transform_6, window_bounds = array<i64: 1, 128>}, {transform_indices = @transform_7, window_bounds = array<i64: 16, 128>}]} {
    %c0 = arith.constant 0 : index
    %c0_0 = arith.constant 0 : index
    %0 = vector.load %arg1[%c0, %c0_0] : memref<16x128xf32, #tpu.memory_space<vmem>>, vector<16x128xf32>
    %c0_1 = arith.constant 0 : index
    %c0_2 = arith.constant 0 : index
    %1 = vector.load %arg2[%c0_1, %c0_2] : memref<1x128xf32, #tpu.memory_space<vmem>>, vector<1x128xf32>
    %c0_3 = arith.constant 0 : index
    %c0_4 = arith.constant 0 : index
    %2 = vector.load %arg3[%c0_3, %c0_4] : memref<1x128xf32, #tpu.memory_space<vmem>>, vector<1x128xf32>
    %cst = arith.constant dense<0.000000e+00> : vector<16xf32>
    %3 = vector.multi_reduction <add>, %0, %cst [1] : vector<16x128xf32> to vector<16xf32>
    %4 = vector.shape_cast %3 : vector<16xf32> to vector<16x1xf32>
    %cst_5 = arith.constant 1.280000e+02 : f32
    %5 = vector.broadcast %cst_5 : f32 to vector<16x1xf32>
    %6 = arith.divf %4, %5 : vector<16x1xf32>
    %7 = vector.broadcast %6 : vector<16x1xf32> to vector<16x128xf32>
    %8 = arith.subf %0, %7 : vector<16x128xf32>
    %9 = arith.mulf %8, %8 : vector<16x128xf32>
    %cst_6 = arith.constant dense<0.000000e+00> : vector<16xf32>
    %10 = vector.multi_reduction <add>, %9, %cst_6 [1] : vector<16x128xf32> to vector<16xf32>
    %11 = vector.shape_cast %10 : vector<16xf32> to vector<16x1xf32>
    %cst_7 = arith.constant 1.280000e+02 : f32
    %12 = vector.broadcast %cst_7 : f32 to vector<16x1xf32>
    %13 = arith.divf %11, %12 : vector<16x1xf32>
    %14 = vector.broadcast %6 : vector<16x1xf32> to vector<16x128xf32>
    %15 = arith.subf %0, %14 : vector<16x128xf32>
    %cst_8 = arith.constant 9.99999996E-13 : f32
    %16 = vector.broadcast %cst_8 : f32 to vector<16x1xf32>
    %17 = arith.addf %13, %16 : vector<16x1xf32>
    %18 = math.rsqrt %17 : vector<16x1xf32>
    %19 = vector.broadcast %18 : vector<16x1xf32> to vector<16x128xf32>
    %20 = arith.mulf %15, %19 : vector<16x128xf32>
    %21 = vector.broadcast %1 : vector<1x128xf32> to vector<16x128xf32>
    %22 = arith.mulf %20, %21 : vector<16x128xf32>
    %23 = vector.broadcast %2 : vector<1x128xf32> to vector<16x128xf32>
    %24 = arith.addf %22, %23 : vector<16x128xf32>
    %c0_9 = arith.constant 0 : index
    %c0_10 = arith.constant 0 : index
    %25 = vector.load %arg4[%c0_9, %c0_10] : memref<128x384xf32, #tpu.memory_space<vmem>>, vector<128x384xf32>
    %cst_11 = arith.constant dense<0.000000e+00> : vector<16x384xf32>
    %26 = tpu.matmul %24, %25, %cst_11 {dimension_numbers = #tpu.dot_dimension_numbers<[1], [0], [0], [1], [0, 0, 1, 1], [], []>} : vector<16x128xf32>, vector<128x384xf32>, vector<16x384xf32> -> vector<16x384xf32>
    %c0_12 = arith.constant 0 : index
    %c0_13 = arith.constant 0 : index
    %27 = vector.load %arg5[%c0_12, %c0_13] : memref<1x384xf32, #tpu.memory_space<vmem>>, vector<1x384xf32>
    %28 = vector.broadcast %27 : vector<1x384xf32> to vector<16x384xf32>
    %29 = arith.addf %26, %28 : vector<16x384xf32>
    %30 = tpu.iota {dimensions = array<i32: 0>} : vector<16x16xi32>
    %31 = tpu.iota {dimensions = array<i32: 1>} : vector<16x16xi32>
    %32 = arith.cmpi sle, %31, %30 : vector<16x16xi32>
    %33 = vector.extract_strided_slice %29 {offsets = [0, 0], sizes = [16, 32], strides = [1, 1]} : vector<16x384xf32> to vector<16x32xf32>
    %34 = vector.extract_strided_slice %29 {offsets = [0, 128], sizes = [16, 32], strides = [1, 1]} : vector<16x384xf32> to vector<16x32xf32>
    %35 = vector.extract_strided_slice %29 {offsets = [0, 256], sizes = [16, 32], strides = [1, 1]} : vector<16x384xf32> to vector<16x32xf32>
    %cst_14 = arith.constant dense<0.000000e+00> : vector<16x16xf32>
    %36 = tpu.matmul %33, %34, %cst_14 {dimension_numbers = #tpu.dot_dimension_numbers<[1], [1], [0], [0], [0, 0, 1, 0], [], []>} : vector<16x32xf32>, vector<16x32xf32>, vector<16x16xf32> -> vector<16x16xf32>
    %cst_15 = arith.constant 0.176776692 : f32
    %37 = vector.broadcast %cst_15 : f32 to vector<16x16xf32>
    %38 = arith.mulf %36, %37 : vector<16x16xf32>
    %cst_16 = arith.constant -1.000000e+30 : f32
    %39 = vector.broadcast %cst_16 : f32 to vector<16x16xf32>
    %40 = arith.select %32, %38, %39 : vector<16x16xi1>, vector<16x16xf32>
    %cst_17 = arith.constant dense<0xFF800000> : vector<16xf32>
    %41 = vector.multi_reduction <maximumf>, %40, %cst_17 [1] : vector<16x16xf32> to vector<16xf32>
    %42 = vector.shape_cast %41 : vector<16xf32> to vector<16x1xf32>
    %43 = vector.broadcast %42 : vector<16x1xf32> to vector<16x16xf32>
    %44 = arith.subf %40, %43 : vector<16x16xf32>
    %45 = math.exp %44 : vector<16x16xf32>
    %cst_18 = arith.constant dense<0.000000e+00> : vector<16xf32>
    %46 = vector.multi_reduction <add>, %45, %cst_18 [1] : vector<16x16xf32> to vector<16xf32>
    %47 = vector.shape_cast %46 : vector<16xf32> to vector<16x1xf32>
    %48 = tpu.reciprocal %47 {approx = true} : vector<16x1xf32> -> vector<16x1xf32>
    %49 = vector.broadcast %48 : vector<16x1xf32> to vector<16x16xf32>
    %50 = arith.mulf %45, %49 : vector<16x16xf32>
    %cst_19 = arith.constant dense<0.000000e+00> : vector<16x32xf32>
    %51 = tpu.matmul %50, %35, %cst_19 {dimension_numbers = #tpu.dot_dimension_numbers<[1], [0], [0], [1], [0, 0, 1, 1], [], []>} : vector<16x16xf32>, vector<16x32xf32>, vector<16x32xf32> -> vector<16x32xf32>
    %52 = vector.extract_strided_slice %29 {offsets = [0, 32], sizes = [16, 32], strides = [1, 1]} : vector<16x384xf32> to vector<16x32xf32>
    %53 = vector.extract_strided_slice %29 {offsets = [0, 160], sizes = [16, 32], strides = [1, 1]} : vector<16x384xf32> to vector<16x32xf32>
    %54 = vector.extract_strided_slice %29 {offsets = [0, 288], sizes = [16, 32], strides = [1, 1]} : vector<16x384xf32> to vector<16x32xf32>
    %cst_20 = arith.constant dense<0.000000e+00> : vector<16x16xf32>
    %55 = tpu.matmul %52, %53, %cst_20 {dimension_numbers = #tpu.dot_dimension_numbers<[1], [1], [0], [0], [0, 0, 1, 0], [], []>} : vector<16x32xf32>, vector<16x32xf32>, vector<16x16xf32> -> vector<16x16xf32>
    %cst_21 = arith.constant 0.176776692 : f32
    %56 = vector.broadcast %cst_21 : f32 to vector<16x16xf32>
    %57 = arith.mulf %55, %56 : vector<16x16xf32>
    %cst_22 = arith.constant -1.000000e+30 : f32
    %58 = vector.broadcast %cst_22 : f32 to vector<16x16xf32>
    %59 = arith.select %32, %57, %58 : vector<16x16xi1>, vector<16x16xf32>
    %cst_23 = arith.constant dense<0xFF800000> : vector<16xf32>
    %60 = vector.multi_reduction <maximumf>, %59, %cst_23 [1] : vector<16x16xf32> to vector<16xf32>
    %61 = vector.shape_cast %60 : vector<16xf32> to vector<16x1xf32>
    %62 = vector.broadcast %61 : vector<16x1xf32> to vector<16x16xf32>
    %63 = arith.subf %59, %62 : vector<16x16xf32>
    %64 = math.exp %63 : vector<16x16xf32>
    %cst_24 = arith.constant dense<0.000000e+00> : vector<16xf32>
    %65 = vector.multi_reduction <add>, %64, %cst_24 [1] : vector<16x16xf32> to vector<16xf32>
    %66 = vector.shape_cast %65 : vector<16xf32> to vector<16x1xf32>
    %67 = tpu.reciprocal %66 {approx = true} : vector<16x1xf32> -> vector<16x1xf32>
    %68 = vector.broadcast %67 : vector<16x1xf32> to vector<16x16xf32>
    %69 = arith.mulf %64, %68 : vector<16x16xf32>
    %cst_25 = arith.constant dense<0.000000e+00> : vector<16x32xf32>
    %70 = tpu.matmul %69, %54, %cst_25 {dimension_numbers = #tpu.dot_dimension_numbers<[1], [0], [0], [1], [0, 0, 1, 1], [], []>} : vector<16x16xf32>, vector<16x32xf32>, vector<16x32xf32> -> vector<16x32xf32>
    %71 = vector.extract_strided_slice %29 {offsets = [0, 64], sizes = [16, 32], strides = [1, 1]} : vector<16x384xf32> to vector<16x32xf32>
    %72 = vector.extract_strided_slice %29 {offsets = [0, 192], sizes = [16, 32], strides = [1, 1]} : vector<16x384xf32> to vector<16x32xf32>
    %73 = vector.extract_strided_slice %29 {offsets = [0, 320], sizes = [16, 32], strides = [1, 1]} : vector<16x384xf32> to vector<16x32xf32>
    %cst_26 = arith.constant dense<0.000000e+00> : vector<16x16xf32>
    %74 = tpu.matmul %71, %72, %cst_26 {dimension_numbers = #tpu.dot_dimension_numbers<[1], [1], [0], [0], [0, 0, 1, 0], [], []>} : vector<16x32xf32>, vector<16x32xf32>, vector<16x16xf32> -> vector<16x16xf32>
    %cst_27 = arith.constant 0.176776692 : f32
    %75 = vector.broadcast %cst_27 : f32 to vector<16x16xf32>
    %76 = arith.mulf %74, %75 : vector<16x16xf32>
    %cst_28 = arith.constant -1.000000e+30 : f32
    %77 = vector.broadcast %cst_28 : f32 to vector<16x16xf32>
    %78 = arith.select %32, %76, %77 : vector<16x16xi1>, vector<16x16xf32>
    %cst_29 = arith.constant dense<0xFF800000> : vector<16xf32>
    %79 = vector.multi_reduction <maximumf>, %78, %cst_29 [1] : vector<16x16xf32> to vector<16xf32>
    %80 = vector.shape_cast %79 : vector<16xf32> to vector<16x1xf32>
    %81 = vector.broadcast %80 : vector<16x1xf32> to vector<16x16xf32>
    %82 = arith.subf %78, %81 : vector<16x16xf32>
    %83 = math.exp %82 : vector<16x16xf32>
    %cst_30 = arith.constant dense<0.000000e+00> : vector<16xf32>
    %84 = vector.multi_reduction <add>, %83, %cst_30 [1] : vector<16x16xf32> to vector<16xf32>
    %85 = vector.shape_cast %84 : vector<16xf32> to vector<16x1xf32>
    %86 = tpu.reciprocal %85 {approx = true} : vector<16x1xf32> -> vector<16x1xf32>
    %87 = vector.broadcast %86 : vector<16x1xf32> to vector<16x16xf32>
    %88 = arith.mulf %83, %87 : vector<16x16xf32>
    %cst_31 = arith.constant dense<0.000000e+00> : vector<16x32xf32>
    %89 = tpu.matmul %88, %73, %cst_31 {dimension_numbers = #tpu.dot_dimension_numbers<[1], [0], [0], [1], [0, 0, 1, 1], [], []>} : vector<16x16xf32>, vector<16x32xf32>, vector<16x32xf32> -> vector<16x32xf32>
    %90 = vector.extract_strided_slice %29 {offsets = [0, 96], sizes = [16, 32], strides = [1, 1]} : vector<16x384xf32> to vector<16x32xf32>
    %91 = vector.extract_strided_slice %29 {offsets = [0, 224], sizes = [16, 32], strides = [1, 1]} : vector<16x384xf32> to vector<16x32xf32>
    %92 = vector.extract_strided_slice %29 {offsets = [0, 352], sizes = [16, 32], strides = [1, 1]} : vector<16x384xf32> to vector<16x32xf32>
    %cst_32 = arith.constant dense<0.000000e+00> : vector<16x16xf32>
    %93 = tpu.matmul %90, %91, %cst_32 {dimension_numbers = #tpu.dot_dimension_numbers<[1], [1], [0], [0], [0, 0, 1, 0], [], []>} : vector<16x32xf32>, vector<16x32xf32>, vector<16x16xf32> -> vector<16x16xf32>
    %cst_33 = arith.constant 0.176776692 : f32
    %94 = vector.broadcast %cst_33 : f32 to vector<16x16xf32>
    %95 = arith.mulf %93, %94 : vector<16x16xf32>
    %cst_34 = arith.constant -1.000000e+30 : f32
    %96 = vector.broadcast %cst_34 : f32 to vector<16x16xf32>
    %97 = arith.select %32, %95, %96 : vector<16x16xi1>, vector<16x16xf32>
    %cst_35 = arith.constant dense<0xFF800000> : vector<16xf32>
    %98 = vector.multi_reduction <maximumf>, %97, %cst_35 [1] : vector<16x16xf32> to vector<16xf32>
    %99 = vector.shape_cast %98 : vector<16xf32> to vector<16x1xf32>
    %100 = vector.broadcast %99 : vector<16x1xf32> to vector<16x16xf32>
    %101 = arith.subf %97, %100 : vector<16x16xf32>
    %102 = math.exp %101 : vector<16x16xf32>
    %cst_36 = arith.constant dense<0.000000e+00> : vector<16xf32>
    %103 = vector.multi_reduction <add>, %102, %cst_36 [1] : vector<16x16xf32> to vector<16xf32>
    %104 = vector.shape_cast %103 : vector<16xf32> to vector<16x1xf32>
    %105 = tpu.reciprocal %104 {approx = true} : vector<16x1xf32> -> vector<16x1xf32>
    %106 = vector.broadcast %105 : vector<16x1xf32> to vector<16x16xf32>
    %107 = arith.mulf %102, %106 : vector<16x16xf32>
    %cst_37 = arith.constant dense<0.000000e+00> : vector<16x32xf32>
    %108 = tpu.matmul %107, %92, %cst_37 {dimension_numbers = #tpu.dot_dimension_numbers<[1], [0], [0], [1], [0, 0, 1, 1], [], []>} : vector<16x16xf32>, vector<16x32xf32>, vector<16x32xf32> -> vector<16x32xf32>
    %109 = tpu.concatenate %51, %70, %89, %108 in 1 : vector<16x32xf32>, vector<16x32xf32>, vector<16x32xf32>, vector<16x32xf32> -> vector<16x128xf32>
    %c0_38 = arith.constant 0 : index
    %c0_39 = arith.constant 0 : index
    %110 = vector.load %arg6[%c0_38, %c0_39] : memref<128x128xf32, #tpu.memory_space<vmem>>, vector<128x128xf32>
    %cst_40 = arith.constant dense<0.000000e+00> : vector<16x128xf32>
    %111 = tpu.matmul %109, %110, %cst_40 {dimension_numbers = #tpu.dot_dimension_numbers<[1], [0], [0], [1], [0, 0, 1, 1], [], []>} : vector<16x128xf32>, vector<128x128xf32>, vector<16x128xf32> -> vector<16x128xf32>
    %c0_41 = arith.constant 0 : index
    %c0_42 = arith.constant 0 : index
    %112 = vector.load %arg7[%c0_41, %c0_42] : memref<1x128xf32, #tpu.memory_space<vmem>>, vector<1x128xf32>
    %113 = vector.broadcast %112 : vector<1x128xf32> to vector<16x128xf32>
    %114 = arith.addf %111, %113 : vector<16x128xf32>
    %115 = arith.addf %114, %0 : vector<16x128xf32>
    %c0_43 = arith.constant 0 : index
    %c0_44 = arith.constant 0 : index
    %116 = vector.load %arg8[%c0_43, %c0_44] : memref<16x128xf32, #tpu.memory_space<vmem>>, vector<16x128xf32>
    tpu.vector_store %arg8[%c0_43, %c0_44], %115 {strides = array<i32>} : memref<16x128xf32, #tpu.memory_space<vmem>>, vector<16x128xf32>,
    return
  }
  func.func @transform_0(%arg0: i32) -> (i32, i32) {
    %c0_i32 = arith.constant 0 : i32
    %c0_i32_0 = arith.constant 0 : i32
    return %arg0, %c0_i32 : i32, i32
  }
  func.func @transform_1(%arg0: i32) -> (i32, i32) {
    %c0_i32 = arith.constant 0 : i32
    %c0_i32_0 = arith.constant 0 : i32
    %c0_i32_1 = arith.constant 0 : i32
    return %c0_i32, %c0_i32_0 : i32, i32
  }
  func.func @transform_2(%arg0: i32) -> (i32, i32) {
    %c0_i32 = arith.constant 0 : i32
    %c0_i32_0 = arith.constant 0 : i32
    %c0_i32_1 = arith.constant 0 : i32
    return %c0_i32, %c0_i32_0 : i32, i32
  }
  func.func @transform_3(%arg0: i32) -> (i32, i32) {
    %c0_i32 = arith.constant 0 : i32
    %c0_i32_0 = arith.constant 0 : i32
    %c0_i32_1 = arith.constant 0 : i32
    return %c0_i32, %c0_i32_0 : i32, i32
  }
  func.func @transform_4(%arg0: i32) -> (i32, i32) {
    %c0_i32 = arith.constant 0 : i32
    %c0_i32_0 = arith.constant 0 : i32
    %c0_i32_1 = arith.constant 0 : i32
    return %c0_i32, %c0_i32_0 : i32, i32
  }
  func.func @transform_5(%arg0: i32) -> (i32, i32) {
    %c0_i32 = arith.constant 0 : i32
    %c0_i32_0 = arith.constant 0 : i32
    %c0_i32_1 = arith.constant 0 : i32
    return %c0_i32, %c0_i32_0 : i32, i32
  }
  func.func @transform_6(%arg0: i32) -> (i32, i32) {
    %c0_i32 = arith.constant 0 : i32
    %c0_i32_0 = arith.constant 0 : i32
    %c0_i32_1 = arith.constant 0 : i32
    return %c0_i32, %c0_i32_0 : i32, i32
  }
  func.func @transform_7(%arg0: i32) -> (i32, i32) {
    %c0_i32 = arith.constant 0 : i32
    %c0_i32_0 = arith.constant 0 : i32
    return %arg0, %c0_i32 : i32, i32
  }
}

module attributes {stable_mosaic.version = 11 : i64} {
  func.func @mlm_head_kernel(%arg0: i32, %arg1: i32, %arg2: memref<16x128xf32, #tpu.memory_space<vmem>>, %arg3: memref<1x128xf32, #tpu.memory_space<vmem>>, %arg4: memref<1x128xf32, #tpu.memory_space<vmem>>, %arg5: memref<128x128xf32, #tpu.memory_space<vmem>>, %arg6: memref<1x128xf32, #tpu.memory_space<vmem>>, %arg7: memref<16x128xf32, #tpu.memory_space<vmem>>, %arg8: memref<16x128xf32, #tpu.memory_space<vmem>>, %arg9: memref<16x128xf32, #tpu.memory_space<vmem>>) attributes {dimension_semantics = [#tpu.dimension_semantics<parallel>, #tpu.dimension_semantics<arbitrary>], iteration_bounds = array<i64: 2, 1>, scalar_prefetch = 0 : i64, scratch_operands = 1 : i64, tpu.core_type = #tpu.core_type<tc>, window_params = [{transform_indices = @transform_0, window_bounds = array<i64: 16, 128>}, {pipeline_mode = #tpu.pipeline_mode<synchronous>, transform_indices = @transform_1, window_bounds = array<i64: 1, 128>}, {pipeline_mode = #tpu.pipeline_mode<synchronous>, transform_indices = @transform_2, window_bounds = array<i64: 1, 128>}, {transform_indices = @transform_3, window_bounds = array<i64: 128, 128>}, {transform_indices = @transform_4, window_bounds = array<i64: 1, 128>}, {transform_indices = @transform_5, window_bounds = array<i64: 16, 128>}, {transform_indices = @transform_6, window_bounds = array<i64: 16, 128>}]} {
    %c0_i32 = arith.constant 0 : i32
    %0 = arith.cmpi eq, %arg1, %c0_i32 : i32
    %1 = arith.extui %0 : i1 to i32
    %c0_i32_0 = arith.constant 0 : i32
    %2 = arith.cmpi ne, %1, %c0_i32_0 : i32
    scf.if %2 {
      %c0_8 = arith.constant 0 : index
      %c0_9 = arith.constant 0 : index
      %10 = vector.load %arg2[%c0_8, %c0_9] : memref<16x128xf32, #tpu.memory_space<vmem>>, vector<16x128xf32>
      %c0_10 = arith.constant 0 : index
      %c0_11 = arith.constant 0 : index
      %11 = vector.load %arg3[%c0_10, %c0_11] : memref<1x128xf32, #tpu.memory_space<vmem>>, vector<1x128xf32>
      %c0_12 = arith.constant 0 : index
      %c0_13 = arith.constant 0 : index
      %12 = vector.load %arg4[%c0_12, %c0_13] : memref<1x128xf32, #tpu.memory_space<vmem>>, vector<1x128xf32>
      %cst_14 = arith.constant dense<0.000000e+00> : vector<16xf32>
      %13 = vector.multi_reduction <add>, %10, %cst_14 [1] : vector<16x128xf32> to vector<16xf32>
      %14 = vector.shape_cast %13 : vector<16xf32> to vector<16x1xf32>
      %cst_15 = arith.constant 1.280000e+02 : f32
      %15 = vector.broadcast %cst_15 : f32 to vector<16x1xf32>
      %16 = arith.divf %14, %15 : vector<16x1xf32>
      %17 = vector.broadcast %16 : vector<16x1xf32> to vector<16x128xf32>
      %18 = arith.subf %10, %17 : vector<16x128xf32>
      %19 = arith.mulf %18, %18 : vector<16x128xf32>
      %cst_16 = arith.constant dense<0.000000e+00> : vector<16xf32>
      %20 = vector.multi_reduction <add>, %19, %cst_16 [1] : vector<16x128xf32> to vector<16xf32>
      %21 = vector.shape_cast %20 : vector<16xf32> to vector<16x1xf32>
      %cst_17 = arith.constant 1.280000e+02 : f32
      %22 = vector.broadcast %cst_17 : f32 to vector<16x1xf32>
      %23 = arith.divf %21, %22 : vector<16x1xf32>
      %24 = vector.broadcast %16 : vector<16x1xf32> to vector<16x128xf32>
      %25 = arith.subf %10, %24 : vector<16x128xf32>
      %cst_18 = arith.constant 9.99999996E-13 : f32
      %26 = vector.broadcast %cst_18 : f32 to vector<16x1xf32>
      %27 = arith.addf %23, %26 : vector<16x1xf32>
      %28 = math.rsqrt %27 : vector<16x1xf32>
      %29 = vector.broadcast %28 : vector<16x1xf32> to vector<16x128xf32>
      %30 = arith.mulf %25, %29 : vector<16x128xf32>
      %31 = vector.broadcast %11 : vector<1x128xf32> to vector<16x128xf32>
      %32 = arith.mulf %30, %31 : vector<16x128xf32>
      %33 = vector.broadcast %12 : vector<1x128xf32> to vector<16x128xf32>
      %34 = arith.addf %32, %33 : vector<16x128xf32>
      %c0_19 = arith.constant 0 : index
      %c0_20 = arith.constant 0 : index
      %35 = vector.load %arg9[%c0_19, %c0_20] : memref<16x128xf32, #tpu.memory_space<vmem>>, vector<16x128xf32>
      tpu.vector_store %arg9[%c0_19, %c0_20], %34 {strides = array<i32>} : memref<16x128xf32, #tpu.memory_space<vmem>>, vector<16x128xf32>,
      %c0_21 = arith.constant 0 : index
      %c0_22 = arith.constant 0 : index
      %36 = vector.load %arg7[%c0_21, %c0_22] : memref<16x128xf32, #tpu.memory_space<vmem>>, vector<16x128xf32>
      tpu.vector_store %arg7[%c0_21, %c0_22], %34 {strides = array<i32>} : memref<16x128xf32, #tpu.memory_space<vmem>>, vector<16x128xf32>,
    } else {
    }
    %c0 = arith.constant 0 : index
    %c0_1 = arith.constant 0 : index
    %3 = vector.load %arg9[%c0, %c0_1] : memref<16x128xf32, #tpu.memory_space<vmem>>, vector<16x128xf32>
    %c0_2 = arith.constant 0 : index
    %c0_3 = arith.constant 0 : index
    %4 = vector.load %arg5[%c0_2, %c0_3] : memref<128x128xf32, #tpu.memory_space<vmem>>, vector<128x128xf32>
    %cst = arith.constant dense<0.000000e+00> : vector<16x128xf32>
    %5 = tpu.matmul %3, %4, %cst {dimension_numbers = #tpu.dot_dimension_numbers<[1], [0], [0], [1], [0, 0, 1, 1], [], []>} : vector<16x128xf32>, vector<128x128xf32>, vector<16x128xf32> -> vector<16x128xf32>
    %c0_4 = arith.constant 0 : index
    %c0_5 = arith.constant 0 : index
    %6 = vector.load %arg6[%c0_4, %c0_5] : memref<1x128xf32, #tpu.memory_space<vmem>>, vector<1x128xf32>
    %7 = vector.broadcast %6 : vector<1x128xf32> to vector<16x128xf32>
    %8 = arith.addf %5, %7 : vector<16x128xf32>
    %c0_6 = arith.constant 0 : index
    %c0_7 = arith.constant 0 : index
    %9 = vector.load %arg8[%c0_6, %c0_7] : memref<16x128xf32, #tpu.memory_space<vmem>>, vector<16x128xf32>
    tpu.vector_store %arg8[%c0_6, %c0_7], %8 {strides = array<i32>} : memref<16x128xf32, #tpu.memory_space<vmem>>, vector<16x128xf32>,
    return
  }
  func.func @transform_0(%arg0: i32, %arg1: i32) -> (i32, i32) {
    %c0_i32 = arith.constant 0 : i32
    %c0_i32_0 = arith.constant 0 : i32
    return %arg0, %c0_i32 : i32, i32
  }
  func.func @transform_1(%arg0: i32, %arg1: i32) -> (i32, i32) {
    %c0_i32 = arith.constant 0 : i32
    %c0_i32_0 = arith.constant 0 : i32
    %c0_i32_1 = arith.constant 0 : i32
    return %c0_i32, %c0_i32_0 : i32, i32
  }
  func.func @transform_2(%arg0: i32, %arg1: i32) -> (i32, i32) {
    %c0_i32 = arith.constant 0 : i32
    %c0_i32_0 = arith.constant 0 : i32
    %c0_i32_1 = arith.constant 0 : i32
    return %c0_i32, %c0_i32_0 : i32, i32
  }
  func.func @transform_3(%arg0: i32, %arg1: i32) -> (i32, i32) {
    %c0_i32 = arith.constant 0 : i32
    %c0_i32_0 = arith.constant 0 : i32
    return %c0_i32, %arg1 : i32, i32
  }
  func.func @transform_4(%arg0: i32, %arg1: i32) -> (i32, i32) {
    %c0_i32 = arith.constant 0 : i32
    %c0_i32_0 = arith.constant 0 : i32
    return %c0_i32, %arg1 : i32, i32
  }
  func.func @transform_5(%arg0: i32, %arg1: i32) -> (i32, i32) {
    %c0_i32 = arith.constant 0 : i32
    %c0_i32_0 = arith.constant 0 : i32
    return %arg0, %c0_i32 : i32, i32
  }
  func.func @transform_6(%arg0: i32, %arg1: i32) -> (i32, i32) {
    %c0_i32 = arith.constant 0 : i32
    return %arg0, %arg1 : i32, i32
  }
}

</mosaic_0001>

<llo_original>
// kernel: transformer_forward.8
$region0: #{transformer_forward.8}
  #allocation0 [shape = 'u32[]', space=smem, size = 0x4, offset = 0x4, fixed_abs, tag = 'smem constant byte address 0x4 - core index']
  #allocation1 [shape = 'u32[72,128]{1,0:T(1,128)}', space=vmem, size = 0x9000, scoped, tag = 'internal scratch']
  %s0 = inlined_call_operand.vmem [shape: f32[32,128], index: 0, kind: input, shape index: {}]
  %s1 = inlined_call_operand.vmem [shape: f32[1,128], index: 1, kind: input, shape index: {}]
  %s2 = inlined_call_operand.vmem [shape: f32[1,128], index: 2, kind: input, shape index: {}]
  %s3 = inlined_call_operand.hbm [shape: f32[128,256], index: 3, kind: input, shape index: {}]
  %s4 = inlined_call_operand.vmem [shape: f32[1,256], index: 4, kind: input, shape index: {}]
  %s5 = inlined_call_operand.hbm [shape: f32[256,128], index: 5, kind: input, shape index: {}]
  %s6 = inlined_call_operand.vmem [shape: f32[1,128], index: 6, kind: input, shape index: {}]
  %s7 = inlined_call_operand.vmem [shape: f32[32,128], index: 7, kind: output, shape index: {}]
  %s8 = sld [smem:[#allocation0]]
  $region69: #{transformer_forward.8} parent=0
    _
  %s10 = ssub.s32 1, %s8
  %s11 = scalar_select 0, %s10, %s8
  $region1: #{transformer_forward.8} parent=0
    #allocation2 [shape = 'u8[131072]{0}', space=vmem, size = 0x20000, scoped, tag = 'input window, operand 3, single buffered']
    #allocation3 [shape = 's32[2]{0}', space=sflag, size = 0x8, scoped, tag = 'scoped memory for transformer_forward.8']
    #allocation4 [shape = 'u8[131072]{0}', space=vmem, size = 0x20000, scoped, tag = 'input window, operand 5, single buffered']
    #allocation5 [shape = 's32[1]{0}', space=sflag, size = 0x4, scoped, tag = 'scoped memory for transformer_forward.8']
    %12 = vsyncpa [#allocation3], 0
    %13 = vsyncpa [#allocation5], 0
    loop: start=0, step=1, limit=4
    $region2: #{transformer_forward.8} parent=1 // loop_pre_header
      _
    $region3: #{transformer_forward.8} parent=1 // loop_header
      %s15 = sphi 0, %s19
      %p16 = scmp.ge.s32.totalorder %s15, 4
      %s25 = sphi 0, %s27
      %s28 = sphi 0, %s25
      %s29 = sphi 0, %s28
      %s45 = sphi 0, %s29
      %s49 = sphi 0, %s49
      %s51 = sphi 0, %s49
      %s52 = sphi 0, %s51
      %s66 = sphi 0, %s52
      %s70 = sphi 0, %s70
      %s72 = sphi 0, %s70
      %s73 = sphi 0, %s72
      %s87 = sphi 0, %s73
      %s91 = sphi 0, %s91
      %s93 = sphi 0, %s91
      %s94 = sphi 0, %s93
      %s108 = sphi 0, %s94
      %s112 = sphi 0, %s112
      %s114 = sphi 0, %s112
      %s115 = sphi 0, %s114
      %s129 = sphi 0, %s115
      %s133 = sphi 0, %s133
      %s135 = sphi 0, %s133
      %s136 = sphi 0, %s135
      %s150 = sphi 0, %s136
      %s154 = sphi 0, %s154
      %s156 = sphi 0, %s154
      %s157 = sphi 0, %s156
      %s171 = sphi 0, %s157
      %s177 = sphi 0, %s179
      %s180 = sphi 0, %s177
      %s181 = sphi 0, %s180
      %s197 = sphi 0, %s181
    $region4: #{transformer_forward.8} parent=1 // loop_header_branch
      %18 = sbr.rel (%p16) target = $region8
    $region5: #{transformer_forward.8} parent=1 // loop_body
      %s20 = ssub.s32 %s15, 1
      %s21 = ssub.s32 %s15, 2
      %s22 = sadd.s32 %s15, 1
      %s23 = ssub.s32 %s15, %s22
      %p24 = scmp.eq.s32.totalorder %s23, 0
      %s26 = sadd.s32 %s25, 1
      %s27 = scalar_select %p24, %s25, %s26
      %p30 = pneg %p24
      %p31 = scmp.eq.s32.totalorder %s15, 1
      %p32 = por %p30, %p31
      %p33 = scmp.ne.s32.totalorder %s25, %s28
      %p34 = scmp.eq.s32.totalorder %s15, 0
      %p35 = por %p33, %p34
      %p36 = scmp.ne.s32.totalorder %s25, %s28
      %p37 = scmp.eq.s32.totalorder %s20, 1
      %p38 = por %p36, %p37
      %p39 = scmp.ne.s32.totalorder %s28, %s29
      %p40 = scmp.eq.s32.totalorder %s20, 0
      %p41 = por %p39, %p40
      %p42 = scmp.ne.s32.totalorder %s28, %s29
      %p43 = scmp.eq.s32.totalorder %s21, 1
      %p44 = por %p42, %p43
      %p46 = scmp.ne.s32.totalorder %s29, %s45
      %p47 = scmp.eq.s32.totalorder %s21, 0
      %p48 = por %p46, %p47
      %s50 = sadd.s32 %s49, 1
      %p53 = scmp.eq.s32.totalorder %s15, 1
      %p54 = scmp.ne.s32.totalorder %s49, %s51
      %p55 = scmp.eq.s32.totalorder %s15, 0
      %p56 = por %p54, %p55
      %p57 = scmp.ne.s32.totalorder %s49, %s51
      %p58 = scmp.eq.s32.totalorder %s20, 1
      %p59 = por %p57, %p58
      %p60 = scmp.ne.s32.totalorder %s51, %s52
      %p61 = scmp.eq.s32.totalorder %s20, 0
      %p62 = por %p60, %p61
      %p63 = scmp.ne.s32.totalorder %s51, %s52
      %p64 = scmp.eq.s32.totalorder %s21, 1
      %p65 = por %p63, %p64
      %p67 = scmp.ne.s32.totalorder %s52, %s66
      %p68 = scmp.eq.s32.totalorder %s21, 0
      %p69 = por %p67, %p68
      %s71 = sadd.s32 %s70, 1
      %p74 = scmp.eq.s32.totalorder %s15, 1
      %p75 = scmp.ne.s32.totalorder %s70, %s72
      %p76 = scmp.eq.s32.totalorder %s15, 0
      %p77 = por %p75, %p76
      %p78 = scmp.ne.s32.totalorder %s70, %s72
      %p79 = scmp.eq.s32.totalorder %s20, 1
      %p80 = por %p78, %p79
      %p81 = scmp.ne.s32.totalorder %s72, %s73
      %p82 = scmp.eq.s32.totalorder %s20, 0
      %p83 = por %p81, %p82
      %p84 = scmp.ne.s32.totalorder %s72, %s73
      %p85 = scmp.eq.s32.totalorder %s21, 1
      %p86 = por %p84, %p85
      %p88 = scmp.ne.s32.totalorder %s73, %s87
      %p89 = scmp.eq.s32.totalorder %s21, 0
      %p90 = por %p88, %p89
      %s92 = sadd.s32 %s91, 1
      %p95 = scmp.eq.s32.totalorder %s15, 1
      %p96 = scmp.ne.s32.totalorder %s91, %s93
      %p97 = scmp.eq.s32.totalorder %s15, 0
      %p98 = por %p96, %p97
      %p99 = scmp.ne.s32.totalorder %s91, %s93
      %p100 = scmp.eq.s32.totalorder %s20, 1
      %p101 = por %p99, %p100
      %p102 = scmp.ne.s32.totalorder %s93, %s94
      %p103 = scmp.eq.s32.totalorder %s20, 0
      %p104 = por %p102, %p103
      %p105 = scmp.ne.s32.totalorder %s93, %s94
      %p106 = scmp.eq.s32.totalorder %s21, 1
      %p107 = por %p105, %p106
      %p109 = scmp.ne.s32.totalorder %s94, %s108
      %p110 = scmp.eq.s32.totalorder %s21, 0
      %p111 = por %p109, %p110
      %s113 = sadd.s32 %s112, 1
      %p116 = scmp.eq.s32.totalorder %s15, 1
      %p117 = scmp.ne.s32.totalorder %s112, %s114
      %p118 = scmp.eq.s32.totalorder %s15, 0
      %p119 = por %p117, %p118
      %p120 = scmp.ne.s32.totalorder %s112, %s114
      %p121 = scmp.eq.s32.totalorder %s20, 1
      %p122 = por %p120, %p121
      %p123 = scmp.ne.s32.totalorder %s114, %s115
      %p124 = scmp.eq.s32.totalorder %s20, 0
      %p125 = por %p123, %p124
      %p126 = scmp.ne.s32.totalorder %s114, %s115
      %p127 = scmp.eq.s32.totalorder %s21, 1
      %p128 = por %p126, %p127
      %p130 = scmp.ne.s32.totalorder %s115, %s129
      %p131 = scmp.eq.s32.totalorder %s21, 0
      %p132 = por %p130, %p131
      %s134 = sadd.s32 %s133, 1
      %p137 = scmp.eq.s32.totalorder %s15, 1
      %p138 = scmp.ne.s32.totalorder %s133, %s135
      %p139 = scmp.eq.s32.totalorder %s15, 0
      %p140 = por %p138, %p139
      %p141 = scmp.ne.s32.totalorder %s133, %s135
      %p142 = scmp.eq.s32.totalorder %s20, 1
      %p143 = por %p141, %p142
      %p144 = scmp.ne.s32.totalorder %s135, %s136
      %p145 = scmp.eq.s32.totalorder %s20, 0
      %p146 = por %p144, %p145
      %p147 = scmp.ne.s32.totalorder %s135, %s136
      %p148 = scmp.eq.s32.totalorder %s21, 1
      %p149 = por %p147, %p148
      %p151 = scmp.ne.s32.totalorder %s136, %s150
      %p152 = scmp.eq.s32.totalorder %s21, 0
      %p153 = por %p151, %p152
      %s155 = sadd.s32 %s154, 1
      %p158 = scmp.eq.s32.totalorder %s15, 1
      %p159 = scmp.ne.s32.totalorder %s154, %s156
      %p160 = scmp.eq.s32.totalorder %s15, 0
      %p161 = por %p159, %p160
      %p162 = scmp.ne.s32.totalorder %s154, %s156
      %p163 = scmp.eq.s32.totalorder %s20, 1
      %p164 = por %p162, %p163
      %p165 = scmp.ne.s32.totalorder %s156, %s157
      %p166 = scmp.eq.s32.totalorder %s20, 0
      %p167 = por %p165, %p166
      %p168 = scmp.ne.s32.totalorder %s156, %s157
      %p169 = scmp.eq.s32.totalorder %s21, 1
      %p170 = por %p168, %p169
      %p172 = scmp.ne.s32.totalorder %s157, %s171
      %p173 = scmp.eq.s32.totalorder %s21, 0
      %p174 = por %p172, %p173
      %s175 = ssub.s32 %s15, %s22
      %p176 = scmp.eq.s32.totalorder %s175, 0
      %s178 = sadd.s32 %s177, 1
      %s179 = scalar_select %p176, %s177, %s178
      %p182 = pneg %p176
      %p183 = scmp.eq.s32.totalorder %s15, 1
      %p184 = por %p182, %p183
      %p185 = scmp.ne.s32.totalorder %s177, %s180
      %p186 = scmp.eq.s32.totalorder %s15, 0
      %p187 = por %p185, %p186
      %p188 = scmp.ne.s32.totalorder %s177, %s180
      %p189 = scmp.eq.s32.totalorder %s20, 1
      %p190 = por %p188, %p189
      %p191 = scmp.ne.s32.totalorder %s180, %s181
      %p192 = scmp.eq.s32.totalorder %s20, 0
      %p193 = por %p191, %p192
      %p194 = scmp.ne.s32.totalorder %s180, %s181
      %p195 = scmp.eq.s32.totalorder %s21, 1
      %p196 = por %p194, %p195
      %p198 = scmp.ne.s32.totalorder %s181, %s197
      %p199 = scmp.eq.s32.totalorder %s21, 0
      %p200 = por %p198, %p199
      %p201 = scmp.le.s32.totalorder 1, %s15
      %p202 = scmp.lt.s32.totalorder %s15, 3
      %p203 = pnand %p201, %p202
      %p204 = pneg %p203
      // Predicated region
      $region9: #{transformer_forward.8} parent=5 // pred_check
        _
      $region10: #{transformer_forward.8} parent=5 // pred_check_branch
        %206 = sbr.rel (%p203) target = $region12
      $region11: #{transformer_forward.8} parent=5 // pred_region
        %s207 = ssub.s32 %s15, 1
        // Predicated region
        $region13: #{transformer_forward.8} parent=11 // pred_check
          %p208 = pneg %p62
        $region14: #{transformer_forward.8} parent=11 // pred_check_branch
          %210 = sbr.rel (%p208) target = $region16
        $region15: #{transformer_forward.8} parent=11 // pred_region
          _
        $region16: #{transformer_forward.8} parent=11 // pred_fallthru
          _
        // Predicated region
        $region17: #{transformer_forward.8} parent=11 // pred_check
          %p211 = pneg %p83
        $region18: #{transformer_forward.8} parent=11 // pred_check_branch
          %213 = sbr.rel (%p211) target = $region20
        $region19: #{transformer_forward.8} parent=11 // pred_region
          _
        $region20: #{transformer_forward.8} parent=11 // pred_fallthru
          _
        // Predicated region
        $region21: #{transformer_forward.8} parent=11 // pred_check
          %p214 = pneg %p104
        $region22: #{transformer_forward.8} parent=11 // pred_check_branch
          %216 = sbr.rel (%p214) target = $region24
        $region23: #{transformer_forward.8} parent=11 // pred_region
          %218 = vsyncadd [#allocation3], 0
          %s219 = sshll.u32 %s3, 4
          %s220 = int_to_ptr.hbm [resolvable:$true] %s219
          %s221 = sshll.u32 [#allocation2], 4
          %s222 = int_to_ptr.vmem [resolvable:$true] %s221
          %227 = dma.hbm_to_vmem [thread:$0]  %s220, 4096, %s222, [#allocation3], 256, 256, 16
        $region24: #{transformer_forward.8} parent=11 // pred_fallthru
          _
        // Predicated region
        $region25: #{transformer_forward.8} parent=11 // pred_check
          %p228 = pneg %p125
        $region26: #{transformer_forward.8} parent=11 // pred_check_branch
          %230 = sbr.rel (%p228) target = $region28
        $region27: #{transformer_forward.8} parent=11 // pred_region
          _
        $region28: #{transformer_forward.8} parent=11 // pred_fallthru
          _
        // Predicated region
        $region29: #{transformer_forward.8} parent=11 // pred_check
          %p231 = pneg %p146
        $region30: #{transformer_forward.8} parent=11 // pred_check_branch
          %233 = sbr.rel (%p231) target = $region32
        $region31: #{transformer_forward.8} parent=11 // pred_region
          %235 = vsyncadd [#allocation5], 0
          %s236 = sshll.u32 %s5, 4
          %s237 = int_to_ptr.hbm [resolvable:$true] %s236
          %s238 = sshll.u32 [#allocation4], 4
          %s239 = int_to_ptr.vmem [resolvable:$true] %s238
          %244 = dma.hbm_to_vmem [thread:$0]  %s237, 4096, %s239, [#allocation5], 128, 128, 8
        $region32: #{transformer_forward.8} parent=11 // pred_fallthru
          _
        // Predicated region
        $region33: #{transformer_forward.8} parent=11 // pred_check
          %p245 = pneg %p167
        $region34: #{transformer_forward.8} parent=11 // pred_check_branch
          %247 = sbr.rel (%p245) target = $region36
        $region35: #{transformer_forward.8} parent=11 // pred_region
          _
        $region36: #{transformer_forward.8} parent=11 // pred_fallthru
          _
      $region12: #{transformer_forward.8} parent=5 // pred_fallthru
        _
      %p248 = scmp.lt.s32.totalorder %s15, 2
      // Predicated region
      $region37: #{transformer_forward.8} parent=5 // pred_check
        %p249 = pneg %p248
      $region38: #{transformer_forward.8} parent=5 // pred_check_branch
        %251 = sbr.rel (%p249) target = $region40
      $region39: #{transformer_forward.8} parent=5 // pred_region
        // Predicated region
        $region41: #{transformer_forward.8} parent=39 // pred_check
          %p252 = pneg %p35
        $region42: #{transformer_forward.8} parent=39 // pred_check_branch
          %254 = sbr.rel (%p252) target = $region44
        $region43: #{transformer_forward.8} parent=39 // pred_region
          %s255 = smul.u32 2, %s15
          %p256 = scmp.lt.s32.totalorder %s255, 3
          %s257 = scalar_select %p256, %s255, 3
          %s258 = smul.addr %s257, 8
          %s259 = scalar_lea.vmem %s0, %s258
          %s260 = smul.u32 2, %s15
        $region44: #{transformer_forward.8} parent=39 // pred_fallthru
          _
      $region40: #{transformer_forward.8} parent=5 // pred_fallthru
        _
      %p261 = scmp.le.s32.totalorder 1, %s15
      %p262 = scmp.lt.s32.totalorder %s15, 3
      %p263 = pnand %p261, %p262
      %p264 = pneg %p263
      // Predicated region
      $region45: #{transformer_forward.8} parent=5 // pred_check
        _
      $region46: #{transformer_forward.8} parent=5 // pred_check_branch
        %266 = sbr.rel (%p263) target = $region48
      $region47: #{transformer_forward.8} parent=5 // pred_region
        %s267 = ssub.s32 %s15, 1
        // Predicated region
        $region49: #{transformer_forward.8} parent=47 // pred_check
          %p268 = pneg %p104
        $region50: #{transformer_forward.8} parent=47 // pred_check_branch
          %270 = sbr.rel (%p268) target = $region52
        $region51: #{transformer_forward.8} parent=47 // pred_region
          %272 = dma.done [#allocation3], 4096
        $region52: #{transformer_forward.8} parent=47 // pred_fallthru
          _
        // Predicated region
        $region53: #{transformer_forward.8} parent=47 // pred_check
          %p273 = pneg %p146
        $region54: #{transformer_forward.8} parent=47 // pred_check_branch
          %275 = sbr.rel (%p273) target = $region56
        $region55: #{transformer_forward.8} parent=47 // pred_region
          %277 = dma.done [#allocation5], 4096
        $region56: #{transformer_forward.8} parent=47 // pred_fallthru
          _
        %s278 = smul.u32 2, %s20
        %p279 = scmp.lt.s32.totalorder %s278, 3
        %s280 = scalar_select %p279, %s278, 3
        %s281 = smul.addr %s280, 8
        %s282 = scalar_lea.vmem %s0, %s281
        %p283 = pneg %p41
        %p284 = pneg %p38
        %p285 = pneg %p62
        %p286 = pneg %p59
        %p287 = pneg %p83
        %p288 = pneg %p80
        %p289 = pneg %p104
        %p290 = pneg %p101
        %p291 = pneg %p125
        %p292 = pneg %p122
        %p293 = pneg %p146
        %p294 = pneg %p143
        %p295 = pneg %p167
        %p296 = pneg %p164
        %p297 = pneg %p193
        %p298 = pneg %p190
        %s299 = smul.u32 2, %s20
        %p300 = scmp.lt.s32.totalorder %s299, 3
        %s301 = scalar_select %p300, %s299, 3
        %s302 = smul.addr %s301, 8
        %s303 = scalar_lea.vmem %s7, %s302
        %s304 = smul.u32 2, %s20
        %p305 = scmp.lt.s32.totalorder %s304, 3
        %s306 = scalar_select %p305, %s304, 3
        %s307 = smul.addr %s306, 8
        %s308 = scalar_lea.vmem %s0, %s307
        %s309 = smul.u32 2, %s20
        %s310 = smul.u32 2, %s20
        %p311 = scmp.lt.s32.totalorder %s310, 3
        %s312 = scalar_select %p311, %s310, 3
        %s313 = smul.addr %s312, 8
        %s314 = scalar_lea.vmem %s7, %s313
        %s315 = smul.u32 2, %s20
        %v316 = vld [vmem:[%s308] sm:$0xff]
        %v317 = vld [vmem:[%s308 + $0x8] sm:$0xff]
        %v318 = vld [vmem:[%s1] sm:$0x1]
        %v319 = vld [vmem:[%s2] sm:$0x1]
        %320 = vadd.xlane.f32.xlu0 %v316
        %v321 = vpop.xlane.xlu0 %320
        %322 = vadd.xlane.f32.xlu0 %v317
        %v323 = vpop.xlane.xlu0 %322
        %v324 = vrcp.pop 128.0
        %v325 = vmul.f32 128.0, %v324
        %v326 = vsub.f32 1.0, %v325
        %v327 = vmul.f32 %v324, %v326
        %v328 = vadd.f32 %v324, %v327
        %vm329 = vweird.f32 %v324
        %v330 = vsel %vm329, %v324, %v328
        %v331 = vmul.f32 %v321, %v330
        %v332 = vmul.f32 %v323, %v330
        %v333 = vsub.f32 %v316, %v331
        %v334 = vsub.f32 %v317, %v332
        %v335 = vmul.f32 %v333, %v333
        %v336 = vmul.f32 %v334, %v334
        %337 = vadd.xlane.f32.xlu0 %v335
        %v338 = vpop.xlane.xlu0 %337
        %339 = vadd.xlane.f32.xlu0 %v336
        %v340 = vpop.xlane.xlu0 %339
        %v341 = vmul.f32 %v338, %v330
        %v342 = vmul.f32 %v340, %v330
        %v343 = vadd.f32 %v341, 1e-12
        %v344 = vadd.f32 %v342, 1e-12
        %v345 = vrsqrt.pop %v343
        %v346 = vmul.f32 %v345, %v343
        %v347 = vmul.f32 %v346, %v345
        %v348 = vmul.f32 0.5, %v347
        %v349 = vsub.f32 1.5, %v348
        %v350 = vmul.f32 %v345, %v349
        %vm351 = vweird.f32 %v343
        %vm352 = vweird.f32 %v345
        %vm353 = vmor %vm351, %vm352
        %v354 = vsel %vm353, %v345, %v350
        %v355 = vrsqrt.pop %v344
        %v356 = vmul.f32 %v355, %v344
        %v357 = vmul.f32 %v356, %v355
        %v358 = vmul.f32 0.5, %v357
        %v359 = vsub.f32 1.5, %v358
        %v360 = vmul.f32 %v355, %v359
        %vm361 = vweird.f32 %v344
        %vm362 = vweird.f32 %v355
        %vm363 = vmor %vm361, %vm362
        %v364 = vsel %vm363, %v355, %v360
        %v365 = vmul.f32 %v333, %v354
        %v366 = vmul.f32 %v334, %v364
        %v368 = vperm.slane %v318, 0
        %v370 = vmul.f32 %v365, %v368
        %v371 = vmul.f32 %v366, %v368
        %v373 = vperm.slane %v319, 0
        %v375 = vadd.f32 %v370, %v373
        %v376 = vadd.f32 %v371, %v373
        %v377 = vld [vmem:[#allocation2] sm:$0xff]
        %v378 = vld [vmem:[#allocation2 + $0x8] sm:$0xff]
        %v379 = vld [vmem:[#allocation2 + $0x10] sm:$0xff]
        %v380 = vld [vmem:[#allocation2 + $0x18] sm:$0xff]
        %v381 = vld [vmem:[#allocation2 + $0x20] sm:$0xff]
        %v382 = vld [vmem:[#allocation2 + $0x28] sm:$0xff]
        %v383 = vld [vmem:[#allocation2 + $0x30] sm:$0xff]
        %v384 = vld [vmem:[#allocation2 + $0x38] sm:$0xff]
        %v385 = vld [vmem:[#allocation2 + $0x40] sm:$0xff]
        %v386 = vld [vmem:[#allocation2 + $0x48] sm:$0xff]
        %v387 = vld [vmem:[#allocation2 + $0x50] sm:$0xff]
        %v388 = vld [vmem:[#allocation2 + $0x58] sm:$0xff]
        %v389 = vld [vmem:[#allocation2 + $0x60] sm:$0xff]
        %v390 = vld [vmem:[#allocation2 + $0x68] sm:$0xff]
        %v391 = vld [vmem:[#allocation2 + $0x70] sm:$0xff]
        %v392 = vld [vmem:[#allocation2 + $0x78] sm:$0xff]
        %v393 = vld [vmem:[#allocation2 + $0x80] sm:$0xff]
        %v394 = vld [vmem:[#allocation2 + $0x88] sm:$0xff]
        %v395 = vld [vmem:[#allocation2 + $0x90] sm:$0xff]
        %v396 = vld [vmem:[#allocation2 + $0x98] sm:$0xff]
        %v397 = vld [vmem:[#allocation2 + $0xa0] sm:$0xff]
        %v398 = vld [vmem:[#allocation2 + $0xa8] sm:$0xff]
        %v399 = vld [vmem:[#allocation2 + $0xb0] sm:$0xff]
        %v400 = vld [vmem:[#allocation2 + $0xb8] sm:$0xff]
        %v401 = vld [vmem:[#allocation2 + $0xc0] sm:$0xff]
        %v402 = vld [vmem:[#allocation2 + $0xc8] sm:$0xff]
        %v403 = vld [vmem:[#allocation2 + $0xd0] sm:$0xff]
        %v404 = vld [vmem:[#allocation2 + $0xd8] sm:$0xff]
        %v405 = vld [vmem:[#allocation2 + $0xe0] sm:$0xff]
        %v406 = vld [vmem:[#allocation2 + $0xe8] sm:$0xff]
        %v407 = vld [vmem:[#allocation2 + $0xf0] sm:$0xff]
        %v408 = vld [vmem:[#allocation2 + $0xf8] sm:$0xff]
        %v409 = vld [vmem:[%s4] sm:$0x3]
        %v411 = vperm.slane %v409, 0
        %v412 = vperm.slane %v409, 1
        %415 = vmatpush.msra.mxu0 %v407
        %416 = vmatpush.msra.mxu0 %v405
        %417 = vmatpush.msra.mxu0 %v403
        %418 = vmatpush.msra.mxu0 %v401
        %419 = vmatpush.msra.mxu0 %v399
        %420 = vmatpush.msra.mxu0 %v397
        %421 = vmatpush.msra.mxu0 %v395
        %422 = vmatpush.msra.mxu0 %v393
        %423 = vmatpush.msra.mxu0 %v391
        %424 = vmatpush.msra.mxu0 %v389
        %425 = vmatpush.msra.mxu0 %v387
        %426 = vmatpush.msra.mxu0 %v385
        %427 = vmatpush.msra.mxu0 %v383
        %428 = vmatpush.msra.mxu0 %v381
        %429 = vmatpush.msra.mxu0 %v379
        %430 = vmatpush.msra.mxu0 %v377
        %431 = vmatmul.f32.gmra.mxu0 %v375
        %v432 = vpop.f32.mrf.mxu0
        %v433 = vadd.f32 %v411, %v432
        %434 = vmatmul.f32.gmra.mxu0 %v376
        %v435 = vpop.f32.mrf.mxu0
        %v436 = vadd.f32 %v411, %v435
        %437 = vdwg.mxu0
        %438 = vmatpush.msra.mxu0 %v408
        %439 = vmatpush.msra.mxu0 %v406
        %440 = vmatpush.msra.mxu0 %v404
        %441 = vmatpush.msra.mxu0 %v402
        %442 = vmatpush.msra.mxu0 %v400
        %443 = vmatpush.msra.mxu0 %v398
        %444 = vmatpush.msra.mxu0 %v396
        %445 = vmatpush.msra.mxu0 %v394
        %446 = vmatpush.msra.mxu0 %v392
        %447 = vmatpush.msra.mxu0 %v390
        %448 = vmatpush.msra.mxu0 %v388
        %449 = vmatpush.msra.mxu0 %v386
        %450 = vmatpush.msra.mxu0 %v384
        %451 = vmatpush.msra.mxu0 %v382
        %452 = vmatpush.msra.mxu0 %v380
        %453 = vmatpush.msra.mxu0 %v378
        %454 = vmatmul.f32.gmra.mxu0 %v375
        %v455 = vpop.f32.mrf.mxu0
        %v456 = vadd.f32 %v412, %v455
        %457 = vmatmul.f32.gmra.mxu0 %v376
        %v458 = vpop.f32.mrf.mxu0
        %v459 = vadd.f32 %v412, %v458
        %460 = vdwg.mxu0
        %v461 = vmul.f32 %v433, %v433
        %v462 = vmul.f32 %v456, %v456
        %v463 = vmul.f32 %v436, %v436
        %v464 = vmul.f32 %v459, %v459
        %v465 = vmul.f32 %v433, %v461
        %v466 = vmul.f32 %v456, %v462
        %v467 = vmul.f32 %v436, %v463
        %v468 = vmul.f32 %v459, %v464
        %v469 = vmul.f32 %v465, 0.044715
        %v470 = vmul.f32 %v466, 0.044715
        %v471 = vmul.f32 %v467, 0.044715
        %v472 = vmul.f32 %v468, 0.044715
        %v473 = vadd.f32 %v433, %v469
        %v474 = vadd.f32 %v456, %v470
        %v475 = vadd.f32 %v436, %v471
        %v476 = vadd.f32 %v459, %v472
        %v477 = vmul.f32 %v473, 0.7978846
        %v478 = vmul.f32 %v474, 0.7978846
        %v479 = vmul.f32 %v475, 0.7978846
        %v480 = vmul.f32 %v476, 0.7978846
        %v481 = vtanh.pop %v477
        %v482 = vtanh.pop %v478
        %v483 = vtanh.pop %v479
        %v484 = vtanh.pop %v480
        %v485 = vadd.f32 %v481, 1.0
        %v486 = vadd.f32 %v482, 1.0
        %v487 = vadd.f32 %v483, 1.0
        %v488 = vadd.f32 %v484, 1.0
        %v489 = vmul.f32 %v485, 0.5
        %v490 = vmul.f32 %v486, 0.5
        %v491 = vmul.f32 %v487, 0.5
        %v492 = vmul.f32 %v488, 0.5
        %v493 = vmul.f32 %v433, %v489
        %v494 = vmul.f32 %v456, %v490
        %v495 = vmul.f32 %v436, %v491
        %v496 = vmul.f32 %v459, %v492
        %v497 = vld [vmem:[#allocation4] sm:$0xff]
        %v498 = vld [vmem:[#allocation4 + $0x8] sm:$0xff]
        %v499 = vld [vmem:[#allocation4 + $0x10] sm:$0xff]
        %v500 = vld [vmem:[#allocation4 + $0x18] sm:$0xff]
        %v501 = vld [vmem:[#allocation4 + $0x20] sm:$0xff]
        %v502 = vld [vmem:[#allocation4 + $0x28] sm:$0xff]
        %v503 = vld [vmem:[#allocation4 + $0x30] sm:$0xff]
        %v504 = vld [vmem:[#allocation4 + $0x38] sm:$0xff]
        %v505 = vld [vmem:[#allocation4 + $0x40] sm:$0xff]
        %v506 = vld [vmem:[#allocation4 + $0x48] sm:$0xff]
        %v507 = vld [vmem:[#allocation4 + $0x50] sm:$0xff]
        %v508 = vld [vmem:[#allocation4 + $0x58] sm:$0xff]
        %v509 = vld [vmem:[#allocation4 + $0x60] sm:$0xff]
        %v510 = vld [vmem:[#allocation4 + $0x68] sm:$0xff]
        %v511 = vld [vmem:[#allocation4 + $0x70] sm:$0xff]
        %v512 = vld [vmem:[#allocation4 + $0x78] sm:$0xff]
        %v513 = vld [vmem:[#allocation4 + $0x80] sm:$0xff]
        %v514 = vld [vmem:[#allocation4 + $0x88] sm:$0xff]
        %v515 = vld [vmem:[#allocation4 + $0x90] sm:$0xff]
        %v516 = vld [vmem:[#allocation4 + $0x98] sm:$0xff]
        %v517 = vld [vmem:[#allocation4 + $0xa0] sm:$0xff]
        %v518 = vld [vmem:[#allocation4 + $0xa8] sm:$0xff]
        %v519 = vld [vmem:[#allocation4 + $0xb0] sm:$0xff]
        %v520 = vld [vmem:[#allocation4 + $0xb8] sm:$0xff]
        %v521 = vld [vmem:[#allocation4 + $0xc0] sm:$0xff]
        %v522 = vld [vmem:[#allocation4 + $0xc8] sm:$0xff]
        %v523 = vld [vmem:[#allocation4 + $0xd0] sm:$0xff]
        %v524 = vld [vmem:[#allocation4 + $0xd8] sm:$0xff]
        %v525 = vld [vmem:[#allocation4 + $0xe0] sm:$0xff]
        %v526 = vld [vmem:[#allocation4 + $0xe8] sm:$0xff]
        %v527 = vld [vmem:[#allocation4 + $0xf0] sm:$0xff]
        %v528 = vld [vmem:[#allocation4 + $0xf8] sm:$0xff]
        %v529 = vld [vmem:[%s6] sm:$0x1]
        %v531 = vperm.slane %v529, 0
        %533 = vmatpush.msra.mxu0 %v512
        %534 = vmatpush.msra.mxu0 %v511
        %535 = vmatpush.msra.mxu0 %v510
        %536 = vmatpush.msra.mxu0 %v509
        %537 = vmatpush.msra.mxu0 %v508
        %538 = vmatpush.msra.mxu0 %v507
        %539 = vmatpush.msra.mxu0 %v506
        %540 = vmatpush.msra.mxu0 %v505
        %541 = vmatpush.msra.mxu0 %v504
        %542 = vmatpush.msra.mxu0 %v503
        %543 = vmatpush.msra.mxu0 %v502
        %544 = vmatpush.msra.mxu0 %v501
        %545 = vmatpush.msra.mxu0 %v500
        %546 = vmatpush.msra.mxu0 %v499
        %547 = vmatpush.msra.mxu0 %v498
        %548 = vmatpush.msra.mxu0 %v497
        %549 = vmatmul.f32.gmra.mxu0 %v493
        %v550 = vpop.f32.mrf.mxu0
        %v551 = vadd.f32 %v531, %v550
        %552 = vmatmul.f32.gmra.mxu0 %v495
        %v553 = vpop.f32.mrf.mxu0
        %v554 = vadd.f32 %v531, %v553
        %555 = vdwg.mxu0
        %556 = vmatpush.msra.mxu0 %v528
        %557 = vmatpush.msra.mxu0 %v527
        %558 = vmatpush.msra.mxu0 %v526
        %559 = vmatpush.msra.mxu0 %v525
        %560 = vmatpush.msra.mxu0 %v524
        %561 = vmatpush.msra.mxu0 %v523
        %562 = vmatpush.msra.mxu0 %v522
        %563 = vmatpush.msra.mxu0 %v521
        %564 = vmatpush.msra.mxu0 %v520
        %565 = vmatpush.msra.mxu0 %v519
        %566 = vmatpush.msra.mxu0 %v518
        %567 = vmatpush.msra.mxu0 %v517
        %568 = vmatpush.msra.mxu0 %v516
        %569 = vmatpush.msra.mxu0 %v515
        %570 = vmatpush.msra.mxu0 %v514
        %571 = vmatpush.msra.mxu0 %v513
        %572 = vmatmul.f32.gmra.mxu0 %v494
        %v573 = vpop.f32.mrf.mxu0
        %v574 = vadd.f32 %v551, %v573
        %575 = vmatmul.f32.gmra.mxu0 %v496
        %v576 = vpop.f32.mrf.mxu0
        %v577 = vadd.f32 %v554, %v576
        %578 = vdwg.mxu0
        %v579 = vadd.f32 %v574, %v316
        %v580 = vadd.f32 %v577, %v317
        %581 = vst [vmem:[%s314] sm:$0xff] %v579
        %582 = vst [vmem:[%s314 + $0x8] sm:$0xff] %v580
        %s583 = smul.u32 2, %s20
        %p584 = scmp.lt.s32.totalorder %s583, 3
        %s585 = scalar_select %p584, %s583, 3
        %s586 = smul.addr %s585, 8
        %s587 = scalar_lea.vmem %s7, %s586
        // Predicated region
        $region57: #{transformer_forward.8} parent=47 // pred_check
          %p588 = pneg %p190
        $region58: #{transformer_forward.8} parent=47 // pred_check_branch
          %590 = sbr.rel (%p588) target = $region60
        $region59: #{transformer_forward.8} parent=47 // pred_region
          %s591 = smul.u32 2, %s20
        $region60: #{transformer_forward.8} parent=47 // pred_fallthru
          _
      $region48: #{transformer_forward.8} parent=5 // pred_fallthru
        _
      %p592 = scmp.le.s32.totalorder 2, %s15
      // Predicated region
      $region61: #{transformer_forward.8} parent=5 // pred_check
        %p593 = pneg %p592
      $region62: #{transformer_forward.8} parent=5 // pred_check_branch
        %595 = sbr.rel (%p593) target = $region64
      $region63: #{transformer_forward.8} parent=5 // pred_region
        %s596 = ssub.s32 %s15, 2
        // Predicated region
        $region65: #{transformer_forward.8} parent=63 // pred_check
          %p597 = pneg %p196
        $region66: #{transformer_forward.8} parent=63 // pred_check_branch
          %599 = sbr.rel (%p597) target = $region68
        $region67: #{transformer_forward.8} parent=63 // pred_region
          %s600 = smul.u32 2, %s21
          %p601 = scmp.lt.s32.totalorder %s600, 3
          %s602 = scalar_select %p601, %s600, 3
          %s603 = smul.addr %s602, 8
          %s604 = scalar_lea.vmem %s7, %s603
        $region68: #{transformer_forward.8} parent=63 // pred_fallthru
          _
      $region64: #{transformer_forward.8} parent=5 // pred_fallthru
        _
    $region6: #{transformer_forward.8} parent=1 // loop_footer
      %s19 = sadd.s32 1, %s15
    $region7: #{transformer_forward.8} parent=1 // loop_footer_branch
      %14 = sbr.rel target = $region3
    $region8: #{transformer_forward.8} parent=1 // loop_exit
      _
    %605 = vsyncpa [#allocation3], 1
    %s606 = scalar_lea.sflag [#allocation3], 1
    %607 = vsyncpa %s606, 1
    %608 = vsyncpa [#allocation5], 1

// kernel: transformer_forward.6
$region0: #{transformer_forward.6}
  #allocation0 [shape = 'u32[]', space=smem, size = 0x4, offset = 0x4, fixed_abs, tag = 'smem constant byte address 0x4 - core index']
  #allocation1 [shape = 'u32[72,128]{1,0:T(1,128)}', space=vmem, size = 0x9000, scoped, tag = 'internal scratch']
  %s0 = inlined_call_operand.vmem [shape: f32[32,128], index: 0, kind: input, shape index: {}]
  %s1 = inlined_call_operand.vmem [shape: f32[16,128], index: 1, kind: input, shape index: {}]
  %s2 = inlined_call_operand.vmem [shape: f32[1,128], index: 2, kind: input, shape index: {}]
  %s3 = inlined_call_operand.vmem [shape: f32[1,128], index: 3, kind: input, shape index: {}]
  %s4 = inlined_call_operand.vmem [shape: f32[32,128], index: 4, kind: output, shape index: {}]
  %s5 = sld [smem:[#allocation0]]
  $region49: #{transformer_forward.6} parent=0
    _
  %s7 = ssub.s32 1, %s5
  %s8 = scalar_select 0, %s7, %s5
  loop: start=0, step=1, limit=4
  $region2: #{transformer_forward.6} parent=0 // loop_pre_header
    _
  $region3: #{transformer_forward.6} parent=0 // loop_header
    %s10 = sphi 0, %s14
    %p11 = scmp.ge.s32.totalorder %s10, 4
    %s20 = sphi 0, %s22
    %s23 = sphi 0, %s20
    %s24 = sphi 0, %s23
    %s40 = sphi 0, %s24
    %s44 = sphi 0, %s44
    %s46 = sphi 0, %s44
    %s47 = sphi 0, %s46
    %s61 = sphi 0, %s47
    %s65 = sphi 0, %s65
    %s67 = sphi 0, %s65
    %s68 = sphi 0, %s67
    %s82 = sphi 0, %s68
    %s86 = sphi 0, %s86
    %s88 = sphi 0, %s86
    %s89 = sphi 0, %s88
    %s103 = sphi 0, %s89
    %s109 = sphi 0, %s111
    %s112 = sphi 0, %s109
    %s113 = sphi 0, %s112
    %s129 = sphi 0, %s113
  $region4: #{transformer_forward.6} parent=0 // loop_header_branch
    %13 = sbr.rel (%p11) target = $region8
  $region5: #{transformer_forward.6} parent=0 // loop_body
    %s15 = ssub.s32 %s10, 1
    %s16 = ssub.s32 %s10, 2
    %s17 = sadd.s32 %s10, 1
    %s18 = ssub.s32 %s10, %s17
    %p19 = scmp.eq.s32.totalorder %s18, 0
    %s21 = sadd.s32 %s20, 1
    %s22 = scalar_select %p19, %s20, %s21
    %p25 = pneg %p19
    %p26 = scmp.eq.s32.totalorder %s10, 1
    %p27 = por %p25, %p26
    %p28 = scmp.ne.s32.totalorder %s20, %s23
    %p29 = scmp.eq.s32.totalorder %s10, 0
    %p30 = por %p28, %p29
    %p31 = scmp.ne.s32.totalorder %s20, %s23
    %p32 = scmp.eq.s32.totalorder %s15, 1
    %p33 = por %p31, %p32
    %p34 = scmp.ne.s32.totalorder %s23, %s24
    %p35 = scmp.eq.s32.totalorder %s15, 0
    %p36 = por %p34, %p35
    %p37 = scmp.ne.s32.totalorder %s23, %s24
    %p38 = scmp.eq.s32.totalorder %s16, 1
    %p39 = por %p37, %p38
    %p41 = scmp.ne.s32.totalorder %s24, %s40
    %p42 = scmp.eq.s32.totalorder %s16, 0
    %p43 = por %p41, %p42
    %s45 = sadd.s32 %s44, 1
    %p48 = scmp.eq.s32.totalorder %s10, 1
    %p49 = scmp.ne.s32.totalorder %s44, %s46
    %p50 = scmp.eq.s32.totalorder %s10, 0
    %p51 = por %p49, %p50
    %p52 = scmp.ne.s32.totalorder %s44, %s46
    %p53 = scmp.eq.s32.totalorder %s15, 1
    %p54 = por %p52, %p53
    %p55 = scmp.ne.s32.totalorder %s46, %s47
    %p56 = scmp.eq.s32.totalorder %s15, 0
    %p57 = por %p55, %p56
    %p58 = scmp.ne.s32.totalorder %s46, %s47
    %p59 = scmp.eq.s32.totalorder %s16, 1
    %p60 = por %p58, %p59
    %p62 = scmp.ne.s32.totalorder %s47, %s61
    %p63 = scmp.eq.s32.totalorder %s16, 0
    %p64 = por %p62, %p63
    %s66 = sadd.s32 %s65, 1
    %p69 = scmp.eq.s32.totalorder %s10, 1
    %p70 = scmp.ne.s32.totalorder %s65, %s67
    %p71 = scmp.eq.s32.totalorder %s10, 0
    %p72 = por %p70, %p71
    %p73 = scmp.ne.s32.totalorder %s65, %s67
    %p74 = scmp.eq.s32.totalorder %s15, 1
    %p75 = por %p73, %p74
    %p76 = scmp.ne.s32.totalorder %s67, %s68
    %p77 = scmp.eq.s32.totalorder %s15, 0
    %p78 = por %p76, %p77
    %p79 = scmp.ne.s32.totalorder %s67, %s68
    %p80 = scmp.eq.s32.totalorder %s16, 1
    %p81 = por %p79, %p80
    %p83 = scmp.ne.s32.totalorder %s68, %s82
    %p84 = scmp.eq.s32.totalorder %s16, 0
    %p85 = por %p83, %p84
    %s87 = sadd.s32 %s86, 1
    %p90 = scmp.eq.s32.totalorder %s10, 1
    %p91 = scmp.ne.s32.totalorder %s86, %s88
    %p92 = scmp.eq.s32.totalorder %s10, 0
    %p93 = por %p91, %p92
    %p94 = scmp.ne.s32.totalorder %s86, %s88
    %p95 = scmp.eq.s32.totalorder %s15, 1
    %p96 = por %p94, %p95
    %p97 = scmp.ne.s32.totalorder %s88, %s89
    %p98 = scmp.eq.s32.totalorder %s15, 0
    %p99 = por %p97, %p98
    %p100 = scmp.ne.s32.totalorder %s88, %s89
    %p101 = scmp.eq.s32.totalorder %s16, 1
    %p102 = por %p100, %p101
    %p104 = scmp.ne.s32.totalorder %s89, %s103
    %p105 = scmp.eq.s32.totalorder %s16, 0
    %p106 = por %p104, %p105
    %s107 = ssub.s32 %s10, %s17
    %p108 = scmp.eq.s32.totalorder %s107, 0
    %s110 = sadd.s32 %s109, 1
    %s111 = scalar_select %p108, %s109, %s110
    %p114 = pneg %p108
    %p115 = scmp.eq.s32.totalorder %s10, 1
    %p116 = por %p114, %p115
    %p117 = scmp.ne.s32.totalorder %s109, %s112
    %p118 = scmp.eq.s32.totalorder %s10, 0
    %p119 = por %p117, %p118
    %p120 = scmp.ne.s32.totalorder %s109, %s112
    %p121 = scmp.eq.s32.totalorder %s15, 1
    %p122 = por %p120, %p121
    %p123 = scmp.ne.s32.totalorder %s112, %s113
    %p124 = scmp.eq.s32.totalorder %s15, 0
    %p125 = por %p123, %p124
    %p126 = scmp.ne.s32.totalorder %s112, %s113
    %p127 = scmp.eq.s32.totalorder %s16, 1
    %p128 = por %p126, %p127
    %p130 = scmp.ne.s32.totalorder %s113, %s129
    %p131 = scmp.eq.s32.totalorder %s16, 0
    %p132 = por %p130, %p131
    %p133 = scmp.le.s32.totalorder 1, %s10
    %p134 = scmp.lt.s32.totalorder %s10, 3
    %p135 = pnand %p133, %p134
    %p136 = pneg %p135
    // Predicated region
    $region9: #{transformer_forward.6} parent=5 // pred_check
      _
    $region10: #{transformer_forward.6} parent=5 // pred_check_branch
      %138 = sbr.rel (%p135) target = $region12
    $region11: #{transformer_forward.6} parent=5 // pred_region
      %s139 = ssub.s32 %s10, 1
      // Predicated region
      $region13: #{transformer_forward.6} parent=11 // pred_check
        %p140 = pneg %p57
      $region14: #{transformer_forward.6} parent=11 // pred_check_branch
        %142 = sbr.rel (%p140) target = $region16
      $region15: #{transformer_forward.6} parent=11 // pred_region
        _
      $region16: #{transformer_forward.6} parent=11 // pred_fallthru
        _
      // Predicated region
      $region17: #{transformer_forward.6} parent=11 // pred_check
        %p143 = pneg %p78
      $region18: #{transformer_forward.6} parent=11 // pred_check_branch
        %145 = sbr.rel (%p143) target = $region20
      $region19: #{transformer_forward.6} parent=11 // pred_region
        _
      $region20: #{transformer_forward.6} parent=11 // pred_fallthru
        _
      // Predicated region
      $region21: #{transformer_forward.6} parent=11 // pred_check
        %p146 = pneg %p99
      $region22: #{transformer_forward.6} parent=11 // pred_check_branch
        %148 = sbr.rel (%p146) target = $region24
      $region23: #{transformer_forward.6} parent=11 // pred_region
        _
      $region24: #{transformer_forward.6} parent=11 // pred_fallthru
        _
    $region12: #{transformer_forward.6} parent=5 // pred_fallthru
      _
    %p149 = scmp.lt.s32.totalorder %s10, 2
    // Predicated region
    $region25: #{transformer_forward.6} parent=5 // pred_check
      %p150 = pneg %p149
    $region26: #{transformer_forward.6} parent=5 // pred_check_branch
      %152 = sbr.rel (%p150) target = $region28
    $region27: #{transformer_forward.6} parent=5 // pred_region
      // Predicated region
      $region29: #{transformer_forward.6} parent=27 // pred_check
        %p153 = pneg %p30
      $region30: #{transformer_forward.6} parent=27 // pred_check_branch
        %155 = sbr.rel (%p153) target = $region32
      $region31: #{transformer_forward.6} parent=27 // pred_region
        %s156 = smul.u32 2, %s10
        %p157 = scmp.lt.s32.totalorder %s156, 3
        %s158 = scalar_select %p157, %s156, 3
        %s159 = smul.addr %s158, 8
        %s160 = scalar_lea.vmem %s0, %s159
        %s161 = smul.u32 2, %s10
      $region32: #{transformer_forward.6} parent=27 // pred_fallthru
        _
    $region28: #{transformer_forward.6} parent=5 // pred_fallthru
      _
    %p162 = scmp.le.s32.totalorder 1, %s10
    %p163 = scmp.lt.s32.totalorder %s10, 3
    %p164 = pnand %p162, %p163
    %p165 = pneg %p164
    // Predicated region
    $region33: #{transformer_forward.6} parent=5 // pred_check
      _
    $region34: #{transformer_forward.6} parent=5 // pred_check_branch
      %167 = sbr.rel (%p164) target = $region36
    $region35: #{transformer_forward.6} parent=5 // pred_region
      %s168 = ssub.s32 %s10, 1
      %s169 = smul.u32 2, %s15
      %p170 = scmp.lt.s32.totalorder %s169, 3
      %s171 = scalar_select %p170, %s169, 3
      %s172 = smul.addr %s171, 8
      %s173 = scalar_lea.vmem %s0, %s172
      %p174 = pneg %p36
      %p175 = pneg %p33
      %p176 = pneg %p57
      %p177 = pneg %p54
      %p178 = pneg %p78
      %p179 = pneg %p75
      %p180 = pneg %p99
      %p181 = pneg %p96
      %p182 = pneg %p125
      %p183 = pneg %p122
      %s184 = smul.u32 2, %s15
      %p185 = scmp.lt.s32.totalorder %s184, 3
      %s186 = scalar_select %p185, %s184, 3
      %s187 = smul.addr %s186, 8
      %s188 = scalar_lea.vmem %s4, %s187
      %s189 = smul.u32 2, %s15
      %p190 = scmp.lt.s32.totalorder %s189, 3
      %s191 = scalar_select %p190, %s189, 3
      %s192 = smul.addr %s191, 8
      %s193 = scalar_lea.vmem %s0, %s192
      %s194 = smul.u32 2, %s15
      %s195 = smul.u32 2, %s15
      %p196 = scmp.lt.s32.totalorder %s195, 3
      %s197 = scalar_select %p196, %s195, 3
      %s198 = smul.addr %s197, 8
      %s199 = scalar_lea.vmem %s4, %s198
      %s200 = smul.u32 2, %s15
      %v201 = vld [vmem:[%s193] sm:$0xff]
      %v202 = vld [vmem:[%s193 + $0x8] sm:$0xff]
      %v203 = vld [vmem:[%s1] sm:$0xff]
      %v204 = vld [vmem:[%s1 + $0x8] sm:$0xff]
      %v205 = vadd.f32 %v201, %v203
      %v206 = vadd.f32 %v202, %v204
      %v207 = vld [vmem:[%s2] sm:$0x1]
      %v208 = vld [vmem:[%s3] sm:$0x1]
      %209 = vadd.xlane.f32.xlu0 %v205
      %v210 = vpop.xlane.xlu0 %209
      %211 = vadd.xlane.f32.xlu0 %v206
      %v212 = vpop.xlane.xlu0 %211
      %v213 = vrcp.pop 128.0
      %v214 = vmul.f32 128.0, %v213
      %v215 = vsub.f32 1.0, %v214
      %v216 = vmul.f32 %v213, %v215
      %v217 = vadd.f32 %v213, %v216
      %vm218 = vweird.f32 %v213
      %v219 = vsel %vm218, %v213, %v217
      %v220 = vmul.f32 %v210, %v219
      %v221 = vmul.f32 %v212, %v219
      %v222 = vsub.f32 %v205, %v220
      %v223 = vsub.f32 %v206, %v221
      %v224 = vmul.f32 %v222, %v222
      %v225 = vmul.f32 %v223, %v223
      %226 = vadd.xlane.f32.xlu0 %v224
      %v227 = vpop.xlane.xlu0 %226
      %228 = vadd.xlane.f32.xlu0 %v225
      %v229 = vpop.xlane.xlu0 %228
      %v230 = vmul.f32 %v227, %v219
      %v231 = vmul.f32 %v229, %v219
      %v232 = vadd.f32 %v230, 1e-12
      %v233 = vadd.f32 %v231, 1e-12
      %v234 = vrsqrt.pop %v232
      %v235 = vmul.f32 %v234, %v232
      %v236 = vmul.f32 %v235, %v234
      %v237 = vmul.f32 0.5, %v236
      %v238 = vsub.f32 1.5, %v237
      %v239 = vmul.f32 %v234, %v238
      %vm240 = vweird.f32 %v232
      %vm241 = vweird.f32 %v234
      %vm242 = vmor %vm240, %vm241
      %v243 = vsel %vm242, %v234, %v239
      %v244 = vrsqrt.pop %v233
      %v245 = vmul.f32 %v244, %v233
      %v246 = vmul.f32 %v245, %v244
      %v247 = vmul.f32 0.5, %v246
      %v248 = vsub.f32 1.5, %v247
      %v249 = vmul.f32 %v244, %v248
      %vm250 = vweird.f32 %v233
      %vm251 = vweird.f32 %v244
      %vm252 = vmor %vm250, %vm251
      %v253 = vsel %vm252, %v244, %v249
      %v254 = vmul.f32 %v222, %v243
      %v255 = vmul.f32 %v223, %v253
      %v257 = vperm.slane %v207, 0
      %v259 = vmul.f32 %v254, %v257
      %v260 = vmul.f32 %v255, %v257
      %v262 = vperm.slane %v208, 0
      %v264 = vadd.f32 %v259, %v262
      %v265 = vadd.f32 %v260, %v262
      %266 = vst [vmem:[%s199] sm:$0xff] %v264
      %267 = vst [vmem:[%s199 + $0x8] sm:$0xff] %v265
      %s268 = smul.u32 2, %s15
      %p269 = scmp.lt.s32.totalorder %s268, 3
      %s270 = scalar_select %p269, %s268, 3
      %s271 = smul.addr %s270, 8
      %s272 = scalar_lea.vmem %s4, %s271
      // Predicated region
      $region37: #{transformer_forward.6} parent=35 // pred_check
        %p273 = pneg %p122
      $region38: #{transformer_forward.6} parent=35 // pred_check_branch
        %275 = sbr.rel (%p273) target = $region40
      $region39: #{transformer_forward.6} parent=35 // pred_region
        %s276 = smul.u32 2, %s15
      $region40: #{transformer_forward.6} parent=35 // pred_fallthru
        _
    $region36: #{transformer_forward.6} parent=5 // pred_fallthru
      _
    %p277 = scmp.le.s32.totalorder 2, %s10
    // Predicated region
    $region41: #{transformer_forward.6} parent=5 // pred_check
      %p278 = pneg %p277
    $region42: #{transformer_forward.6} parent=5 // pred_check_branch
      %280 = sbr.rel (%p278) target = $region44
    $region43: #{transformer_forward.6} parent=5 // pred_region
      %s281 = ssub.s32 %s10, 2
      // Predicated region
      $region45: #{transformer_forward.6} parent=43 // pred_check
        %p282 = pneg %p128
      $region46: #{transformer_forward.6} parent=43 // pred_check_branch
        %284 = sbr.rel (%p282) target = $region48
      $region47: #{transformer_forward.6} parent=43 // pred_region
        %s285 = smul.u32 2, %s16
        %p286 = scmp.lt.s32.totalorder %s285, 3
        %s287 = scalar_select %p286, %s285, 3
        %s288 = smul.addr %s287, 8
        %s289 = scalar_lea.vmem %s4, %s288
      $region48: #{transformer_forward.6} parent=43 // pred_fallthru
        _
    $region44: #{transformer_forward.6} parent=5 // pred_fallthru
      _
  $region6: #{transformer_forward.6} parent=0 // loop_footer
    %s14 = sadd.s32 1, %s10
  $region7: #{transformer_forward.6} parent=0 // loop_footer_branch
    %9 = sbr.rel target = $region3
  $region8: #{transformer_forward.6} parent=0 // loop_exit
    _

// kernel: transformer_forward.9
$region0: #{transformer_forward.9}
  #allocation0 [shape = 'u32[]', space=smem, size = 0x4, offset = 0x4, fixed_abs, tag = 'smem constant byte address 0x4 - core index']
  #allocation1 [shape = 'u32[72,128]{1,0:T(1,128)}', space=vmem, size = 0x9000, scoped, tag = 'internal scratch']
  %s0 = inlined_call_operand.vmem [shape: f32[32,128], index: 0, kind: input, shape index: {}]
  %s1 = inlined_call_operand.vmem [shape: f32[1,128], index: 1, kind: input, shape index: {}]
  %s2 = inlined_call_operand.vmem [shape: f32[1,128], index: 2, kind: input, shape index: {}]
  %s3 = inlined_call_operand.hbm [shape: f32[128,384], index: 3, kind: input, shape index: {}]
  %s4 = inlined_call_operand.vmem [shape: f32[1,384], index: 4, kind: input, shape index: {}]
  %s5 = inlined_call_operand.hbm [shape: f32[128,128], index: 5, kind: input, shape index: {}]
  %s6 = inlined_call_operand.vmem [shape: f32[1,128], index: 6, kind: input, shape index: {}]
  %s7 = inlined_call_operand.vmem [shape: f32[32,128], index: 7, kind: output, shape index: {}]
  %s8 = sld [smem:[#allocation0]]
  $region69: #{transformer_forward.9} parent=0
    _
  %s10 = ssub.s32 1, %s8
  %s11 = scalar_select 0, %s10, %s8
  $region1: #{transformer_forward.9} parent=0
    #allocation2 [shape = 'u8[196608]{0}', space=vmem, size = 0x30000, scoped, tag = 'input window, operand 3, single buffered']
    #allocation3 [shape = 's32[2]{0}', space=sflag, size = 0x8, scoped, tag = 'scoped memory for transformer_forward.9']
    #allocation4 [shape = 'u8[65536]{0}', space=vmem, size = 0x10000, scoped, tag = 'input window, operand 5, single buffered']
    #allocation5 [shape = 's32[1]{0}', space=sflag, size = 0x4, scoped, tag = 'scoped memory for transformer_forward.9']
    %12 = vsyncpa [#allocation3], 0
    %13 = vsyncpa [#allocation5], 0
    loop: start=0, step=1, limit=4
    $region2: #{transformer_forward.9} parent=1 // loop_pre_header
      _
    $region3: #{transformer_forward.9} parent=1 // loop_header
      %s15 = sphi 0, %s19
      %p16 = scmp.ge.s32.totalorder %s15, 4
      %s25 = sphi 0, %s27
      %s28 = sphi 0, %s25
      %s29 = sphi 0, %s28
      %s45 = sphi 0, %s29
      %s49 = sphi 0, %s49
      %s51 = sphi 0, %s49
      %s52 = sphi 0, %s51
      %s66 = sphi 0, %s52
      %s70 = sphi 0, %s70
      %s72 = sphi 0, %s70
      %s73 = sphi 0, %s72
      %s87 = sphi 0, %s73
      %s91 = sphi 0, %s91
      %s93 = sphi 0, %s91
      %s94 = sphi 0, %s93
      %s108 = sphi 0, %s94
      %s112 = sphi 0, %s112
      %s114 = sphi 0, %s112
      %s115 = sphi 0, %s114
      %s129 = sphi 0, %s115
      %s133 = sphi 0, %s133
      %s135 = sphi 0, %s133
      %s136 = sphi 0, %s135
      %s150 = sphi 0, %s136
      %s154 = sphi 0, %s154
      %s156 = sphi 0, %s154
      %s157 = sphi 0, %s156
      %s171 = sphi 0, %s157
      %s177 = sphi 0, %s179
      %s180 = sphi 0, %s177
      %s181 = sphi 0, %s180
      %s197 = sphi 0, %s181
    $region4: #{transformer_forward.9} parent=1 // loop_header_branch
      %18 = sbr.rel (%p16) target = $region8
    $region5: #{transformer_forward.9} parent=1 // loop_body
      %s20 = ssub.s32 %s15, 1
      %s21 = ssub.s32 %s15, 2
      %s22 = sadd.s32 %s15, 1
      %s23 = ssub.s32 %s15, %s22
      %p24 = scmp.eq.s32.totalorder %s23, 0
      %s26 = sadd.s32 %s25, 1
      %s27 = scalar_select %p24, %s25, %s26
      %p30 = pneg %p24
      %p31 = scmp.eq.s32.totalorder %s15, 1
      %p32 = por %p30, %p31
      %p33 = scmp.ne.s32.totalorder %s25, %s28
      %p34 = scmp.eq.s32.totalorder %s15, 0
      %p35 = por %p33, %p34
      %p36 = scmp.ne.s32.totalorder %s25, %s28
      %p37 = scmp.eq.s32.totalorder %s20, 1
      %p38 = por %p36, %p37
      %p39 = scmp.ne.s32.totalorder %s28, %s29
      %p40 = scmp.eq.s32.totalorder %s20, 0
      %p41 = por %p39, %p40
      %p42 = scmp.ne.s32.totalorder %s28, %s29
      %p43 = scmp.eq.s32.totalorder %s21, 1
      %p44 = por %p42, %p43
      %p46 = scmp.ne.s32.totalorder %s29, %s45
      %p47 = scmp.eq.s32.totalorder %s21, 0
      %p48 = por %p46, %p47
      %s50 = sadd.s32 %s49, 1
      %p53 = scmp.eq.s32.totalorder %s15, 1
      %p54 = scmp.ne.s32.totalorder %s49, %s51
      %p55 = scmp.eq.s32.totalorder %s15, 0
      %p56 = por %p54, %p55
      %p57 = scmp.ne.s32.totalorder %s49, %s51
      %p58 = scmp.eq.s32.totalorder %s20, 1
      %p59 = por %p57, %p58
      %p60 = scmp.ne.s32.totalorder %s51, %s52
      %p61 = scmp.eq.s32.totalorder %s20, 0
      %p62 = por %p60, %p61
      %p63 = scmp.ne.s32.totalorder %s51, %s52
      %p64 = scmp.eq.s32.totalorder %s21, 1
      %p65 = por %p63, %p64
      %p67 = scmp.ne.s32.totalorder %s52, %s66
      %p68 = scmp.eq.s32.totalorder %s21, 0
      %p69 = por %p67, %p68
      %s71 = sadd.s32 %s70, 1
      %p74 = scmp.eq.s32.totalorder %s15, 1
      %p75 = scmp.ne.s32.totalorder %s70, %s72
      %p76 = scmp.eq.s32.totalorder %s15, 0
      %p77 = por %p75, %p76
      %p78 = scmp.ne.s32.totalorder %s70, %s72
      %p79 = scmp.eq.s32.totalorder %s20, 1
      %p80 = por %p78, %p79
      %p81 = scmp.ne.s32.totalorder %s72, %s73
      %p82 = scmp.eq.s32.totalorder %s20, 0
      %p83 = por %p81, %p82
      %p84 = scmp.ne.s32.totalorder %s72, %s73
      %p85 = scmp.eq.s32.totalorder %s21, 1
      %p86 = por %p84, %p85
      %p88 = scmp.ne.s32.totalorder %s73, %s87
      %p89 = scmp.eq.s32.totalorder %s21, 0
      %p90 = por %p88, %p89
      %s92 = sadd.s32 %s91, 1
      %p95 = scmp.eq.s32.totalorder %s15, 1
      %p96 = scmp.ne.s32.totalorder %s91, %s93
      %p97 = scmp.eq.s32.totalorder %s15, 0
      %p98 = por %p96, %p97
      %p99 = scmp.ne.s32.totalorder %s91, %s93
      %p100 = scmp.eq.s32.totalorder %s20, 1
      %p101 = por %p99, %p100
      %p102 = scmp.ne.s32.totalorder %s93, %s94
      %p103 = scmp.eq.s32.totalorder %s20, 0
      %p104 = por %p102, %p103
      %p105 = scmp.ne.s32.totalorder %s93, %s94
      %p106 = scmp.eq.s32.totalorder %s21, 1
      %p107 = por %p105, %p106
      %p109 = scmp.ne.s32.totalorder %s94, %s108
      %p110 = scmp.eq.s32.totalorder %s21, 0
      %p111 = por %p109, %p110
      %s113 = sadd.s32 %s112, 1
      %p116 = scmp.eq.s32.totalorder %s15, 1
      %p117 = scmp.ne.s32.totalorder %s112, %s114
      %p118 = scmp.eq.s32.totalorder %s15, 0
      %p119 = por %p117, %p118
      %p120 = scmp.ne.s32.totalorder %s112, %s114
      %p121 = scmp.eq.s32.totalorder %s20, 1
      %p122 = por %p120, %p121
      %p123 = scmp.ne.s32.totalorder %s114, %s115
      %p124 = scmp.eq.s32.totalorder %s20, 0
      %p125 = por %p123, %p124
      %p126 = scmp.ne.s32.totalorder %s114, %s115
      %p127 = scmp.eq.s32.totalorder %s21, 1
      %p128 = por %p126, %p127
      %p130 = scmp.ne.s32.totalorder %s115, %s129
      %p131 = scmp.eq.s32.totalorder %s21, 0
      %p132 = por %p130, %p131
      %s134 = sadd.s32 %s133, 1
      %p137 = scmp.eq.s32.totalorder %s15, 1
      %p138 = scmp.ne.s32.totalorder %s133, %s135
      %p139 = scmp.eq.s32.totalorder %s15, 0
      %p140 = por %p138, %p139
      %p141 = scmp.ne.s32.totalorder %s133, %s135
      %p142 = scmp.eq.s32.totalorder %s20, 1
      %p143 = por %p141, %p142
      %p144 = scmp.ne.s32.totalorder %s135, %s136
      %p145 = scmp.eq.s32.totalorder %s20, 0
      %p146 = por %p144, %p145
      %p147 = scmp.ne.s32.totalorder %s135, %s136
      %p148 = scmp.eq.s32.totalorder %s21, 1
      %p149 = por %p147, %p148
      %p151 = scmp.ne.s32.totalorder %s136, %s150
      %p152 = scmp.eq.s32.totalorder %s21, 0
      %p153 = por %p151, %p152
      %s155 = sadd.s32 %s154, 1
      %p158 = scmp.eq.s32.totalorder %s15, 1
      %p159 = scmp.ne.s32.totalorder %s154, %s156
      %p160 = scmp.eq.s32.totalorder %s15, 0
      %p161 = por %p159, %p160
      %p162 = scmp.ne.s32.totalorder %s154, %s156
      %p163 = scmp.eq.s32.totalorder %s20, 1
      %p164 = por %p162, %p163
      %p165 = scmp.ne.s32.totalorder %s156, %s157
      %p166 = scmp.eq.s32.totalorder %s20, 0
      %p167 = por %p165, %p166
      %p168 = scmp.ne.s32.totalorder %s156, %s157
      %p169 = scmp.eq.s32.totalorder %s21, 1
      %p170 = por %p168, %p169
      %p172 = scmp.ne.s32.totalorder %s157, %s171
      %p173 = scmp.eq.s32.totalorder %s21, 0
      %p174 = por %p172, %p173
      %s175 = ssub.s32 %s15, %s22
      %p176 = scmp.eq.s32.totalorder %s175, 0
      %s178 = sadd.s32 %s177, 1
      %s179 = scalar_select %p176, %s177, %s178
      %p182 = pneg %p176
      %p183 = scmp.eq.s32.totalorder %s15, 1
      %p184 = por %p182, %p183
      %p185 = scmp.ne.s32.totalorder %s177, %s180
      %p186 = scmp.eq.s32.totalorder %s15, 0
      %p187 = por %p185, %p186
      %p188 = scmp.ne.s32.totalorder %s177, %s180
      %p189 = scmp.eq.s32.totalorder %s20, 1
      %p190 = por %p188, %p189
      %p191 = scmp.ne.s32.totalorder %s180, %s181
      %p192 = scmp.eq.s32.totalorder %s20, 0
      %p193 = por %p191, %p192
      %p194 = scmp.ne.s32.totalorder %s180, %s181
      %p195 = scmp.eq.s32.totalorder %s21, 1
      %p196 = por %p194, %p195
      %p198 = scmp.ne.s32.totalorder %s181, %s197
      %p199 = scmp.eq.s32.totalorder %s21, 0
      %p200 = por %p198, %p199
      %p201 = scmp.le.s32.totalorder 1, %s15
      %p202 = scmp.lt.s32.totalorder %s15, 3
      %p203 = pnand %p201, %p202
      %p204 = pneg %p203
      // Predicated region
      $region9: #{transformer_forward.9} parent=5 // pred_check
        _
      $region10: #{transformer_forward.9} parent=5 // pred_check_branch
        %206 = sbr.rel (%p203) target = $region12
      $region11: #{transformer_forward.9} parent=5 // pred_region
        %s207 = ssub.s32 %s15, 1
        // Predicated region
        $region13: #{transformer_forward.9} parent=11 // pred_check
          %p208 = pneg %p62
        $region14: #{transformer_forward.9} parent=11 // pred_check_branch
          %210 = sbr.rel (%p208) target = $region16
        $region15: #{transformer_forward.9} parent=11 // pred_region
          _
        $region16: #{transformer_forward.9} parent=11 // pred_fallthru
          _
        // Predicated region
        $region17: #{transformer_forward.9} parent=11 // pred_check
          %p211 = pneg %p83
        $region18: #{transformer_forward.9} parent=11 // pred_check_branch
          %213 = sbr.rel (%p211) target = $region20
        $region19: #{transformer_forward.9} parent=11 // pred_region
          _
        $region20: #{transformer_forward.9} parent=11 // pred_fallthru
          _
        // Predicated region
        $region21: #{transformer_forward.9} parent=11 // pred_check
          %p214 = pneg %p104
        $region22: #{transformer_forward.9} parent=11 // pred_check_branch
          %216 = sbr.rel (%p214) target = $region24
        $region23: #{transformer_forward.9} parent=11 // pred_region
          %218 = vsyncadd [#allocation3], 0
          %s219 = sshll.u32 %s3, 4
          %s220 = int_to_ptr.hbm [resolvable:$true] %s219
          %s221 = sshll.u32 [#allocation2], 4
          %s222 = int_to_ptr.vmem [resolvable:$true] %s221
          %227 = dma.hbm_to_vmem [thread:$0]  %s220, 6144, %s222, [#allocation3], 384, 384, 24
        $region24: #{transformer_forward.9} parent=11 // pred_fallthru
          _
        // Predicated region
        $region25: #{transformer_forward.9} parent=11 // pred_check
          %p228 = pneg %p125
        $region26: #{transformer_forward.9} parent=11 // pred_check_branch
          %230 = sbr.rel (%p228) target = $region28
        $region27: #{transformer_forward.9} parent=11 // pred_region
          _
        $region28: #{transformer_forward.9} parent=11 // pred_fallthru
          _
        // Predicated region
        $region29: #{transformer_forward.9} parent=11 // pred_check
          %p231 = pneg %p146
        $region30: #{transformer_forward.9} parent=11 // pred_check_branch
          %233 = sbr.rel (%p231) target = $region32
        $region31: #{transformer_forward.9} parent=11 // pred_region
          %235 = vsyncadd [#allocation5], 0
          %s236 = sshll.u32 %s5, 4
          %s237 = int_to_ptr.hbm [resolvable:$true] %s236
          %s238 = sshll.u32 [#allocation4], 4
          %s239 = int_to_ptr.vmem [resolvable:$true] %s238
          %244 = dma.hbm_to_vmem [thread:$0]  %s237, 2048, %s239, [#allocation5], 128, 128, 8
        $region32: #{transformer_forward.9} parent=11 // pred_fallthru
          _
        // Predicated region
        $region33: #{transformer_forward.9} parent=11 // pred_check
          %p245 = pneg %p167
        $region34: #{transformer_forward.9} parent=11 // pred_check_branch
          %247 = sbr.rel (%p245) target = $region36
        $region35: #{transformer_forward.9} parent=11 // pred_region
          _
        $region36: #{transformer_forward.9} parent=11 // pred_fallthru
          _
      $region12: #{transformer_forward.9} parent=5 // pred_fallthru
        _
      %p248 = scmp.lt.s32.totalorder %s15, 2
      // Predicated region
      $region37: #{transformer_forward.9} parent=5 // pred_check
        %p249 = pneg %p248
      $region38: #{transformer_forward.9} parent=5 // pred_check_branch
        %251 = sbr.rel (%p249) target = $region40
      $region39: #{transformer_forward.9} parent=5 // pred_region
        // Predicated region
        $region41: #{transformer_forward.9} parent=39 // pred_check
          %p252 = pneg %p35
        $region42: #{transformer_forward.9} parent=39 // pred_check_branch
          %254 = sbr.rel (%p252) target = $region44
        $region43: #{transformer_forward.9} parent=39 // pred_region
          %s255 = smul.u32 2, %s15
          %p256 = scmp.lt.s32.totalorder %s255, 3
          %s257 = scalar_select %p256, %s255, 3
          %s258 = smul.addr %s257, 8
          %s259 = scalar_lea.vmem %s0, %s258
          %s260 = smul.u32 2, %s15
        $region44: #{transformer_forward.9} parent=39 // pred_fallthru
          _
      $region40: #{transformer_forward.9} parent=5 // pred_fallthru
        _
      %p261 = scmp.le.s32.totalorder 1, %s15
      %p262 = scmp.lt.s32.totalorder %s15, 3
      %p263 = pnand %p261, %p262
      %p264 = pneg %p263
      // Predicated region
      $region45: #{transformer_forward.9} parent=5 // pred_check
        _
      $region46: #{transformer_forward.9} parent=5 // pred_check_branch
        %266 = sbr.rel (%p263) target = $region48
      $region47: #{transformer_forward.9} parent=5 // pred_region
        %s267 = ssub.s32 %s15, 1
        // Predicated region
        $region49: #{transformer_forward.9} parent=47 // pred_check
          %p268 = pneg %p104
        $region50: #{transformer_forward.9} parent=47 // pred_check_branch
          %270 = sbr.rel (%p268) target = $region52
        $region51: #{transformer_forward.9} parent=47 // pred_region
          %272 = dma.done [#allocation3], 6144
        $region52: #{transformer_forward.9} parent=47 // pred_fallthru
          _
        // Predicated region
        $region53: #{transformer_forward.9} parent=47 // pred_check
          %p273 = pneg %p146
        $region54: #{transformer_forward.9} parent=47 // pred_check_branch
          %275 = sbr.rel (%p273) target = $region56
        $region55: #{transformer_forward.9} parent=47 // pred_region
          %277 = dma.done [#allocation5], 2048
        $region56: #{transformer_forward.9} parent=47 // pred_fallthru
          _
        %s278 = smul.u32 2, %s20
        %p279 = scmp.lt.s32.totalorder %s278, 3
        %s280 = scalar_select %p279, %s278, 3
        %s281 = smul.addr %s280, 8
        %s282 = scalar_lea.vmem %s0, %s281
        %p283 = pneg %p41
        %p284 = pneg %p38
        %p285 = pneg %p62
        %p286 = pneg %p59
        %p287 = pneg %p83
        %p288 = pneg %p80
        %p289 = pneg %p104
        %p290 = pneg %p101
        %p291 = pneg %p125
        %p292 = pneg %p122
        %p293 = pneg %p146
        %p294 = pneg %p143
        %p295 = pneg %p167
        %p296 = pneg %p164
        %p297 = pneg %p193
        %p298 = pneg %p190
        %s299 = smul.u32 2, %s20
        %p300 = scmp.lt.s32.totalorder %s299, 3
        %s301 = scalar_select %p300, %s299, 3
        %s302 = smul.addr %s301, 8
        %s303 = scalar_lea.vmem %s7, %s302
        %s304 = smul.u32 2, %s20
        %p305 = scmp.lt.s32.totalorder %s304, 3
        %s306 = scalar_select %p305, %s304, 3
        %s307 = smul.addr %s306, 8
        %s308 = scalar_lea.vmem %s0, %s307
        %s309 = smul.u32 2, %s20
        %s310 = smul.u32 2, %s20
        %p311 = scmp.lt.s32.totalorder %s310, 3
        %s312 = scalar_select %p311, %s310, 3
        %s313 = smul.addr %s312, 8
        %s314 = scalar_lea.vmem %s7, %s313
        %s315 = smul.u32 2, %s20
        %v316 = vld [vmem:[%s308] sm:$0xff]
        %v317 = vld [vmem:[%s308 + $0x8] sm:$0xff]
        %v318 = vld [vmem:[%s1] sm:$0x1]
        %v319 = vld [vmem:[%s2] sm:$0x1]
        %320 = vadd.xlane.f32.xlu0 %v316
        %v321 = vpop.xlane.xlu0 %320
        %322 = vadd.xlane.f32.xlu0 %v317
        %v323 = vpop.xlane.xlu0 %322
        %v324 = vrcp.pop 128.0
        %v325 = vmul.f32 128.0, %v324
        %v326 = vsub.f32 1.0, %v325
        %v327 = vmul.f32 %v324, %v326
        %v328 = vadd.f32 %v324, %v327
        %vm329 = vweird.f32 %v324
        %v330 = vsel %vm329, %v324, %v328
        %v331 = vmul.f32 %v321, %v330
        %v332 = vmul.f32 %v323, %v330
        %v333 = vsub.f32 %v316, %v331
        %v334 = vsub.f32 %v317, %v332
        %v335 = vmul.f32 %v333, %v333
        %v336 = vmul.f32 %v334, %v334
        %337 = vadd.xlane.f32.xlu0 %v335
        %v338 = vpop.xlane.xlu0 %337
        %339 = vadd.xlane.f32.xlu0 %v336
        %v340 = vpop.xlane.xlu0 %339
        %v341 = vmul.f32 %v338, %v330
        %v342 = vmul.f32 %v340, %v330
        %v343 = vadd.f32 %v341, 1e-12
        %v344 = vadd.f32 %v342, 1e-12
        %v345 = vrsqrt.pop %v343
        %v346 = vmul.f32 %v345, %v343
        %v347 = vmul.f32 %v346, %v345
        %v348 = vmul.f32 0.5, %v347
        %v349 = vsub.f32 1.5, %v348
        %v350 = vmul.f32 %v345, %v349
        %vm351 = vweird.f32 %v343
        %vm352 = vweird.f32 %v345
        %vm353 = vmor %vm351, %vm352
        %v354 = vsel %vm353, %v345, %v350
        %v355 = vrsqrt.pop %v344
        %v356 = vmul.f32 %v355, %v344
        %v357 = vmul.f32 %v356, %v355
        %v358 = vmul.f32 0.5, %v357
        %v359 = vsub.f32 1.5, %v358
        %v360 = vmul.f32 %v355, %v359
        %vm361 = vweird.f32 %v344
        %vm362 = vweird.f32 %v355
        %vm363 = vmor %vm361, %vm362
        %v364 = vsel %vm363, %v355, %v360
        %v365 = vmul.f32 %v333, %v354
        %v366 = vmul.f32 %v334, %v364
        %v368 = vperm.slane %v318, 0
        %v370 = vmul.f32 %v365, %v368
        %v371 = vmul.f32 %v366, %v368
        %v373 = vperm.slane %v319, 0
        %v375 = vadd.f32 %v370, %v373
        %v376 = vadd.f32 %v371, %v373
        %v377 = vld [vmem:[#allocation2] sm:$0xff]
        %v378 = vld [vmem:[#allocation2 + $0x8] sm:$0xff]
        %v379 = vld [vmem:[#allocation2 + $0x10] sm:$0xff]
        %v380 = vld [vmem:[#allocation2 + $0x18] sm:$0xff]
        %v381 = vld [vmem:[#allocation2 + $0x20] sm:$0xff]
        %v382 = vld [vmem:[#allocation2 + $0x28] sm:$0xff]
        %v383 = vld [vmem:[#allocation2 + $0x30] sm:$0xff]
        %v384 = vld [vmem:[#allocation2 + $0x38] sm:$0xff]
        %v385 = vld [vmem:[#allocation2 + $0x40] sm:$0xff]
        %v386 = vld [vmem:[#allocation2 + $0x48] sm:$0xff]
        %v387 = vld [vmem:[#allocation2 + $0x50] sm:$0xff]
        %v388 = vld [vmem:[#allocation2 + $0x58] sm:$0xff]
        %v389 = vld [vmem:[#allocation2 + $0x60] sm:$0xff]
        %v390 = vld [vmem:[#allocation2 + $0x68] sm:$0xff]
        %v391 = vld [vmem:[#allocation2 + $0x70] sm:$0xff]
        %v392 = vld [vmem:[#allocation2 + $0x78] sm:$0xff]
        %v393 = vld [vmem:[#allocation2 + $0x80] sm:$0xff]
        %v394 = vld [vmem:[#allocation2 + $0x88] sm:$0xff]
        %v395 = vld [vmem:[#allocation2 + $0x90] sm:$0xff]
        %v396 = vld [vmem:[#allocation2 + $0x98] sm:$0xff]
        %v397 = vld [vmem:[#allocation2 + $0xa0] sm:$0xff]
        %v398 = vld [vmem:[#allocation2 + $0xa8] sm:$0xff]
        %v399 = vld [vmem:[#allocation2 + $0xb0] sm:$0xff]
        %v400 = vld [vmem:[#allocation2 + $0xb8] sm:$0xff]
        %v401 = vld [vmem:[#allocation2 + $0xc0] sm:$0xff]
        %v402 = vld [vmem:[#allocation2 + $0xc8] sm:$0xff]
        %v403 = vld [vmem:[#allocation2 + $0xd0] sm:$0xff]
        %v404 = vld [vmem:[#allocation2 + $0xd8] sm:$0xff]
        %v405 = vld [vmem:[#allocation2 + $0xe0] sm:$0xff]
        %v406 = vld [vmem:[#allocation2 + $0xe8] sm:$0xff]
        %v407 = vld [vmem:[#allocation2 + $0xf0] sm:$0xff]
        %v408 = vld [vmem:[#allocation2 + $0xf8] sm:$0xff]
        %v409 = vld [vmem:[#allocation2 + $0x100] sm:$0xff]
        %v410 = vld [vmem:[#allocation2 + $0x108] sm:$0xff]
        %v411 = vld [vmem:[#allocation2 + $0x110] sm:$0xff]
        %v412 = vld [vmem:[#allocation2 + $0x118] sm:$0xff]
        %v413 = vld [vmem:[#allocation2 + $0x120] sm:$0xff]
        %v414 = vld [vmem:[#allocation2 + $0x128] sm:$0xff]
        %v415 = vld [vmem:[#allocation2 + $0x130] sm:$0xff]
        %v416 = vld [vmem:[#allocation2 + $0x138] sm:$0xff]
        %v417 = vld [vmem:[#allocation2 + $0x140] sm:$0xff]
        %v418 = vld [vmem:[#allocation2 + $0x148] sm:$0xff]
        %v419 = vld [vmem:[#allocation2 + $0x150] sm:$0xff]
        %v420 = vld [vmem:[#allocation2 + $0x158] sm:$0xff]
        %v421 = vld [vmem:[#allocation2 + $0x160] sm:$0xff]
        %v422 = vld [vmem:[#allocation2 + $0x168] sm:$0xff]
        %v423 = vld [vmem:[#allocation2 + $0x170] sm:$0xff]
        %v424 = vld [vmem:[#allocation2 + $0x178] sm:$0xff]
        %v425 = vld [vmem:[%s4] sm:$0x7]
        %v427 = vperm.slane %v425, 0
        %v428 = vperm.slane %v425, 1
        %v429 = vperm.slane %v425, 2
        %433 = vmatpush.msra.mxu0 %v422
        %434 = vmatpush.msra.mxu0 %v419
        %435 = vmatpush.msra.mxu0 %v416
        %436 = vmatpush.msra.mxu0 %v413
        %437 = vmatpush.msra.mxu0 %v410
        %438 = vmatpush.msra.mxu0 %v407
        %439 = vmatpush.msra.mxu0 %v404
        %440 = vmatpush.msra.mxu0 %v401
        %441 = vmatpush.msra.mxu0 %v398
        %442 = vmatpush.msra.mxu0 %v395
        %443 = vmatpush.msra.mxu0 %v392
        %444 = vmatpush.msra.mxu0 %v389
        %445 = vmatpush.msra.mxu0 %v386
        %446 = vmatpush.msra.mxu0 %v383
        %447 = vmatpush.msra.mxu0 %v380
        %448 = vmatpush.msra.mxu0 %v377
        %449 = vmatmul.f32.gmra.mxu0 %v375
        %v450 = vpop.f32.mrf.mxu0
        %v451 = vadd.f32 %v427, %v450
        %452 = vmatmul.f32.gmra.mxu0 %v376
        %v453 = vpop.f32.mrf.mxu0
        %v454 = vadd.f32 %v427, %v453
        %455 = vdwg.mxu0
        %456 = vmatpush.msra.mxu0 %v423
        %457 = vmatpush.msra.mxu0 %v420
        %458 = vmatpush.msra.mxu0 %v417
        %459 = vmatpush.msra.mxu0 %v414
        %460 = vmatpush.msra.mxu0 %v411
        %461 = vmatpush.msra.mxu0 %v408
        %462 = vmatpush.msra.mxu0 %v405
        %463 = vmatpush.msra.mxu0 %v402
        %464 = vmatpush.msra.mxu0 %v399
        %465 = vmatpush.msra.mxu0 %v396
        %466 = vmatpush.msra.mxu0 %v393
        %467 = vmatpush.msra.mxu0 %v390
        %468 = vmatpush.msra.mxu0 %v387
        %469 = vmatpush.msra.mxu0 %v384
        %470 = vmatpush.msra.mxu0 %v381
        %471 = vmatpush.msra.mxu0 %v378
        %472 = vmatmul.f32.gmra.mxu0 %v375
        %v473 = vpop.f32.mrf.mxu0
        %v474 = vadd.f32 %v428, %v473
        %475 = vmatmul.f32.gmra.mxu0 %v376
        %v476 = vpop.f32.mrf.mxu0
        %v477 = vadd.f32 %v428, %v476
        %478 = vdwg.mxu0
        %479 = vmatpush.msra.mxu0 %v424
        %480 = vmatpush.msra.mxu0 %v421
        %481 = vmatpush.msra.mxu0 %v418
        %482 = vmatpush.msra.mxu0 %v415
        %483 = vmatpush.msra.mxu0 %v412
        %484 = vmatpush.msra.mxu0 %v409
        %485 = vmatpush.msra.mxu0 %v406
        %486 = vmatpush.msra.mxu0 %v403
        %487 = vmatpush.msra.mxu0 %v400
        %488 = vmatpush.msra.mxu0 %v397
        %489 = vmatpush.msra.mxu0 %v394
        %490 = vmatpush.msra.mxu0 %v391
        %491 = vmatpush.msra.mxu0 %v388
        %492 = vmatpush.msra.mxu0 %v385
        %493 = vmatpush.msra.mxu0 %v382
        %494 = vmatpush.msra.mxu0 %v379
        %495 = vmatmul.f32.gmra.mxu0 %v375
        %v496 = vpop.f32.mrf.mxu0
        %v497 = vadd.f32 %v429, %v496
        %498 = vmatmul.f32.gmra.mxu0 %v376
        %v499 = vpop.f32.mrf.mxu0
        %v500 = vadd.f32 %v429, %v499
        %501 = vdwg.mxu0
        %v502 = vlaneseq
        %v503 = vshrl.u32 %v502, 7
        %v504 = vadd.s32 %v503, 8
        %v505 = vlaneseq
        %v506 = vand.u32 %v505, 127
        %vm507 = vcmp.le.s32.totalorder %v506, %v503
        %vm508 = vcmp.le.s32.totalorder %v506, %v504
        %vm509 = vcmask 261120
        %v511 = vsel %vm509, %v451, 0
        %v514 = vsel %vm509, %v454, 0
        %v517 = vsel %vm509, %v474, 0
        %v520 = vsel %vm509, %v477, 0
        %522 = vmatpush.xpose.msra.mxu0 0.0
        %523 = vmatpush.xpose.msra.mxu0 0.0
        %524 = vmatpush.xpose.msra.mxu0 0.0
        %525 = vmatpush.xpose.msra.mxu0 0.0
        %526 = vmatpush.xpose.msra.mxu0 0.0
        %527 = vmatpush.xpose.msra.mxu0 0.0
        %528 = vmatpush.xpose.msra.mxu0 0.0
        %529 = vmatpush.xpose.msra.mxu0 0.0
        %530 = vmatpush.xpose.msra.mxu0 0.0
        %531 = vmatpush.xpose.msra.mxu0 0.0
        %532 = vmatpush.xpose.msra.mxu0 0.0
        %533 = vmatpush.xpose.msra.mxu0 0.0
        %534 = vmatpush.xpose.msra.mxu0 0.0
        %535 = vmatpush.xpose.msra.mxu0 0.0
        %536 = vmatpush.xpose.msra.mxu0 %v520
        %537 = vmatpush.xpose.msra.mxu0 %v517
        %538 = vmatmul.f32.gmra.mxu0 %v511
        %v539 = vpop.f32.mrf.mxu0
        %v540 = vadd.f32 0.0, %v539
        %541 = vmatmul.f32.gmra.mxu0 %v514
        %v542 = vpop.f32.mrf.mxu0
        %v543 = vadd.f32 0.0, %v542
        %544 = vdwg.mxu0
        %v545 = vmul.f32 %v540, 0.17677669
        %v546 = vmul.f32 %v543, 0.17677669
        %v547 = vsel %vm507, %v545, -1e+30
        %v548 = vsel %vm508, %v546, -1e+30
        %vm549 = vcmask 130048
        %v550 = vsel %vm549, %v547, -inf
        %551 = vmax.xlane.f32.xlu0 %v550
        %v552 = vpop.xlane.xlu0 %551
        %v553 = vsel %vm549, %v548, -inf
        %554 = vmax.xlane.f32.xlu0 %v553
        %v555 = vpop.xlane.xlu0 %554
        %v556 = vsub.f32 %v547, %v552
        %v557 = vsub.f32 %v548, %v555
        %v558 = vmul.f32 %v556, 1.442695
        %v559 = vpow.pop %v558
        %v560 = vmul.f32 %v557, 1.442695
        %v561 = vpow.pop %v560
        %v562 = vsel %vm549, %v559, 0.0
        %563 = vadd.xlane.f32.xlu0 %v562
        %v564 = vpop.xlane.xlu0 %563
        %v565 = vsel %vm549, %v561, 0.0
        %566 = vadd.xlane.f32.xlu0 %v565
        %v567 = vpop.xlane.xlu0 %566
        %v568 = vrcp.pop %v564
        %v569 = vrcp.pop %v567
        %v570 = vmul.f32 %v559, %v568
        %v571 = vmul.f32 %v561, %v569
        %v573 = vsel %vm549, %v570, 0
        %v576 = vsel %vm549, %v571, 0
        %578 = vmatpush.msra.mxu0 0.0
        %579 = vmatpush.msra.mxu0 0.0
        %580 = vmatpush.msra.mxu0 0.0
        %581 = vmatpush.msra.mxu0 0.0
        %582 = vmatpush.msra.mxu0 0.0
        %583 = vmatpush.msra.mxu0 0.0
        %584 = vmatpush.msra.mxu0 0.0
        %585 = vmatpush.msra.mxu0 0.0
        %586 = vmatpush.msra.mxu0 0.0
        %587 = vmatpush.msra.mxu0 0.0
        %588 = vmatpush.msra.mxu0 0.0
        %589 = vmatpush.msra.mxu0 0.0
        %590 = vmatpush.msra.mxu0 0.0
        %591 = vmatpush.msra.mxu0 0.0
        %592 = vmatpush.msra.mxu0 %v500
        %593 = vmatpush.msra.mxu0 %v497
        %594 = vmatmul.f32.gmra.mxu0 %v573
        %v595 = vpop.f32.mrf.mxu0
        %v596 = vadd.f32 0.0, %v595
        %597 = vmatmul.f32.gmra.mxu0 %v576
        %v598 = vpop.f32.mrf.mxu0
        %v599 = vadd.f32 0.0, %v598
        %600 = vdwg.mxu0
        %601 = vrot.lane.b32.xlu0 %v451, 96
        %v602 = vpop.permute.xlu0 %601
        %603 = vrot.lane.b32.xlu0 %v454, 96
        %v604 = vpop.permute.xlu0 %603
        %605 = vrot.lane.b32.xlu0 %v474, 96
        %v606 = vpop.permute.xlu0 %605
        %607 = vrot.lane.b32.xlu0 %v477, 96
        %v608 = vpop.permute.xlu0 %607
        %v609 = vsel %vm509, %v602, 0
        %v611 = vsel %vm509, %v604, 0
        %v613 = vsel %vm509, %v606, 0
        %v615 = vsel %vm509, %v608, 0
        %617 = vmatpush.xpose.msra.mxu0 0.0
        %618 = vmatpush.xpose.msra.mxu0 0.0
        %619 = vmatpush.xpose.msra.mxu0 0.0
        %620 = vmatpush.xpose.msra.mxu0 0.0
        %621 = vmatpush.xpose.msra.mxu0 0.0
        %622 = vmatpush.xpose.msra.mxu0 0.0
        %623 = vmatpush.xpose.msra.mxu0 0.0
        %624 = vmatpush.xpose.msra.mxu0 0.0
        %625 = vmatpush.xpose.msra.mxu0 0.0
        %626 = vmatpush.xpose.msra.mxu0 0.0
        %627 = vmatpush.xpose.msra.mxu0 0.0
        %628 = vmatpush.xpose.msra.mxu0 0.0
        %629 = vmatpush.xpose.msra.mxu0 0.0
        %630 = vmatpush.xpose.msra.mxu0 0.0
        %631 = vmatpush.xpose.msra.mxu0 %v615
        %632 = vmatpush.xpose.msra.mxu0 %v613
        %633 = vmatmul.f32.gmra.mxu0 %v609
        %v634 = vpop.f32.mrf.mxu0
        %v635 = vadd.f32 0.0, %v634
        %636 = vmatmul.f32.gmra.mxu0 %v611
        %v637 = vpop.f32.mrf.mxu0
        %v638 = vadd.f32 0.0, %v637
        %639 = vdwg.mxu0
        %v640 = vmul.f32 %v635, 0.17677669
        %v641 = vmul.f32 %v638, 0.17677669
        %v642 = vsel %vm507, %v640, -1e+30
        %v643 = vsel %vm508, %v641, -1e+30
        %v644 = vsel %vm549, %v642, -inf
        %645 = vmax.xlane.f32.xlu0 %v644
        %v646 = vpop.xlane.xlu0 %645
        %v647 = vsel %vm549, %v643, -inf
        %648 = vmax.xlane.f32.xlu0 %v647
        %v649 = vpop.xlane.xlu0 %648
        %v650 = vsub.f32 %v642, %v646
        %v651 = vsub.f32 %v643, %v649
        %v652 = vmul.f32 %v650, 1.442695
        %v653 = vpow.pop %v652
        %v654 = vmul.f32 %v651, 1.442695
        %v655 = vpow.pop %v654
        %v656 = vsel %vm549, %v653, 0.0
        %657 = vadd.xlane.f32.xlu0 %v656
        %v658 = vpop.xlane.xlu0 %657
        %v659 = vsel %vm549, %v655, 0.0
        %660 = vadd.xlane.f32.xlu0 %v659
        %v661 = vpop.xlane.xlu0 %660
        %v662 = vrcp.pop %v658
        %v663 = vrcp.pop %v661
        %v664 = vmul.f32 %v653, %v662
        %v665 = vmul.f32 %v655, %v663
        %668 = vrot.lane.b32.xlu0 %v497, 96
        %v669 = vpop.permute.xlu0 %668
        %670 = vrot.lane.b32.xlu0 %v500, 96
        %v671 = vpop.permute.xlu0 %670
        %v675 = vsel %vm549, %v664, 0
        %v678 = vsel %vm549, %v665, 0
        %680 = vmatpush.msra.mxu0 0.0
        %681 = vmatpush.msra.mxu0 0.0
        %682 = vmatpush.msra.mxu0 0.0
        %683 = vmatpush.msra.mxu0 0.0
        %684 = vmatpush.msra.mxu0 0.0
        %685 = vmatpush.msra.mxu0 0.0
        %686 = vmatpush.msra.mxu0 0.0
        %687 = vmatpush.msra.mxu0 0.0
        %688 = vmatpush.msra.mxu0 0.0
        %689 = vmatpush.msra.mxu0 0.0
        %690 = vmatpush.msra.mxu0 0.0
        %691 = vmatpush.msra.mxu0 0.0
        %692 = vmatpush.msra.mxu0 0.0
        %693 = vmatpush.msra.mxu0 0.0
        %694 = vmatpush.msra.mxu0 %v671
        %695 = vmatpush.msra.mxu0 %v669
        %696 = vmatmul.f32.gmra.mxu0 %v675
        %v697 = vpop.f32.mrf.mxu0
        %v698 = vadd.f32 0.0, %v697
        %699 = vmatmul.f32.gmra.mxu0 %v678
        %v700 = vpop.f32.mrf.mxu0
        %v701 = vadd.f32 0.0, %v700
        %702 = vdwg.mxu0
        %703 = vrot.lane.b32.xlu0 %v451, 64
        %v704 = vpop.permute.xlu0 %703
        %705 = vrot.lane.b32.xlu0 %v454, 64
        %v706 = vpop.permute.xlu0 %705
        %707 = vrot.lane.b32.xlu0 %v474, 64
        %v708 = vpop.permute.xlu0 %707
        %709 = vrot.lane.b32.xlu0 %v477, 64
        %v710 = vpop.permute.xlu0 %709
        %v711 = vsel %vm509, %v704, 0
        %v713 = vsel %vm509, %v706, 0
        %v715 = vsel %vm509, %v708, 0
        %v717 = vsel %vm509, %v710, 0
        %719 = vmatpush.xpose.msra.mxu0 0.0
        %720 = vmatpush.xpose.msra.mxu0 0.0
        %721 = vmatpush.xpose.msra.mxu0 0.0
        %722 = vmatpush.xpose.msra.mxu0 0.0
        %723 = vmatpush.xpose.msra.mxu0 0.0
        %724 = vmatpush.xpose.msra.mxu0 0.0
        %725 = vmatpush.xpose.msra.mxu0 0.0
        %726 = vmatpush.xpose.msra.mxu0 0.0
        %727 = vmatpush.xpose.msra.mxu0 0.0
        %728 = vmatpush.xpose.msra.mxu0 0.0
        %729 = vmatpush.xpose.msra.mxu0 0.0
        %730 = vmatpush.xpose.msra.mxu0 0.0
        %731 = vmatpush.xpose.msra.mxu0 0.0
        %732 = vmatpush.xpose.msra.mxu0 0.0
        %733 = vmatpush.xpose.msra.mxu0 %v717
        %734 = vmatpush.xpose.msra.mxu0 %v715
        %735 = vmatmul.f32.gmra.mxu0 %v711
        %v736 = vpop.f32.mrf.mxu0
        %v737 = vadd.f32 0.0, %v736
        %738 = vmatmul.f32.gmra.mxu0 %v713
        %v739 = vpop.f32.mrf.mxu0
        %v740 = vadd.f32 0.0, %v739
        %741 = vdwg.mxu0
        %v742 = vmul.f32 %v737, 0.17677669
        %v743 = vmul.f32 %v740, 0.17677669
        %v744 = vsel %vm507, %v742, -1e+30
        %v745 = vsel %vm508, %v743, -1e+30
        %v746 = vsel %vm549, %v744, -inf
        %747 = vmax.xlane.f32.xlu0 %v746
        %v748 = vpop.xlane.xlu0 %747
        %v749 = vsel %vm549, %v745, -inf
        %750 = vmax.xlane.f32.xlu0 %v749
        %v751 = vpop.xlane.xlu0 %750
        %v752 = vsub.f32 %v744, %v748
        %v753 = vsub.f32 %v745, %v751
        %v754 = vmul.f32 %v752, 1.442695
        %v755 = vpow.pop %v754
        %v756 = vmul.f32 %v753, 1.442695
        %v757 = vpow.pop %v756
        %v758 = vsel %vm549, %v755, 0.0
        %759 = vadd.xlane.f32.xlu0 %v758
        %v760 = vpop.xlane.xlu0 %759
        %v761 = vsel %vm549, %v757, 0.0
        %762 = vadd.xlane.f32.xlu0 %v761
        %v763 = vpop.xlane.xlu0 %762
        %v764 = vrcp.pop %v760
        %v765 = vrcp.pop %v763
        %v766 = vmul.f32 %v755, %v764
        %v767 = vmul.f32 %v757, %v765
        %768 = vrot.lane.b32.xlu0 %v497, 64
        %v769 = vpop.permute.xlu0 %768
        %770 = vrot.lane.b32.xlu0 %v500, 64
        %v771 = vpop.permute.xlu0 %770
        %v775 = vsel %vm549, %v766, 0
        %v778 = vsel %vm549, %v767, 0
        %780 = vmatpush.msra.mxu0 0.0
        %781 = vmatpush.msra.mxu0 0.0
        %782 = vmatpush.msra.mxu0 0.0
        %783 = vmatpush.msra.mxu0 0.0
        %784 = vmatpush.msra.mxu0 0.0
        %785 = vmatpush.msra.mxu0 0.0
        %786 = vmatpush.msra.mxu0 0.0
        %787 = vmatpush.msra.mxu0 0.0
        %788 = vmatpush.msra.mxu0 0.0
        %789 = vmatpush.msra.mxu0 0.0
        %790 = vmatpush.msra.mxu0 0.0
        %791 = vmatpush.msra.mxu0 0.0
        %792 = vmatpush.msra.mxu0 0.0
        %793 = vmatpush.msra.mxu0 0.0
        %794 = vmatpush.msra.mxu0 %v771
        %795 = vmatpush.msra.mxu0 %v769
        %796 = vmatmul.f32.gmra.mxu0 %v775
        %v797 = vpop.f32.mrf.mxu0
        %v798 = vadd.f32 0.0, %v797
        %799 = vmatmul.f32.gmra.mxu0 %v778
        %v800 = vpop.f32.mrf.mxu0
        %v801 = vadd.f32 0.0, %v800
        %802 = vdwg.mxu0
        %803 = vrot.lane.b32.xlu0 %v451, 32
        %v804 = vpop.permute.xlu0 %803
        %805 = vrot.lane.b32.xlu0 %v454, 32
        %v806 = vpop.permute.xlu0 %805
        %807 = vrot.lane.b32.xlu0 %v474, 32
        %v808 = vpop.permute.xlu0 %807
        %809 = vrot.lane.b32.xlu0 %v477, 32
        %v810 = vpop.permute.xlu0 %809
        %v811 = vsel %vm509, %v804, 0
        %v813 = vsel %vm509, %v806, 0
        %v815 = vsel %vm509, %v808, 0
        %v817 = vsel %vm509, %v810, 0
        %819 = vmatpush.xpose.msra.mxu0 0.0
        %820 = vmatpush.xpose.msra.mxu0 0.0
        %821 = vmatpush.xpose.msra.mxu0 0.0
        %822 = vmatpush.xpose.msra.mxu0 0.0
        %823 = vmatpush.xpose.msra.mxu0 0.0
        %824 = vmatpush.xpose.msra.mxu0 0.0
        %825 = vmatpush.xpose.msra.mxu0 0.0
        %826 = vmatpush.xpose.msra.mxu0 0.0
        %827 = vmatpush.xpose.msra.mxu0 0.0
        %828 = vmatpush.xpose.msra.mxu0 0.0
        %829 = vmatpush.xpose.msra.mxu0 0.0
        %830 = vmatpush.xpose.msra.mxu0 0.0
        %831 = vmatpush.xpose.msra.mxu0 0.0
        %832 = vmatpush.xpose.msra.mxu0 0.0
        %833 = vmatpush.xpose.msra.mxu0 %v817
        %834 = vmatpush.xpose.msra.mxu0 %v815
        %835 = vmatmul.f32.gmra.mxu0 %v811
        %v836 = vpop.f32.mrf.mxu0
        %v837 = vadd.f32 0.0, %v836
        %838 = vmatmul.f32.gmra.mxu0 %v813
        %v839 = vpop.f32.mrf.mxu0
        %v840 = vadd.f32 0.0, %v839
        %841 = vdwg.mxu0
        %v842 = vmul.f32 %v837, 0.17677669
        %v843 = vmul.f32 %v840, 0.17677669
        %v844 = vsel %vm507, %v842, -1e+30
        %v845 = vsel %vm508, %v843, -1e+30
        %v846 = vsel %vm549, %v844, -inf
        %847 = vmax.xlane.f32.xlu0 %v846
        %v848 = vpop.xlane.xlu0 %847
        %v849 = vsel %vm549, %v845, -inf
        %850 = vmax.xlane.f32.xlu0 %v849
        %v851 = vpop.xlane.xlu0 %850
        %v852 = vsub.f32 %v844, %v848
        %v853 = vsub.f32 %v845, %v851
        %v854 = vmul.f32 %v852, 1.442695
        %v855 = vpow.pop %v854
        %v856 = vmul.f32 %v853, 1.442695
        %v857 = vpow.pop %v856
        %v858 = vsel %vm549, %v855, 0.0
        %859 = vadd.xlane.f32.xlu0 %v858
        %v860 = vpop.xlane.xlu0 %859
        %v861 = vsel %vm549, %v857, 0.0
        %862 = vadd.xlane.f32.xlu0 %v861
        %v863 = vpop.xlane.xlu0 %862
        %v864 = vrcp.pop %v860
        %v865 = vrcp.pop %v863
        %v866 = vmul.f32 %v855, %v864
        %v867 = vmul.f32 %v857, %v865
        %868 = vrot.lane.b32.xlu0 %v497, 32
        %v869 = vpop.permute.xlu0 %868
        %870 = vrot.lane.b32.xlu0 %v500, 32
        %v871 = vpop.permute.xlu0 %870
        %v875 = vsel %vm549, %v866, 0
        %v878 = vsel %vm549, %v867, 0
        %880 = vmatpush.msra.mxu0 0.0
        %881 = vmatpush.msra.mxu0 0.0
        %882 = vmatpush.msra.mxu0 0.0
        %883 = vmatpush.msra.mxu0 0.0
        %884 = vmatpush.msra.mxu0 0.0
        %885 = vmatpush.msra.mxu0 0.0
        %886 = vmatpush.msra.mxu0 0.0
        %887 = vmatpush.msra.mxu0 0.0
        %888 = vmatpush.msra.mxu0 0.0
        %889 = vmatpush.msra.mxu0 0.0
        %890 = vmatpush.msra.mxu0 0.0
        %891 = vmatpush.msra.mxu0 0.0
        %892 = vmatpush.msra.mxu0 0.0
        %893 = vmatpush.msra.mxu0 0.0
        %894 = vmatpush.msra.mxu0 %v871
        %895 = vmatpush.msra.mxu0 %v869
        %896 = vmatmul.f32.gmra.mxu0 %v875
        %v897 = vpop.f32.mrf.mxu0
        %v898 = vadd.f32 0.0, %v897
        %899 = vmatmul.f32.gmra.mxu0 %v878
        %v900 = vpop.f32.mrf.mxu0
        %v901 = vadd.f32 0.0, %v900
        %902 = vdwg.mxu0
        %905 = vrot.lane.b32.xlu0 %v698, 32
        %v906 = vpop.permute.xlu0 %905
        %907 = vrot.lane.b32.xlu0 %v701, 32
        %v908 = vpop.permute.xlu0 %907
        %913 = vrot.lane.b32.xlu0 %v798, 64
        %v914 = vpop.permute.xlu0 %913
        %915 = vrot.lane.b32.xlu0 %v801, 64
        %v916 = vpop.permute.xlu0 %915
        %921 = vrot.lane.b32.xlu0 %v898, 96
        %v922 = vpop.permute.xlu0 %921
        %923 = vrot.lane.b32.xlu0 %v901, 96
        %v924 = vpop.permute.xlu0 %923
        %v927 = vsel %vm509, %v596, %v906
        %v928 = vsel %vm509, %v599, %v908
        %vm929 = vcmask 523264
        %v930 = vsel %vm929, %v927, %v914
        %v931 = vsel %vm929, %v928, %v916
        %vm932 = vcmask 785408
        %v933 = vsel %vm932, %v930, %v922
        %v934 = vsel %vm932, %v931, %v924
        %v935 = vld [vmem:[#allocation4] sm:$0xff]
        %v936 = vld [vmem:[#allocation4 + $0x8] sm:$0xff]
        %v937 = vld [vmem:[#allocation4 + $0x10] sm:$0xff]
        %v938 = vld [vmem:[#allocation4 + $0x18] sm:$0xff]
        %v939 = vld [vmem:[#allocation4 + $0x20] sm:$0xff]
        %v940 = vld [vmem:[#allocation4 + $0x28] sm:$0xff]
        %v941 = vld [vmem:[#allocation4 + $0x30] sm:$0xff]
        %v942 = vld [vmem:[#allocation4 + $0x38] sm:$0xff]
        %v943 = vld [vmem:[#allocation4 + $0x40] sm:$0xff]
        %v944 = vld [vmem:[#allocation4 + $0x48] sm:$0xff]
        %v945 = vld [vmem:[#allocation4 + $0x50] sm:$0xff]
        %v946 = vld [vmem:[#allocation4 + $0x58] sm:$0xff]
        %v947 = vld [vmem:[#allocation4 + $0x60] sm:$0xff]
        %v948 = vld [vmem:[#allocation4 + $0x68] sm:$0xff]
        %v949 = vld [vmem:[#allocation4 + $0x70] sm:$0xff]
        %v950 = vld [vmem:[#allocation4 + $0x78] sm:$0xff]
        %v951 = vld [vmem:[%s6] sm:$0x1]
        %v953 = vperm.slane %v951, 0
        %955 = vmatpush.msra.mxu0 %v950
        %956 = vmatpush.msra.mxu0 %v949
        %957 = vmatpush.msra.mxu0 %v948
        %958 = vmatpush.msra.mxu0 %v947
        %959 = vmatpush.msra.mxu0 %v946
        %960 = vmatpush.msra.mxu0 %v945
        %961 = vmatpush.msra.mxu0 %v944
        %962 = vmatpush.msra.mxu0 %v943
        %963 = vmatpush.msra.mxu0 %v942
        %964 = vmatpush.msra.mxu0 %v941
        %965 = vmatpush.msra.mxu0 %v940
        %966 = vmatpush.msra.mxu0 %v939
        %967 = vmatpush.msra.mxu0 %v938
        %968 = vmatpush.msra.mxu0 %v937
        %969 = vmatpush.msra.mxu0 %v936
        %970 = vmatpush.msra.mxu0 %v935
        %971 = vmatmul.f32.gmra.mxu0 %v933
        %v972 = vpop.f32.mrf.mxu0
        %v973 = vadd.f32 %v953, %v972
        %974 = vmatmul.f32.gmra.mxu0 %v934
        %v975 = vpop.f32.mrf.mxu0
        %v976 = vadd.f32 %v953, %v975
        %977 = vdwg.mxu0
        %v978 = vadd.f32 %v973, %v316
        %v979 = vadd.f32 %v976, %v317
        %980 = vst [vmem:[%s314] sm:$0xff] %v978
        %981 = vst [vmem:[%s314 + $0x8] sm:$0xff] %v979
        %s982 = smul.u32 2, %s20
        %p983 = scmp.lt.s32.totalorder %s982, 3
        %s984 = scalar_select %p983, %s982, 3
        %s985 = smul.addr %s984, 8
        %s986 = scalar_lea.vmem %s7, %s985
        // Predicated region
        $region57: #{transformer_forward.9} parent=47 // pred_check
          %p987 = pneg %p190
        $region58: #{transformer_forward.9} parent=47 // pred_check_branch
          %989 = sbr.rel (%p987) target = $region60
        $region59: #{transformer_forward.9} parent=47 // pred_region
          %s990 = smul.u32 2, %s20
        $region60: #{transformer_forward.9} parent=47 // pred_fallthru
          _
      $region48: #{transformer_forward.9} parent=5 // pred_fallthru
        _
      %p991 = scmp.le.s32.totalorder 2, %s15
      // Predicated region
      $region61: #{transformer_forward.9} parent=5 // pred_check
        %p992 = pneg %p991
      $region62: #{transformer_forward.9} parent=5 // pred_check_branch
        %994 = sbr.rel (%p992) target = $region64
      $region63: #{transformer_forward.9} parent=5 // pred_region
        %s995 = ssub.s32 %s15, 2
        // Predicated region
        $region65: #{transformer_forward.9} parent=63 // pred_check
          %p996 = pneg %p196
        $region66: #{transformer_forward.9} parent=63 // pred_check_branch
          %998 = sbr.rel (%p996) target = $region68
        $region67: #{transformer_forward.9} parent=63 // pred_region
          %s999 = smul.u32 2, %s21
          %p1000 = scmp.lt.s32.totalorder %s999, 3
          %s1001 = scalar_select %p1000, %s999, 3
          %s1002 = smul.addr %s1001, 8
          %s1003 = scalar_lea.vmem %s7, %s1002
        $region68: #{transformer_forward.9} parent=63 // pred_fallthru
          _
      $region64: #{transformer_forward.9} parent=5 // pred_fallthru
        _
    $region6: #{transformer_forward.9} parent=1 // loop_footer
      %s19 = sadd.s32 1, %s15
    $region7: #{transformer_forward.9} parent=1 // loop_footer_branch
      %14 = sbr.rel target = $region3
    $region8: #{transformer_forward.9} parent=1 // loop_exit
      _
    %1004 = vsyncpa [#allocation3], 1
    %s1005 = scalar_lea.sflag [#allocation3], 1
    %1006 = vsyncpa %s1005, 1
    %1007 = vsyncpa [#allocation5], 1

// kernel: transformer_forward.7
$region0: #{transformer_forward.7}
  #allocation0 [shape = 'u32[]', space=smem, size = 0x4, offset = 0x4, fixed_abs, tag = 'smem constant byte address 0x4 - core index']
  #allocation1 [shape = 'u32[72,128]{1,0:T(1,128)}', space=vmem, size = 0x9000, scoped, tag = 'internal scratch']
  %s0 = inlined_call_operand.vmem [shape: f32[32,128], index: 0, kind: input, shape index: {}]
  %s1 = inlined_call_operand.vmem [shape: f32[1,128], index: 1, kind: input, shape index: {}]
  %s2 = inlined_call_operand.vmem [shape: f32[1,128], index: 2, kind: input, shape index: {}]
  %s3 = inlined_call_operand.vmem [shape: f32[128,384], index: 3, kind: input, shape index: {}]
  %s4 = inlined_call_operand.vmem [shape: f32[1,384], index: 4, kind: input, shape index: {}]
  %s5 = inlined_call_operand.hbm [shape: f32[128,128], index: 5, kind: input, shape index: {}]
  %s6 = inlined_call_operand.vmem [shape: f32[1,128], index: 6, kind: input, shape index: {}]
  %s7 = inlined_call_operand.vmem [shape: f32[32,128], index: 7, kind: output, shape index: {}]
  %s8 = sld [smem:[#allocation0]]
  $region65: #{transformer_forward.7} parent=0
    _
  %s10 = ssub.s32 1, %s8
  %s11 = scalar_select 0, %s10, %s8
  $region1: #{transformer_forward.7} parent=0
    #allocation2 [shape = 'u8[65536]{0}', space=vmem, size = 0x10000, scoped, tag = 'input window, operand 5, single buffered']
    #allocation3 [shape = 's32[2]{0}', space=sflag, size = 0x8, scoped, tag = 'scoped memory for transformer_forward.7']
    %12 = vsyncpa [#allocation3], 0
    loop: start=0, step=1, limit=4
    $region2: #{transformer_forward.7} parent=1 // loop_pre_header
      _
    $region3: #{transformer_forward.7} parent=1 // loop_header
      %s14 = sphi 0, %s18
      %p15 = scmp.ge.s32.totalorder %s14, 4
      %s24 = sphi 0, %s26
      %s27 = sphi 0, %s24
      %s28 = sphi 0, %s27
      %s44 = sphi 0, %s28
      %s48 = sphi 0, %s48
      %s50 = sphi 0, %s48
      %s51 = sphi 0, %s50
      %s65 = sphi 0, %s51
      %s69 = sphi 0, %s69
      %s71 = sphi 0, %s69
      %s72 = sphi 0, %s71
      %s86 = sphi 0, %s72
      %s90 = sphi 0, %s90
      %s92 = sphi 0, %s90
      %s93 = sphi 0, %s92
      %s107 = sphi 0, %s93
      %s111 = sphi 0, %s111
      %s113 = sphi 0, %s111
      %s114 = sphi 0, %s113
      %s128 = sphi 0, %s114
      %s132 = sphi 0, %s132
      %s134 = sphi 0, %s132
      %s135 = sphi 0, %s134
      %s149 = sphi 0, %s135
      %s153 = sphi 0, %s153
      %s155 = sphi 0, %s153
      %s156 = sphi 0, %s155
      %s170 = sphi 0, %s156
      %s176 = sphi 0, %s178
      %s179 = sphi 0, %s176
      %s180 = sphi 0, %s179
      %s196 = sphi 0, %s180
    $region4: #{transformer_forward.7} parent=1 // loop_header_branch
      %17 = sbr.rel (%p15) target = $region8
    $region5: #{transformer_forward.7} parent=1 // loop_body
      %s19 = ssub.s32 %s14, 1
      %s20 = ssub.s32 %s14, 2
      %s21 = sadd.s32 %s14, 1
      %s22 = ssub.s32 %s14, %s21
      %p23 = scmp.eq.s32.totalorder %s22, 0
      %s25 = sadd.s32 %s24, 1
      %s26 = scalar_select %p23, %s24, %s25
      %p29 = pneg %p23
      %p30 = scmp.eq.s32.totalorder %s14, 1
      %p31 = por %p29, %p30
      %p32 = scmp.ne.s32.totalorder %s24, %s27
      %p33 = scmp.eq.s32.totalorder %s14, 0
      %p34 = por %p32, %p33
      %p35 = scmp.ne.s32.totalorder %s24, %s27
      %p36 = scmp.eq.s32.totalorder %s19, 1
      %p37 = por %p35, %p36
      %p38 = scmp.ne.s32.totalorder %s27, %s28
      %p39 = scmp.eq.s32.totalorder %s19, 0
      %p40 = por %p38, %p39
      %p41 = scmp.ne.s32.totalorder %s27, %s28
      %p42 = scmp.eq.s32.totalorder %s20, 1
      %p43 = por %p41, %p42
      %p45 = scmp.ne.s32.totalorder %s28, %s44
      %p46 = scmp.eq.s32.totalorder %s20, 0
      %p47 = por %p45, %p46
      %s49 = sadd.s32 %s48, 1
      %p52 = scmp.eq.s32.totalorder %s14, 1
      %p53 = scmp.ne.s32.totalorder %s48, %s50
      %p54 = scmp.eq.s32.totalorder %s14, 0
      %p55 = por %p53, %p54
      %p56 = scmp.ne.s32.totalorder %s48, %s50
      %p57 = scmp.eq.s32.totalorder %s19, 1
      %p58 = por %p56, %p57
      %p59 = scmp.ne.s32.totalorder %s50, %s51
      %p60 = scmp.eq.s32.totalorder %s19, 0
      %p61 = por %p59, %p60
      %p62 = scmp.ne.s32.totalorder %s50, %s51
      %p63 = scmp.eq.s32.totalorder %s20, 1
      %p64 = por %p62, %p63
      %p66 = scmp.ne.s32.totalorder %s51, %s65
      %p67 = scmp.eq.s32.totalorder %s20, 0
      %p68 = por %p66, %p67
      %s70 = sadd.s32 %s69, 1
      %p73 = scmp.eq.s32.totalorder %s14, 1
      %p74 = scmp.ne.s32.totalorder %s69, %s71
      %p75 = scmp.eq.s32.totalorder %s14, 0
      %p76 = por %p74, %p75
      %p77 = scmp.ne.s32.totalorder %s69, %s71
      %p78 = scmp.eq.s32.totalorder %s19, 1
      %p79 = por %p77, %p78
      %p80 = scmp.ne.s32.totalorder %s71, %s72
      %p81 = scmp.eq.s32.totalorder %s19, 0
      %p82 = por %p80, %p81
      %p83 = scmp.ne.s32.totalorder %s71, %s72
      %p84 = scmp.eq.s32.totalorder %s20, 1
      %p85 = por %p83, %p84
      %p87 = scmp.ne.s32.totalorder %s72, %s86
      %p88 = scmp.eq.s32.totalorder %s20, 0
      %p89 = por %p87, %p88
      %s91 = sadd.s32 %s90, 1
      %p94 = scmp.eq.s32.totalorder %s14, 1
      %p95 = scmp.ne.s32.totalorder %s90, %s92
      %p96 = scmp.eq.s32.totalorder %s14, 0
      %p97 = por %p95, %p96
      %p98 = scmp.ne.s32.totalorder %s90, %s92
      %p99 = scmp.eq.s32.totalorder %s19, 1
      %p100 = por %p98, %p99
      %p101 = scmp.ne.s32.totalorder %s92, %s93
      %p102 = scmp.eq.s32.totalorder %s19, 0
      %p103 = por %p101, %p102
      %p104 = scmp.ne.s32.totalorder %s92, %s93
      %p105 = scmp.eq.s32.totalorder %s20, 1
      %p106 = por %p104, %p105
      %p108 = scmp.ne.s32.totalorder %s93, %s107
      %p109 = scmp.eq.s32.totalorder %s20, 0
      %p110 = por %p108, %p109
      %s112 = sadd.s32 %s111, 1
      %p115 = scmp.eq.s32.totalorder %s14, 1
      %p116 = scmp.ne.s32.totalorder %s111, %s113
      %p117 = scmp.eq.s32.totalorder %s14, 0
      %p118 = por %p116, %p117
      %p119 = scmp.ne.s32.totalorder %s111, %s113
      %p120 = scmp.eq.s32.totalorder %s19, 1
      %p121 = por %p119, %p120
      %p122 = scmp.ne.s32.totalorder %s113, %s114
      %p123 = scmp.eq.s32.totalorder %s19, 0
      %p124 = por %p122, %p123
      %p125 = scmp.ne.s32.totalorder %s113, %s114
      %p126 = scmp.eq.s32.totalorder %s20, 1
      %p127 = por %p125, %p126
      %p129 = scmp.ne.s32.totalorder %s114, %s128
      %p130 = scmp.eq.s32.totalorder %s20, 0
      %p131 = por %p129, %p130
      %s133 = sadd.s32 %s132, 1
      %p136 = scmp.eq.s32.totalorder %s14, 1
      %p137 = scmp.ne.s32.totalorder %s132, %s134
      %p138 = scmp.eq.s32.totalorder %s14, 0
      %p139 = por %p137, %p138
      %p140 = scmp.ne.s32.totalorder %s132, %s134
      %p141 = scmp.eq.s32.totalorder %s19, 1
      %p142 = por %p140, %p141
      %p143 = scmp.ne.s32.totalorder %s134, %s135
      %p144 = scmp.eq.s32.totalorder %s19, 0
      %p145 = por %p143, %p144
      %p146 = scmp.ne.s32.totalorder %s134, %s135
      %p147 = scmp.eq.s32.totalorder %s20, 1
      %p148 = por %p146, %p147
      %p150 = scmp.ne.s32.totalorder %s135, %s149
      %p151 = scmp.eq.s32.totalorder %s20, 0
      %p152 = por %p150, %p151
      %s154 = sadd.s32 %s153, 1
      %p157 = scmp.eq.s32.totalorder %s14, 1
      %p158 = scmp.ne.s32.totalorder %s153, %s155
      %p159 = scmp.eq.s32.totalorder %s14, 0
      %p160 = por %p158, %p159
      %p161 = scmp.ne.s32.totalorder %s153, %s155
      %p162 = scmp.eq.s32.totalorder %s19, 1
      %p163 = por %p161, %p162
      %p164 = scmp.ne.s32.totalorder %s155, %s156
      %p165 = scmp.eq.s32.totalorder %s19, 0
      %p166 = por %p164, %p165
      %p167 = scmp.ne.s32.totalorder %s155, %s156
      %p168 = scmp.eq.s32.totalorder %s20, 1
      %p169 = por %p167, %p168
      %p171 = scmp.ne.s32.totalorder %s156, %s170
      %p172 = scmp.eq.s32.totalorder %s20, 0
      %p173 = por %p171, %p172
      %s174 = ssub.s32 %s14, %s21
      %p175 = scmp.eq.s32.totalorder %s174, 0
      %s177 = sadd.s32 %s176, 1
      %s178 = scalar_select %p175, %s176, %s177
      %p181 = pneg %p175
      %p182 = scmp.eq.s32.totalorder %s14, 1
      %p183 = por %p181, %p182
      %p184 = scmp.ne.s32.totalorder %s176, %s179
      %p185 = scmp.eq.s32.totalorder %s14, 0
      %p186 = por %p184, %p185
      %p187 = scmp.ne.s32.totalorder %s176, %s179
      %p188 = scmp.eq.s32.totalorder %s19, 1
      %p189 = por %p187, %p188
      %p190 = scmp.ne.s32.totalorder %s179, %s180
      %p191 = scmp.eq.s32.totalorder %s19, 0
      %p192 = por %p190, %p191
      %p193 = scmp.ne.s32.totalorder %s179, %s180
      %p194 = scmp.eq.s32.totalorder %s20, 1
      %p195 = por %p193, %p194
      %p197 = scmp.ne.s32.totalorder %s180, %s196
      %p198 = scmp.eq.s32.totalorder %s20, 0
      %p199 = por %p197, %p198
      %p200 = scmp.le.s32.totalorder 1, %s14
      %p201 = scmp.lt.s32.totalorder %s14, 3
      %p202 = pnand %p200, %p201
      %p203 = pneg %p202
      // Predicated region
      $region9: #{transformer_forward.7} parent=5 // pred_check
        _
      $region10: #{transformer_forward.7} parent=5 // pred_check_branch
        %205 = sbr.rel (%p202) target = $region12
      $region11: #{transformer_forward.7} parent=5 // pred_region
        %s206 = ssub.s32 %s14, 1
        // Predicated region
        $region13: #{transformer_forward.7} parent=11 // pred_check
          %p207 = pneg %p61
        $region14: #{transformer_forward.7} parent=11 // pred_check_branch
          %209 = sbr.rel (%p207) target = $region16
        $region15: #{transformer_forward.7} parent=11 // pred_region
          _
        $region16: #{transformer_forward.7} parent=11 // pred_fallthru
          _
        // Predicated region
        $region17: #{transformer_forward.7} parent=11 // pred_check
          %p210 = pneg %p82
        $region18: #{transformer_forward.7} parent=11 // pred_check_branch
          %212 = sbr.rel (%p210) target = $region20
        $region19: #{transformer_forward.7} parent=11 // pred_region
          _
        $region20: #{transformer_forward.7} parent=11 // pred_fallthru
          _
        // Predicated region
        $region21: #{transformer_forward.7} parent=11 // pred_check
          %p213 = pneg %p103
        $region22: #{transformer_forward.7} parent=11 // pred_check_branch
          %215 = sbr.rel (%p213) target = $region24
        $region23: #{transformer_forward.7} parent=11 // pred_region
          _
        $region24: #{transformer_forward.7} parent=11 // pred_fallthru
          _
        // Predicated region
        $region25: #{transformer_forward.7} parent=11 // pred_check
          %p216 = pneg %p124
        $region26: #{transformer_forward.7} parent=11 // pred_check_branch
          %218 = sbr.rel (%p216) target = $region28
        $region27: #{transformer_forward.7} parent=11 // pred_region
          _
        $region28: #{transformer_forward.7} parent=11 // pred_fallthru
          _
        // Predicated region
        $region29: #{transformer_forward.7} parent=11 // pred_check
          %p219 = pneg %p145
        $region30: #{transformer_forward.7} parent=11 // pred_check_branch
          %221 = sbr.rel (%p219) target = $region32
        $region31: #{transformer_forward.7} parent=11 // pred_region
          %223 = vsyncadd [#allocation3], 0
          %s224 = sshll.u32 %s5, 4
          %s225 = int_to_ptr.hbm [resolvable:$true] %s224
          %s226 = sshll.u32 [#allocation2], 4
          %s227 = int_to_ptr.vmem [resolvable:$true] %s226
          %232 = dma.hbm_to_vmem [thread:$0]  %s225, 2048, %s227, [#allocation3], 128, 128, 8
        $region32: #{transformer_forward.7} parent=11 // pred_fallthru
          _
        // Predicated region
        $region33: #{transformer_forward.7} parent=11 // pred_check
          %p233 = pneg %p166
        $region34: #{transformer_forward.7} parent=11 // pred_check_branch
          %235 = sbr.rel (%p233) target = $region36
        $region35: #{transformer_forward.7} parent=11 // pred_region
          _
        $region36: #{transformer_forward.7} parent=11 // pred_fallthru
          _
      $region12: #{transformer_forward.7} parent=5 // pred_fallthru
        _
      %p236 = scmp.lt.s32.totalorder %s14, 2
      // Predicated region
      $region37: #{transformer_forward.7} parent=5 // pred_check
        %p237 = pneg %p236
      $region38: #{transformer_forward.7} parent=5 // pred_check_branch
        %239 = sbr.rel (%p237) target = $region40
      $region39: #{transformer_forward.7} parent=5 // pred_region
        // Predicated region
        $region41: #{transformer_forward.7} parent=39 // pred_check
          %p240 = pneg %p34
        $region42: #{transformer_forward.7} parent=39 // pred_check_branch
          %242 = sbr.rel (%p240) target = $region44
        $region43: #{transformer_forward.7} parent=39 // pred_region
          %s243 = smul.u32 2, %s14
          %p244 = scmp.lt.s32.totalorder %s243, 3
          %s245 = scalar_select %p244, %s243, 3
          %s246 = smul.addr %s245, 8
          %s247 = scalar_lea.vmem %s0, %s246
          %s248 = smul.u32 2, %s14
        $region44: #{transformer_forward.7} parent=39 // pred_fallthru
          _
      $region40: #{transformer_forward.7} parent=5 // pred_fallthru
        _
      %p249 = scmp.le.s32.totalorder 1, %s14
      %p250 = scmp.lt.s32.totalorder %s14, 3
      %p251 = pnand %p249, %p250
      %p252 = pneg %p251
      // Predicated region
      $region45: #{transformer_forward.7} parent=5 // pred_check
        _
      $region46: #{transformer_forward.7} parent=5 // pred_check_branch
        %254 = sbr.rel (%p251) target = $region48
      $region47: #{transformer_forward.7} parent=5 // pred_region
        %s255 = ssub.s32 %s14, 1
        // Predicated region
        $region49: #{transformer_forward.7} parent=47 // pred_check
          %p256 = pneg %p145
        $region50: #{transformer_forward.7} parent=47 // pred_check_branch
          %258 = sbr.rel (%p256) target = $region52
        $region51: #{transformer_forward.7} parent=47 // pred_region
          %260 = dma.done [#allocation3], 2048
        $region52: #{transformer_forward.7} parent=47 // pred_fallthru
          _
        %s261 = smul.u32 2, %s19
        %p262 = scmp.lt.s32.totalorder %s261, 3
        %s263 = scalar_select %p262, %s261, 3
        %s264 = smul.addr %s263, 8
        %s265 = scalar_lea.vmem %s0, %s264
        %p266 = pneg %p40
        %p267 = pneg %p37
        %p268 = pneg %p61
        %p269 = pneg %p58
        %p270 = pneg %p82
        %p271 = pneg %p79
        %p272 = pneg %p103
        %p273 = pneg %p100
        %p274 = pneg %p124
        %p275 = pneg %p121
        %p276 = pneg %p145
        %p277 = pneg %p142
        %p278 = pneg %p166
        %p279 = pneg %p163
        %p280 = pneg %p192
        %p281 = pneg %p189
        %s282 = smul.u32 2, %s19
        %p283 = scmp.lt.s32.totalorder %s282, 3
        %s284 = scalar_select %p283, %s282, 3
        %s285 = smul.addr %s284, 8
        %s286 = scalar_lea.vmem %s7, %s285
        %s287 = smul.u32 2, %s19
        %p288 = scmp.lt.s32.totalorder %s287, 3
        %s289 = scalar_select %p288, %s287, 3
        %s290 = smul.addr %s289, 8
        %s291 = scalar_lea.vmem %s0, %s290
        %s292 = smul.u32 2, %s19
        %s293 = smul.u32 2, %s19
        %p294 = scmp.lt.s32.totalorder %s293, 3
        %s295 = scalar_select %p294, %s293, 3
        %s296 = smul.addr %s295, 8
        %s297 = scalar_lea.vmem %s7, %s296
        %s298 = smul.u32 2, %s19
        %v299 = vld [vmem:[%s291] sm:$0xff]
        %v300 = vld [vmem:[%s291 + $0x8] sm:$0xff]
        %v301 = vld [vmem:[%s1] sm:$0x1]
        %v302 = vld [vmem:[%s2] sm:$0x1]
        %303 = vadd.xlane.f32.xlu0 %v299
        %v304 = vpop.xlane.xlu0 %303
        %305 = vadd.xlane.f32.xlu0 %v300
        %v306 = vpop.xlane.xlu0 %305
        %v307 = vrcp.pop 128.0
        %v308 = vmul.f32 128.0, %v307
        %v309 = vsub.f32 1.0, %v308
        %v310 = vmul.f32 %v307, %v309
        %v311 = vadd.f32 %v307, %v310
        %vm312 = vweird.f32 %v307
        %v313 = vsel %vm312, %v307, %v311
        %v314 = vmul.f32 %v304, %v313
        %v315 = vmul.f32 %v306, %v313
        %v316 = vsub.f32 %v299, %v314
        %v317 = vsub.f32 %v300, %v315
        %v318 = vmul.f32 %v316, %v316
        %v319 = vmul.f32 %v317, %v317
        %320 = vadd.xlane.f32.xlu0 %v318
        %v321 = vpop.xlane.xlu0 %320
        %322 = vadd.xlane.f32.xlu0 %v319
        %v323 = vpop.xlane.xlu0 %322
        %v324 = vmul.f32 %v321, %v313
        %v325 = vmul.f32 %v323, %v313
        %v326 = vadd.f32 %v324, 1e-12
        %v327 = vadd.f32 %v325, 1e-12
        %v328 = vrsqrt.pop %v326
        %v329 = vmul.f32 %v328, %v326
        %v330 = vmul.f32 %v329, %v328
        %v331 = vmul.f32 0.5, %v330
        %v332 = vsub.f32 1.5, %v331
        %v333 = vmul.f32 %v328, %v332
        %vm334 = vweird.f32 %v326
        %vm335 = vweird.f32 %v328
        %vm336 = vmor %vm334, %vm335
        %v337 = vsel %vm336, %v328, %v333
        %v338 = vrsqrt.pop %v327
        %v339 = vmul.f32 %v338, %v327
        %v340 = vmul.f32 %v339, %v338
        %v341 = vmul.f32 0.5, %v340
        %v342 = vsub.f32 1.5, %v341
        %v343 = vmul.f32 %v338, %v342
        %vm344 = vweird.f32 %v327
        %vm345 = vweird.f32 %v338
        %vm346 = vmor %vm344, %vm345
        %v347 = vsel %vm346, %v338, %v343
        %v348 = vmul.f32 %v316, %v337
        %v349 = vmul.f32 %v317, %v347
        %v351 = vperm.slane %v301, 0
        %v353 = vmul.f32 %v348, %v351
        %v354 = vmul.f32 %v349, %v351
        %v356 = vperm.slane %v302, 0
        %v358 = vadd.f32 %v353, %v356
        %v359 = vadd.f32 %v354, %v356
        %v360 = vld [vmem:[%s3] sm:$0xff]
        %v361 = vld [vmem:[%s3 + $0x8] sm:$0xff]
        %v362 = vld [vmem:[%s3 + $0x10] sm:$0xff]
        %v363 = vld [vmem:[%s3 + $0x18] sm:$0xff]
        %v364 = vld [vmem:[%s3 + $0x20] sm:$0xff]
        %v365 = vld [vmem:[%s3 + $0x28] sm:$0xff]
        %v366 = vld [vmem:[%s3 + $0x30] sm:$0xff]
        %v367 = vld [vmem:[%s3 + $0x38] sm:$0xff]
        %v368 = vld [vmem:[%s3 + $0x40] sm:$0xff]
        %v369 = vld [vmem:[%s3 + $0x48] sm:$0xff]
        %v370 = vld [vmem:[%s3 + $0x50] sm:$0xff]
        %v371 = vld [vmem:[%s3 + $0x58] sm:$0xff]
        %v372 = vld [vmem:[%s3 + $0x60] sm:$0xff]
        %v373 = vld [vmem:[%s3 + $0x68] sm:$0xff]
        %v374 = vld [vmem:[%s3 + $0x70] sm:$0xff]
        %v375 = vld [vmem:[%s3 + $0x78] sm:$0xff]
        %v376 = vld [vmem:[%s3 + $0x80] sm:$0xff]
        %v377 = vld [vmem:[%s3 + $0x88] sm:$0xff]
        %v378 = vld [vmem:[%s3 + $0x90] sm:$0xff]
        %v379 = vld [vmem:[%s3 + $0x98] sm:$0xff]
        %v380 = vld [vmem:[%s3 + $0xa0] sm:$0xff]
        %v381 = vld [vmem:[%s3 + $0xa8] sm:$0xff]
        %v382 = vld [vmem:[%s3 + $0xb0] sm:$0xff]
        %v383 = vld [vmem:[%s3 + $0xb8] sm:$0xff]
        %v384 = vld [vmem:[%s3 + $0xc0] sm:$0xff]
        %v385 = vld [vmem:[%s3 + $0xc8] sm:$0xff]
        %v386 = vld [vmem:[%s3 + $0xd0] sm:$0xff]
        %v387 = vld [vmem:[%s3 + $0xd8] sm:$0xff]
        %v388 = vld [vmem:[%s3 + $0xe0] sm:$0xff]
        %v389 = vld [vmem:[%s3 + $0xe8] sm:$0xff]
        %v390 = vld [vmem:[%s3 + $0xf0] sm:$0xff]
        %v391 = vld [vmem:[%s3 + $0xf8] sm:$0xff]
        %v392 = vld [vmem:[%s3 + $0x100] sm:$0xff]
        %v393 = vld [vmem:[%s3 + $0x108] sm:$0xff]
        %v394 = vld [vmem:[%s3 + $0x110] sm:$0xff]
        %v395 = vld [vmem:[%s3 + $0x118] sm:$0xff]
        %v396 = vld [vmem:[%s3 + $0x120] sm:$0xff]
        %v397 = vld [vmem:[%s3 + $0x128] sm:$0xff]
        %v398 = vld [vmem:[%s3 + $0x130] sm:$0xff]
        %v399 = vld [vmem:[%s3 + $0x138] sm:$0xff]
        %v400 = vld [vmem:[%s3 + $0x140] sm:$0xff]
        %v401 = vld [vmem:[%s3 + $0x148] sm:$0xff]
        %v402 = vld [vmem:[%s3 + $0x150] sm:$0xff]
        %v403 = vld [vmem:[%s3 + $0x158] sm:$0xff]
        %v404 = vld [vmem:[%s3 + $0x160] sm:$0xff]
        %v405 = vld [vmem:[%s3 + $0x168] sm:$0xff]
        %v406 = vld [vmem:[%s3 + $0x170] sm:$0xff]
        %v407 = vld [vmem:[%s3 + $0x178] sm:$0xff]
        %v408 = vld [vmem:[%s4] sm:$0x7]
        %v410 = vperm.slane %v408, 0
        %v411 = vperm.slane %v408, 1
        %v412 = vperm.slane %v408, 2
        %416 = vmatpush.msra.mxu0 %v405
        %417 = vmatpush.msra.mxu0 %v402
        %418 = vmatpush.msra.mxu0 %v399
        %419 = vmatpush.msra.mxu0 %v396
        %420 = vmatpush.msra.mxu0 %v393
        %421 = vmatpush.msra.mxu0 %v390
        %422 = vmatpush.msra.mxu0 %v387
        %423 = vmatpush.msra.mxu0 %v384
        %424 = vmatpush.msra.mxu0 %v381
        %425 = vmatpush.msra.mxu0 %v378
        %426 = vmatpush.msra.mxu0 %v375
        %427 = vmatpush.msra.mxu0 %v372
        %428 = vmatpush.msra.mxu0 %v369
        %429 = vmatpush.msra.mxu0 %v366
        %430 = vmatpush.msra.mxu0 %v363
        %431 = vmatpush.msra.mxu0 %v360
        %432 = vmatmul.f32.gmra.mxu0 %v358
        %v433 = vpop.f32.mrf.mxu0
        %v434 = vadd.f32 %v410, %v433
        %435 = vmatmul.f32.gmra.mxu0 %v359
        %v436 = vpop.f32.mrf.mxu0
        %v437 = vadd.f32 %v410, %v436
        %438 = vdwg.mxu0
        %439 = vmatpush.msra.mxu0 %v406
        %440 = vmatpush.msra.mxu0 %v403
        %441 = vmatpush.msra.mxu0 %v400
        %442 = vmatpush.msra.mxu0 %v397
        %443 = vmatpush.msra.mxu0 %v394
        %444 = vmatpush.msra.mxu0 %v391
        %445 = vmatpush.msra.mxu0 %v388
        %446 = vmatpush.msra.mxu0 %v385
        %447 = vmatpush.msra.mxu0 %v382
        %448 = vmatpush.msra.mxu0 %v379
        %449 = vmatpush.msra.mxu0 %v376
        %450 = vmatpush.msra.mxu0 %v373
        %451 = vmatpush.msra.mxu0 %v370
        %452 = vmatpush.msra.mxu0 %v367
        %453 = vmatpush.msra.mxu0 %v364
        %454 = vmatpush.msra.mxu0 %v361
        %455 = vmatmul.f32.gmra.mxu0 %v358
        %v456 = vpop.f32.mrf.mxu0
        %v457 = vadd.f32 %v411, %v456
        %458 = vmatmul.f32.gmra.mxu0 %v359
        %v459 = vpop.f32.mrf.mxu0
        %v460 = vadd.f32 %v411, %v459
        %461 = vdwg.mxu0
        %462 = vmatpush.msra.mxu0 %v407
        %463 = vmatpush.msra.mxu0 %v404
        %464 = vmatpush.msra.mxu0 %v401
        %465 = vmatpush.msra.mxu0 %v398
        %466 = vmatpush.msra.mxu0 %v395
        %467 = vmatpush.msra.mxu0 %v392
        %468 = vmatpush.msra.mxu0 %v389
        %469 = vmatpush.msra.mxu0 %v386
        %470 = vmatpush.msra.mxu0 %v383
        %471 = vmatpush.msra.mxu0 %v380
        %472 = vmatpush.msra.mxu0 %v377
        %473 = vmatpush.msra.mxu0 %v374
        %474 = vmatpush.msra.mxu0 %v371
        %475 = vmatpush.msra.mxu0 %v368
        %476 = vmatpush.msra.mxu0 %v365
        %477 = vmatpush.msra.mxu0 %v362
        %478 = vmatmul.f32.gmra.mxu0 %v358
        %v479 = vpop.f32.mrf.mxu0
        %v480 = vadd.f32 %v412, %v479
        %481 = vmatmul.f32.gmra.mxu0 %v359
        %v482 = vpop.f32.mrf.mxu0
        %v483 = vadd.f32 %v412, %v482
        %484 = vdwg.mxu0
        %v485 = vlaneseq
        %v486 = vshrl.u32 %v485, 7
        %v487 = vadd.s32 %v486, 8
        %v488 = vlaneseq
        %v489 = vand.u32 %v488, 127
        %vm490 = vcmp.le.s32.totalorder %v489, %v486
        %vm491 = vcmp.le.s32.totalorder %v489, %v487
        %vm492 = vcmask 261120
        %v494 = vsel %vm492, %v434, 0
        %v497 = vsel %vm492, %v437, 0
        %v500 = vsel %vm492, %v457, 0
        %v503 = vsel %vm492, %v460, 0
        %505 = vmatpush.xpose.msra.mxu0 0.0
        %506 = vmatpush.xpose.msra.mxu0 0.0
        %507 = vmatpush.xpose.msra.mxu0 0.0
        %508 = vmatpush.xpose.msra.mxu0 0.0
        %509 = vmatpush.xpose.msra.mxu0 0.0
        %510 = vmatpush.xpose.msra.mxu0 0.0
        %511 = vmatpush.xpose.msra.mxu0 0.0
        %512 = vmatpush.xpose.msra.mxu0 0.0
        %513 = vmatpush.xpose.msra.mxu0 0.0
        %514 = vmatpush.xpose.msra.mxu0 0.0
        %515 = vmatpush.xpose.msra.mxu0 0.0
        %516 = vmatpush.xpose.msra.mxu0 0.0
        %517 = vmatpush.xpose.msra.mxu0 0.0
        %518 = vmatpush.xpose.msra.mxu0 0.0
        %519 = vmatpush.xpose.msra.mxu0 %v503
        %520 = vmatpush.xpose.msra.mxu0 %v500
        %521 = vmatmul.f32.gmra.mxu0 %v494
        %v522 = vpop.f32.mrf.mxu0
        %v523 = vadd.f32 0.0, %v522
        %524 = vmatmul.f32.gmra.mxu0 %v497
        %v525 = vpop.f32.mrf.mxu0
        %v526 = vadd.f32 0.0, %v525
        %527 = vdwg.mxu0
        %v528 = vmul.f32 %v523, 0.17677669
        %v529 = vmul.f32 %v526, 0.17677669
        %v530 = vsel %vm490, %v528, -1e+30
        %v531 = vsel %vm491, %v529, -1e+30
        %vm532 = vcmask 130048
        %v533 = vsel %vm532, %v530, -inf
        %534 = vmax.xlane.f32.xlu0 %v533
        %v535 = vpop.xlane.xlu0 %534
        %v536 = vsel %vm532, %v531, -inf
        %537 = vmax.xlane.f32.xlu0 %v536
        %v538 = vpop.xlane.xlu0 %537
        %v539 = vsub.f32 %v530, %v535
        %v540 = vsub.f32 %v531, %v538
        %v541 = vmul.f32 %v539, 1.442695
        %v542 = vpow.pop %v541
        %v543 = vmul.f32 %v540, 1.442695
        %v544 = vpow.pop %v543
        %v545 = vsel %vm532, %v542, 0.0
        %546 = vadd.xlane.f32.xlu0 %v545
        %v547 = vpop.xlane.xlu0 %546
        %v548 = vsel %vm532, %v544, 0.0
        %549 = vadd.xlane.f32.xlu0 %v548
        %v550 = vpop.xlane.xlu0 %549
        %v551 = vrcp.pop %v547
        %v552 = vrcp.pop %v550
        %v553 = vmul.f32 %v542, %v551
        %v554 = vmul.f32 %v544, %v552
        %v556 = vsel %vm532, %v553, 0
        %v559 = vsel %vm532, %v554, 0
        %561 = vmatpush.msra.mxu0 0.0
        %562 = vmatpush.msra.mxu0 0.0
        %563 = vmatpush.msra.mxu0 0.0
        %564 = vmatpush.msra.mxu0 0.0
        %565 = vmatpush.msra.mxu0 0.0
        %566 = vmatpush.msra.mxu0 0.0
        %567 = vmatpush.msra.mxu0 0.0
        %568 = vmatpush.msra.mxu0 0.0
        %569 = vmatpush.msra.mxu0 0.0
        %570 = vmatpush.msra.mxu0 0.0
        %571 = vmatpush.msra.mxu0 0.0
        %572 = vmatpush.msra.mxu0 0.0
        %573 = vmatpush.msra.mxu0 0.0
        %574 = vmatpush.msra.mxu0 0.0
        %575 = vmatpush.msra.mxu0 %v483
        %576 = vmatpush.msra.mxu0 %v480
        %577 = vmatmul.f32.gmra.mxu0 %v556
        %v578 = vpop.f32.mrf.mxu0
        %v579 = vadd.f32 0.0, %v578
        %580 = vmatmul.f32.gmra.mxu0 %v559
        %v581 = vpop.f32.mrf.mxu0
        %v582 = vadd.f32 0.0, %v581
        %583 = vdwg.mxu0
        %584 = vrot.lane.b32.xlu0 %v434, 96
        %v585 = vpop.permute.xlu0 %584
        %586 = vrot.lane.b32.xlu0 %v437, 96
        %v587 = vpop.permute.xlu0 %586
        %588 = vrot.lane.b32.xlu0 %v457, 96
        %v589 = vpop.permute.xlu0 %588
        %590 = vrot.lane.b32.xlu0 %v460, 96
        %v591 = vpop.permute.xlu0 %590
        %v592 = vsel %vm492, %v585, 0
        %v594 = vsel %vm492, %v587, 0
        %v596 = vsel %vm492, %v589, 0
        %v598 = vsel %vm492, %v591, 0
        %600 = vmatpush.xpose.msra.mxu0 0.0
        %601 = vmatpush.xpose.msra.mxu0 0.0
        %602 = vmatpush.xpose.msra.mxu0 0.0
        %603 = vmatpush.xpose.msra.mxu0 0.0
        %604 = vmatpush.xpose.msra.mxu0 0.0
        %605 = vmatpush.xpose.msra.mxu0 0.0
        %606 = vmatpush.xpose.msra.mxu0 0.0
        %607 = vmatpush.xpose.msra.mxu0 0.0
        %608 = vmatpush.xpose.msra.mxu0 0.0
        %609 = vmatpush.xpose.msra.mxu0 0.0
        %610 = vmatpush.xpose.msra.mxu0 0.0
        %611 = vmatpush.xpose.msra.mxu0 0.0
        %612 = vmatpush.xpose.msra.mxu0 0.0
        %613 = vmatpush.xpose.msra.mxu0 0.0
        %614 = vmatpush.xpose.msra.mxu0 %v598
        %615 = vmatpush.xpose.msra.mxu0 %v596
        %616 = vmatmul.f32.gmra.mxu0 %v592
        %v617 = vpop.f32.mrf.mxu0
        %v618 = vadd.f32 0.0, %v617
        %619 = vmatmul.f32.gmra.mxu0 %v594
        %v620 = vpop.f32.mrf.mxu0
        %v621 = vadd.f32 0.0, %v620
        %622 = vdwg.mxu0
        %v623 = vmul.f32 %v618, 0.17677669
        %v624 = vmul.f32 %v621, 0.17677669
        %v625 = vsel %vm490, %v623, -1e+30
        %v626 = vsel %vm491, %v624, -1e+30
        %v627 = vsel %vm532, %v625, -inf
        %628 = vmax.xlane.f32.xlu0 %v627
        %v629 = vpop.xlane.xlu0 %628
        %v630 = vsel %vm532, %v626, -inf
        %631 = vmax.xlane.f32.xlu0 %v630
        %v632 = vpop.xlane.xlu0 %631
        %v633 = vsub.f32 %v625, %v629
        %v634 = vsub.f32 %v626, %v632
        %v635 = vmul.f32 %v633, 1.442695
        %v636 = vpow.pop %v635
        %v637 = vmul.f32 %v634, 1.442695
        %v638 = vpow.pop %v637
        %v639 = vsel %vm532, %v636, 0.0
        %640 = vadd.xlane.f32.xlu0 %v639
        %v641 = vpop.xlane.xlu0 %640
        %v642 = vsel %vm532, %v638, 0.0
        %643 = vadd.xlane.f32.xlu0 %v642
        %v644 = vpop.xlane.xlu0 %643
        %v645 = vrcp.pop %v641
        %v646 = vrcp.pop %v644
        %v647 = vmul.f32 %v636, %v645
        %v648 = vmul.f32 %v638, %v646
        %651 = vrot.lane.b32.xlu0 %v480, 96
        %v652 = vpop.permute.xlu0 %651
        %653 = vrot.lane.b32.xlu0 %v483, 96
        %v654 = vpop.permute.xlu0 %653
        %v658 = vsel %vm532, %v647, 0
        %v661 = vsel %vm532, %v648, 0
        %663 = vmatpush.msra.mxu0 0.0
        %664 = vmatpush.msra.mxu0 0.0
        %665 = vmatpush.msra.mxu0 0.0
        %666 = vmatpush.msra.mxu0 0.0
        %667 = vmatpush.msra.mxu0 0.0
        %668 = vmatpush.msra.mxu0 0.0
        %669 = vmatpush.msra.mxu0 0.0
        %670 = vmatpush.msra.mxu0 0.0
        %671 = vmatpush.msra.mxu0 0.0
        %672 = vmatpush.msra.mxu0 0.0
        %673 = vmatpush.msra.mxu0 0.0
        %674 = vmatpush.msra.mxu0 0.0
        %675 = vmatpush.msra.mxu0 0.0
        %676 = vmatpush.msra.mxu0 0.0
        %677 = vmatpush.msra.mxu0 %v654
        %678 = vmatpush.msra.mxu0 %v652
        %679 = vmatmul.f32.gmra.mxu0 %v658
        %v680 = vpop.f32.mrf.mxu0
        %v681 = vadd.f32 0.0, %v680
        %682 = vmatmul.f32.gmra.mxu0 %v661
        %v683 = vpop.f32.mrf.mxu0
        %v684 = vadd.f32 0.0, %v683
        %685 = vdwg.mxu0
        %686 = vrot.lane.b32.xlu0 %v434, 64
        %v687 = vpop.permute.xlu0 %686
        %688 = vrot.lane.b32.xlu0 %v437, 64
        %v689 = vpop.permute.xlu0 %688
        %690 = vrot.lane.b32.xlu0 %v457, 64
        %v691 = vpop.permute.xlu0 %690
        %692 = vrot.lane.b32.xlu0 %v460, 64
        %v693 = vpop.permute.xlu0 %692
        %v694 = vsel %vm492, %v687, 0
        %v696 = vsel %vm492, %v689, 0
        %v698 = vsel %vm492, %v691, 0
        %v700 = vsel %vm492, %v693, 0
        %702 = vmatpush.xpose.msra.mxu0 0.0
        %703 = vmatpush.xpose.msra.mxu0 0.0
        %704 = vmatpush.xpose.msra.mxu0 0.0
        %705 = vmatpush.xpose.msra.mxu0 0.0
        %706 = vmatpush.xpose.msra.mxu0 0.0
        %707 = vmatpush.xpose.msra.mxu0 0.0
        %708 = vmatpush.xpose.msra.mxu0 0.0
        %709 = vmatpush.xpose.msra.mxu0 0.0
        %710 = vmatpush.xpose.msra.mxu0 0.0
        %711 = vmatpush.xpose.msra.mxu0 0.0
        %712 = vmatpush.xpose.msra.mxu0 0.0
        %713 = vmatpush.xpose.msra.mxu0 0.0
        %714 = vmatpush.xpose.msra.mxu0 0.0
        %715 = vmatpush.xpose.msra.mxu0 0.0
        %716 = vmatpush.xpose.msra.mxu0 %v700
        %717 = vmatpush.xpose.msra.mxu0 %v698
        %718 = vmatmul.f32.gmra.mxu0 %v694
        %v719 = vpop.f32.mrf.mxu0
        %v720 = vadd.f32 0.0, %v719
        %721 = vmatmul.f32.gmra.mxu0 %v696
        %v722 = vpop.f32.mrf.mxu0
        %v723 = vadd.f32 0.0, %v722
        %724 = vdwg.mxu0
        %v725 = vmul.f32 %v720, 0.17677669
        %v726 = vmul.f32 %v723, 0.17677669
        %v727 = vsel %vm490, %v725, -1e+30
        %v728 = vsel %vm491, %v726, -1e+30
        %v729 = vsel %vm532, %v727, -inf
        %730 = vmax.xlane.f32.xlu0 %v729
        %v731 = vpop.xlane.xlu0 %730
        %v732 = vsel %vm532, %v728, -inf
        %733 = vmax.xlane.f32.xlu0 %v732
        %v734 = vpop.xlane.xlu0 %733
        %v735 = vsub.f32 %v727, %v731
        %v736 = vsub.f32 %v728, %v734
        %v737 = vmul.f32 %v735, 1.442695
        %v738 = vpow.pop %v737
        %v739 = vmul.f32 %v736, 1.442695
        %v740 = vpow.pop %v739
        %v741 = vsel %vm532, %v738, 0.0
        %742 = vadd.xlane.f32.xlu0 %v741
        %v743 = vpop.xlane.xlu0 %742
        %v744 = vsel %vm532, %v740, 0.0
        %745 = vadd.xlane.f32.xlu0 %v744
        %v746 = vpop.xlane.xlu0 %745
        %v747 = vrcp.pop %v743
        %v748 = vrcp.pop %v746
        %v749 = vmul.f32 %v738, %v747
        %v750 = vmul.f32 %v740, %v748
        %751 = vrot.lane.b32.xlu0 %v480, 64
        %v752 = vpop.permute.xlu0 %751
        %753 = vrot.lane.b32.xlu0 %v483, 64
        %v754 = vpop.permute.xlu0 %753
        %v758 = vsel %vm532, %v749, 0
        %v761 = vsel %vm532, %v750, 0
        %763 = vmatpush.msra.mxu0 0.0
        %764 = vmatpush.msra.mxu0 0.0
        %765 = vmatpush.msra.mxu0 0.0
        %766 = vmatpush.msra.mxu0 0.0
        %767 = vmatpush.msra.mxu0 0.0
        %768 = vmatpush.msra.mxu0 0.0
        %769 = vmatpush.msra.mxu0 0.0
        %770 = vmatpush.msra.mxu0 0.0
        %771 = vmatpush.msra.mxu0 0.0
        %772 = vmatpush.msra.mxu0 0.0
        %773 = vmatpush.msra.mxu0 0.0
        %774 = vmatpush.msra.mxu0 0.0
        %775 = vmatpush.msra.mxu0 0.0
        %776 = vmatpush.msra.mxu0 0.0
        %777 = vmatpush.msra.mxu0 %v754
        %778 = vmatpush.msra.mxu0 %v752
        %779 = vmatmul.f32.gmra.mxu0 %v758
        %v780 = vpop.f32.mrf.mxu0
        %v781 = vadd.f32 0.0, %v780
        %782 = vmatmul.f32.gmra.mxu0 %v761
        %v783 = vpop.f32.mrf.mxu0
        %v784 = vadd.f32 0.0, %v783
        %785 = vdwg.mxu0
        %786 = vrot.lane.b32.xlu0 %v434, 32
        %v787 = vpop.permute.xlu0 %786
        %788 = vrot.lane.b32.xlu0 %v437, 32
        %v789 = vpop.permute.xlu0 %788
        %790 = vrot.lane.b32.xlu0 %v457, 32
        %v791 = vpop.permute.xlu0 %790
        %792 = vrot.lane.b32.xlu0 %v460, 32
        %v793 = vpop.permute.xlu0 %792
        %v794 = vsel %vm492, %v787, 0
        %v796 = vsel %vm492, %v789, 0
        %v798 = vsel %vm492, %v791, 0
        %v800 = vsel %vm492, %v793, 0
        %802 = vmatpush.xpose.msra.mxu0 0.0
        %803 = vmatpush.xpose.msra.mxu0 0.0
        %804 = vmatpush.xpose.msra.mxu0 0.0
        %805 = vmatpush.xpose.msra.mxu0 0.0
        %806 = vmatpush.xpose.msra.mxu0 0.0
        %807 = vmatpush.xpose.msra.mxu0 0.0
        %808 = vmatpush.xpose.msra.mxu0 0.0
        %809 = vmatpush.xpose.msra.mxu0 0.0
        %810 = vmatpush.xpose.msra.mxu0 0.0
        %811 = vmatpush.xpose.msra.mxu0 0.0
        %812 = vmatpush.xpose.msra.mxu0 0.0
        %813 = vmatpush.xpose.msra.mxu0 0.0
        %814 = vmatpush.xpose.msra.mxu0 0.0
        %815 = vmatpush.xpose.msra.mxu0 0.0
        %816 = vmatpush.xpose.msra.mxu0 %v800
        %817 = vmatpush.xpose.msra.mxu0 %v798
        %818 = vmatmul.f32.gmra.mxu0 %v794
        %v819 = vpop.f32.mrf.mxu0
        %v820 = vadd.f32 0.0, %v819
        %821 = vmatmul.f32.gmra.mxu0 %v796
        %v822 = vpop.f32.mrf.mxu0
        %v823 = vadd.f32 0.0, %v822
        %824 = vdwg.mxu0
        %v825 = vmul.f32 %v820, 0.17677669
        %v826 = vmul.f32 %v823, 0.17677669
        %v827 = vsel %vm490, %v825, -1e+30
        %v828 = vsel %vm491, %v826, -1e+30
        %v829 = vsel %vm532, %v827, -inf
        %830 = vmax.xlane.f32.xlu0 %v829
        %v831 = vpop.xlane.xlu0 %830
        %v832 = vsel %vm532, %v828, -inf
        %833 = vmax.xlane.f32.xlu0 %v832
        %v834 = vpop.xlane.xlu0 %833
        %v835 = vsub.f32 %v827, %v831
        %v836 = vsub.f32 %v828, %v834
        %v837 = vmul.f32 %v835, 1.442695
        %v838 = vpow.pop %v837
        %v839 = vmul.f32 %v836, 1.442695
        %v840 = vpow.pop %v839
        %v841 = vsel %vm532, %v838, 0.0
        %842 = vadd.xlane.f32.xlu0 %v841
        %v843 = vpop.xlane.xlu0 %842
        %v844 = vsel %vm532, %v840, 0.0
        %845 = vadd.xlane.f32.xlu0 %v844
        %v846 = vpop.xlane.xlu0 %845
        %v847 = vrcp.pop %v843
        %v848 = vrcp.pop %v846
        %v849 = vmul.f32 %v838, %v847
        %v850 = vmul.f32 %v840, %v848
        %851 = vrot.lane.b32.xlu0 %v480, 32
        %v852 = vpop.permute.xlu0 %851
        %853 = vrot.lane.b32.xlu0 %v483, 32
        %v854 = vpop.permute.xlu0 %853
        %v858 = vsel %vm532, %v849, 0
        %v861 = vsel %vm532, %v850, 0
        %863 = vmatpush.msra.mxu0 0.0
        %864 = vmatpush.msra.mxu0 0.0
        %865 = vmatpush.msra.mxu0 0.0
        %866 = vmatpush.msra.mxu0 0.0
        %867 = vmatpush.msra.mxu0 0.0
        %868 = vmatpush.msra.mxu0 0.0
        %869 = vmatpush.msra.mxu0 0.0
        %870 = vmatpush.msra.mxu0 0.0
        %871 = vmatpush.msra.mxu0 0.0
        %872 = vmatpush.msra.mxu0 0.0
        %873 = vmatpush.msra.mxu0 0.0
        %874 = vmatpush.msra.mxu0 0.0
        %875 = vmatpush.msra.mxu0 0.0
        %876 = vmatpush.msra.mxu0 0.0
        %877 = vmatpush.msra.mxu0 %v854
        %878 = vmatpush.msra.mxu0 %v852
        %879 = vmatmul.f32.gmra.mxu0 %v858
        %v880 = vpop.f32.mrf.mxu0
        %v881 = vadd.f32 0.0, %v880
        %882 = vmatmul.f32.gmra.mxu0 %v861
        %v883 = vpop.f32.mrf.mxu0
        %v884 = vadd.f32 0.0, %v883
        %885 = vdwg.mxu0
        %888 = vrot.lane.b32.xlu0 %v681, 32
        %v889 = vpop.permute.xlu0 %888
        %890 = vrot.lane.b32.xlu0 %v684, 32
        %v891 = vpop.permute.xlu0 %890
        %896 = vrot.lane.b32.xlu0 %v781, 64
        %v897 = vpop.permute.xlu0 %896
        %898 = vrot.lane.b32.xlu0 %v784, 64
        %v899 = vpop.permute.xlu0 %898
        %904 = vrot.lane.b32.xlu0 %v881, 96
        %v905 = vpop.permute.xlu0 %904
        %906 = vrot.lane.b32.xlu0 %v884, 96
        %v907 = vpop.permute.xlu0 %906
        %v910 = vsel %vm492, %v579, %v889
        %v911 = vsel %vm492, %v582, %v891
        %vm912 = vcmask 523264
        %v913 = vsel %vm912, %v910, %v897
        %v914 = vsel %vm912, %v911, %v899
        %vm915 = vcmask 785408
        %v916 = vsel %vm915, %v913, %v905
        %v917 = vsel %vm915, %v914, %v907
        %v918 = vld [vmem:[#allocation2] sm:$0xff]
        %v919 = vld [vmem:[#allocation2 + $0x8] sm:$0xff]
        %v920 = vld [vmem:[#allocation2 + $0x10] sm:$0xff]
        %v921 = vld [vmem:[#allocation2 + $0x18] sm:$0xff]
        %v922 = vld [vmem:[#allocation2 + $0x20] sm:$0xff]
        %v923 = vld [vmem:[#allocation2 + $0x28] sm:$0xff]
        %v924 = vld [vmem:[#allocation2 + $0x30] sm:$0xff]
        %v925 = vld [vmem:[#allocation2 + $0x38] sm:$0xff]
        %v926 = vld [vmem:[#allocation2 + $0x40] sm:$0xff]
        %v927 = vld [vmem:[#allocation2 + $0x48] sm:$0xff]
        %v928 = vld [vmem:[#allocation2 + $0x50] sm:$0xff]
        %v929 = vld [vmem:[#allocation2 + $0x58] sm:$0xff]
        %v930 = vld [vmem:[#allocation2 + $0x60] sm:$0xff]
        %v931 = vld [vmem:[#allocation2 + $0x68] sm:$0xff]
        %v932 = vld [vmem:[#allocation2 + $0x70] sm:$0xff]
        %v933 = vld [vmem:[#allocation2 + $0x78] sm:$0xff]
        %v934 = vld [vmem:[%s6] sm:$0x1]
        %v936 = vperm.slane %v934, 0
        %938 = vmatpush.msra.mxu0 %v933
        %939 = vmatpush.msra.mxu0 %v932
        %940 = vmatpush.msra.mxu0 %v931
        %941 = vmatpush.msra.mxu0 %v930
        %942 = vmatpush.msra.mxu0 %v929
        %943 = vmatpush.msra.mxu0 %v928
        %944 = vmatpush.msra.mxu0 %v927
        %945 = vmatpush.msra.mxu0 %v926
        %946 = vmatpush.msra.mxu0 %v925
        %947 = vmatpush.msra.mxu0 %v924
        %948 = vmatpush.msra.mxu0 %v923
        %949 = vmatpush.msra.mxu0 %v922
        %950 = vmatpush.msra.mxu0 %v921
        %951 = vmatpush.msra.mxu0 %v920
        %952 = vmatpush.msra.mxu0 %v919
        %953 = vmatpush.msra.mxu0 %v918
        %954 = vmatmul.f32.gmra.mxu0 %v916
        %v955 = vpop.f32.mrf.mxu0
        %v956 = vadd.f32 %v936, %v955
        %957 = vmatmul.f32.gmra.mxu0 %v917
        %v958 = vpop.f32.mrf.mxu0
        %v959 = vadd.f32 %v936, %v958
        %960 = vdwg.mxu0
        %v961 = vadd.f32 %v956, %v299
        %v962 = vadd.f32 %v959, %v300
        %963 = vst [vmem:[%s297] sm:$0xff] %v961
        %964 = vst [vmem:[%s297 + $0x8] sm:$0xff] %v962
        %s965 = smul.u32 2, %s19
        %p966 = scmp.lt.s32.totalorder %s965, 3
        %s967 = scalar_select %p966, %s965, 3
        %s968 = smul.addr %s967, 8
        %s969 = scalar_lea.vmem %s7, %s968
        // Predicated region
        $region53: #{transformer_forward.7} parent=47 // pred_check
          %p970 = pneg %p189
        $region54: #{transformer_forward.7} parent=47 // pred_check_branch
          %972 = sbr.rel (%p970) target = $region56
        $region55: #{transformer_forward.7} parent=47 // pred_region
          %s973 = smul.u32 2, %s19
        $region56: #{transformer_forward.7} parent=47 // pred_fallthru
          _
      $region48: #{transformer_forward.7} parent=5 // pred_fallthru
        _
      %p974 = scmp.le.s32.totalorder 2, %s14
      // Predicated region
      $region57: #{transformer_forward.7} parent=5 // pred_check
        %p975 = pneg %p974
      $region58: #{transformer_forward.7} parent=5 // pred_check_branch
        %977 = sbr.rel (%p975) target = $region60
      $region59: #{transformer_forward.7} parent=5 // pred_region
        %s978 = ssub.s32 %s14, 2
        // Predicated region
        $region61: #{transformer_forward.7} parent=59 // pred_check
          %p979 = pneg %p195
        $region62: #{transformer_forward.7} parent=59 // pred_check_branch
          %981 = sbr.rel (%p979) target = $region64
        $region63: #{transformer_forward.7} parent=59 // pred_region
          %s982 = smul.u32 2, %s20
          %p983 = scmp.lt.s32.totalorder %s982, 3
          %s984 = scalar_select %p983, %s982, 3
          %s985 = smul.addr %s984, 8
          %s986 = scalar_lea.vmem %s7, %s985
        $region64: #{transformer_forward.7} parent=59 // pred_fallthru
          _
      $region60: #{transformer_forward.7} parent=5 // pred_fallthru
        _
    $region6: #{transformer_forward.7} parent=1 // loop_footer
      %s18 = sadd.s32 1, %s14
    $region7: #{transformer_forward.7} parent=1 // loop_footer_branch
      %13 = sbr.rel target = $region3
    $region8: #{transformer_forward.7} parent=1 // loop_exit
      _
    %987 = vsyncpa [#allocation3], 1
    %s988 = scalar_lea.sflag [#allocation3], 1
    %989 = vsyncpa %s988, 1

// kernel: transformer_forward.11
$region0: #{transformer_forward.11}
  #allocation0 [shape = 'u32[]', space=smem, size = 0x4, offset = 0x4, fixed_abs, tag = 'smem constant byte address 0x4 - core index']
  #allocation1 [shape = 'u32[72,128]{1,0:T(1,128)}', space=vmem, size = 0x9000, scoped, tag = 'internal scratch']
  #allocation2 [shape = 'f32[16,128]{1,0:T(8,128)}', space=vmem, size = 0x2000, scoped, tag = 'scratch operand']
  %s0 = inlined_call_operand.vmem [shape: f32[32,128], index: 0, kind: input, shape index: {}]
  %s1 = inlined_call_operand.vmem [shape: f32[1,128], index: 1, kind: input, shape index: {}]
  %s2 = inlined_call_operand.vmem [shape: f32[1,128], index: 2, kind: input, shape index: {}]
  %s3 = inlined_call_operand.hbm [shape: f32[128,128], index: 3, kind: input, shape index: {}]
  %s4 = inlined_call_operand.vmem [shape: f32[1,128], index: 4, kind: input, shape index: {}]
  %s5 = inlined_call_operand.hbm [shape: f32[32,128], index: 5, kind: output, shape index: {0}]
  %s6 = inlined_call_operand.hbm [shape: f32[32,128], index: 6, kind: output, shape index: {1}]
  %7 = xla_tuple %s5, %s6
  %s8 = sld [smem:[#allocation0]]
  $region69: #{transformer_forward.11} parent=0
    _
  %s10 = ssub.s32 1, %s8
  %s11 = scalar_select 0, %s10, %s8
  $region1: #{transformer_forward.11} parent=0
    #allocation3 [shape = 'u8[65536]{0}', space=vmem, size = 0x10000, scoped, tag = 'input window, operand 3, single buffered']
    #allocation4 [shape = 's32[2]{0}', space=sflag, size = 0x8, scoped, tag = 'scoped memory for transformer_forward.11']
    #allocation5 [shape = 's32[2]{0}', space=sflag, size = 0x8, scoped, tag = 'scoped memory for transformer_forward.11']
    #allocation6 [shape = 'u8[16384]{0}', space=vmem, size = 0x4000, scoped, tag = 'output window, operand 0']
    #allocation7 [shape = 'u8[16384]{0}', space=vmem, size = 0x4000, scoped, tag = 'output window, operand 1']
    #allocation8 [shape = 's32[2]{0}', space=sflag, size = 0x8, scoped, tag = 'scoped memory for transformer_forward.11']
    %12 = vsyncpa [#allocation4], 0
    %13 = vsyncpa [#allocation5], 0
    %s14 = scalar_lea.sflag [#allocation5], 1
    %15 = vsyncpa %s14, 0
    %16 = vsyncpa [#allocation8], 0
    %s17 = scalar_lea.sflag [#allocation8], 1
    %18 = vsyncpa %s17, 0
    loop: start=0, step=1, limit=4
    $region2: #{transformer_forward.11} parent=1 // loop_pre_header
      _
    $region3: #{transformer_forward.11} parent=1 // loop_header
      %s20 = sphi 0, %s24
      %p21 = scmp.ge.s32.totalorder %s20, 4
      %s27 = sphi 0, %s39
      %s28 = sphi 0, %s35
      %s29 = sphi 0, %s27
      %s30 = sphi 0, %s28
      %s31 = sphi 0, %s29
      %s32 = sphi 0, %s30
      %s42 = sphi 0, %s44
      %s45 = sphi 0, %s42
      %s46 = sphi 0, %s45
      %s62 = sphi 0, %s46
      %s66 = sphi 0, %s66
      %s68 = sphi 0, %s66
      %s69 = sphi 0, %s68
      %s83 = sphi 0, %s69
      %s87 = sphi 0, %s87
      %s89 = sphi 0, %s87
      %s90 = sphi 0, %s89
      %s104 = sphi 0, %s90
      %s110 = sphi 0, %s112
      %s113 = sphi 0, %s110
      %s114 = sphi 0, %s113
      %s130 = sphi 0, %s114
      %s136 = sphi 0, %s138
      %s139 = sphi 0, %s136
      %s140 = sphi 0, %s139
      %s156 = sphi 0, %s140
      %s162 = sphi 0, %s164
      %s165 = sphi 0, %s162
      %s166 = sphi 0, %s165
      %s182 = sphi 0, %s166
      %s190 = sphi 0, %s192
      %s193 = sphi 0, %s190
      %s194 = sphi 0, %s193
      %s210 = sphi 0, %s194
    $region4: #{transformer_forward.11} parent=1 // loop_header_branch
      %23 = sbr.rel (%p21) target = $region8
    $region5: #{transformer_forward.11} parent=1 // loop_body
      %s25 = ssub.s32 %s20, 1
      %s26 = ssub.s32 %s20, 2
      %s33 = sadd.s32 1, %s28
      %p34 = scmp.ge.s32.totalorder %s33, 1
      %s35 = scalar_select %p34, 0, %s33
      %s36 = sadd.s32 1, %s27
      %s37 = scalar_select %p34, %s36, %s27
      %p38 = scmp.ge.s32.totalorder %s37, 2
      %s39 = scalar_select %p38, 0, %s37
      %s40 = ssub.s32 %s27, %s39
      %p41 = scmp.eq.s32.totalorder %s40, 0
      %s43 = sadd.s32 %s42, 1
      %s44 = scalar_select %p41, %s42, %s43
      %p47 = pneg %p41
      %p48 = scmp.eq.s32.totalorder %s20, 1
      %p49 = por %p47, %p48
      %p50 = scmp.ne.s32.totalorder %s42, %s45
      %p51 = scmp.eq.s32.totalorder %s20, 0
      %p52 = por %p50, %p51
      %p53 = scmp.ne.s32.totalorder %s42, %s45
      %p54 = scmp.eq.s32.totalorder %s25, 1
      %p55 = por %p53, %p54
      %p56 = scmp.ne.s32.totalorder %s45, %s46
      %p57 = scmp.eq.s32.totalorder %s25, 0
      %p58 = por %p56, %p57
      %p59 = scmp.ne.s32.totalorder %s45, %s46
      %p60 = scmp.eq.s32.totalorder %s26, 1
      %p61 = por %p59, %p60
      %p63 = scmp.ne.s32.totalorder %s46, %s62
      %p64 = scmp.eq.s32.totalorder %s26, 0
      %p65 = por %p63, %p64
      %s67 = sadd.s32 %s66, 1
      %p70 = scmp.eq.s32.totalorder %s20, 1
      %p71 = scmp.ne.s32.totalorder %s66, %s68
      %p72 = scmp.eq.s32.totalorder %s20, 0
      %p73 = por %p71, %p72
      %p74 = scmp.ne.s32.totalorder %s66, %s68
      %p75 = scmp.eq.s32.totalorder %s25, 1
      %p76 = por %p74, %p75
      %p77 = scmp.ne.s32.totalorder %s68, %s69
      %p78 = scmp.eq.s32.totalorder %s25, 0
      %p79 = por %p77, %p78
      %p80 = scmp.ne.s32.totalorder %s68, %s69
      %p81 = scmp.eq.s32.totalorder %s26, 1
      %p82 = por %p80, %p81
      %p84 = scmp.ne.s32.totalorder %s69, %s83
      %p85 = scmp.eq.s32.totalorder %s26, 0
      %p86 = por %p84, %p85
      %s88 = sadd.s32 %s87, 1
      %p91 = scmp.eq.s32.totalorder %s20, 1
      %p92 = scmp.ne.s32.totalorder %s87, %s89
      %p93 = scmp.eq.s32.totalorder %s20, 0
      %p94 = por %p92, %p93
      %p95 = scmp.ne.s32.totalorder %s87, %s89
      %p96 = scmp.eq.s32.totalorder %s25, 1
      %p97 = por %p95, %p96
      %p98 = scmp.ne.s32.totalorder %s89, %s90
      %p99 = scmp.eq.s32.totalorder %s25, 0
      %p100 = por %p98, %p99
      %p101 = scmp.ne.s32.totalorder %s89, %s90
      %p102 = scmp.eq.s32.totalorder %s26, 1
      %p103 = por %p101, %p102
      %p105 = scmp.ne.s32.totalorder %s90, %s104
      %p106 = scmp.eq.s32.totalorder %s26, 0
      %p107 = por %p105, %p106
      %s108 = ssub.s32 %s28, %s35
      %p109 = scmp.eq.s32.totalorder %s108, 0
      %s111 = sadd.s32 %s110, 1
      %s112 = scalar_select %p109, %s110, %s111
      %p115 = pneg %p109
      %p116 = scmp.eq.s32.totalorder %s20, 1
      %p117 = por %p115, %p116
      %p118 = scmp.ne.s32.totalorder %s110, %s113
      %p119 = scmp.eq.s32.totalorder %s20, 0
      %p120 = por %p118, %p119
      %p121 = scmp.ne.s32.totalorder %s110, %s113
      %p122 = scmp.eq.s32.totalorder %s25, 1
      %p123 = por %p121, %p122
      %p124 = scmp.ne.s32.totalorder %s113, %s114
      %p125 = scmp.eq.s32.totalorder %s25, 0
      %p126 = por %p124, %p125
      %p127 = scmp.ne.s32.totalorder %s113, %s114
      %p128 = scmp.eq.s32.totalorder %s26, 1
      %p129 = por %p127, %p128
      %p131 = scmp.ne.s32.totalorder %s114, %s130
      %p132 = scmp.eq.s32.totalorder %s26, 0
      %p133 = por %p131, %p132
      %s134 = ssub.s32 %s28, %s35
      %p135 = scmp.eq.s32.totalorder %s134, 0
      %s137 = sadd.s32 %s136, 1
      %s138 = scalar_select %p135, %s136, %s137
      %p141 = pneg %p135
      %p142 = scmp.eq.s32.totalorder %s20, 1
      %p143 = por %p141, %p142
      %p144 = scmp.ne.s32.totalorder %s136, %s139
      %p145 = scmp.eq.s32.totalorder %s20, 0
      %p146 = por %p144, %p145
      %p147 = scmp.ne.s32.totalorder %s136, %s139
      %p148 = scmp.eq.s32.totalorder %s25, 1
      %p149 = por %p147, %p148
      %p150 = scmp.ne.s32.totalorder %s139, %s140
      %p151 = scmp.eq.s32.totalorder %s25, 0
      %p152 = por %p150, %p151
      %p153 = scmp.ne.s32.totalorder %s139, %s140
      %p154 = scmp.eq.s32.totalorder %s26, 1
      %p155 = por %p153, %p154
      %p157 = scmp.ne.s32.totalorder %s140, %s156
      %p158 = scmp.eq.s32.totalorder %s26, 0
      %p159 = por %p157, %p158
      %s160 = ssub.s32 %s27, %s39
      %p161 = scmp.eq.s32.totalorder %s160, 0
      %s163 = sadd.s32 %s162, 1
      %s164 = scalar_select %p161, %s162, %s163
      %p167 = pneg %p161
      %p168 = scmp.eq.s32.totalorder %s20, 1
      %p169 = por %p167, %p168
      %p170 = scmp.ne.s32.totalorder %s162, %s165
      %p171 = scmp.eq.s32.totalorder %s20, 0
      %p172 = por %p170, %p171
      %p173 = scmp.ne.s32.totalorder %s162, %s165
      %p174 = scmp.eq.s32.totalorder %s25, 1
      %p175 = por %p173, %p174
      %p176 = scmp.ne.s32.totalorder %s165, %s166
      %p177 = scmp.eq.s32.totalorder %s25, 0
      %p178 = por %p176, %p177
      %p179 = scmp.ne.s32.totalorder %s165, %s166
      %p180 = scmp.eq.s32.totalorder %s26, 1
      %p181 = por %p179, %p180
      %p183 = scmp.ne.s32.totalorder %s166, %s182
      %p184 = scmp.eq.s32.totalorder %s26, 0
      %p185 = por %p183, %p184
      %s186 = ssub.s32 %s27, %s39
      %s187 = ssub.s32 %s28, %s35
      %s188 = sor.u32 %s186, %s187
      %p189 = scmp.eq.s32.totalorder %s188, 0
      %s191 = sadd.s32 %s190, 1
      %s192 = scalar_select %p189, %s190, %s191
      %p195 = pneg %p189
      %p196 = scmp.eq.s32.totalorder %s20, 1
      %p197 = por %p195, %p196
      %p198 = scmp.ne.s32.totalorder %s190, %s193
      %p199 = scmp.eq.s32.totalorder %s20, 0
      %p200 = por %p198, %p199
      %p201 = scmp.ne.s32.totalorder %s190, %s193
      %p202 = scmp.eq.s32.totalorder %s25, 1
      %p203 = por %p201, %p202
      %p204 = scmp.ne.s32.totalorder %s193, %s194
      %p205 = scmp.eq.s32.totalorder %s25, 0
      %p206 = por %p204, %p205
      %p207 = scmp.ne.s32.totalorder %s193, %s194
      %p208 = scmp.eq.s32.totalorder %s26, 1
      %p209 = por %p207, %p208
      %p211 = scmp.ne.s32.totalorder %s194, %s210
      %p212 = scmp.eq.s32.totalorder %s26, 0
      %p213 = por %p211, %p212
      %p214 = scmp.le.s32.totalorder 1, %s20
      %p215 = scmp.lt.s32.totalorder %s20, 3
      %p216 = pnand %p214, %p215
      %p217 = pneg %p216
      // Predicated region
      $region9: #{transformer_forward.11} parent=5 // pred_check
        _
      $region10: #{transformer_forward.11} parent=5 // pred_check_branch
        %219 = sbr.rel (%p216) target = $region12
      $region11: #{transformer_forward.11} parent=5 // pred_region
        %s220 = ssub.s32 %s20, 1
        // Predicated region
        $region13: #{transformer_forward.11} parent=11 // pred_check
          %p221 = pneg %p79
        $region14: #{transformer_forward.11} parent=11 // pred_check_branch
          %223 = sbr.rel (%p221) target = $region16
        $region15: #{transformer_forward.11} parent=11 // pred_region
          _
        $region16: #{transformer_forward.11} parent=11 // pred_fallthru
          _
        // Predicated region
        $region17: #{transformer_forward.11} parent=11 // pred_check
          %p224 = pneg %p100
        $region18: #{transformer_forward.11} parent=11 // pred_check_branch
          %226 = sbr.rel (%p224) target = $region20
        $region19: #{transformer_forward.11} parent=11 // pred_region
          _
        $region20: #{transformer_forward.11} parent=11 // pred_fallthru
          _
        // Predicated region
        $region21: #{transformer_forward.11} parent=11 // pred_check
          %p227 = pneg %p126
        $region22: #{transformer_forward.11} parent=11 // pred_check_branch
          %229 = sbr.rel (%p227) target = $region24
        $region23: #{transformer_forward.11} parent=11 // pred_region
          %231 = vsyncadd [#allocation4], 0
          %s232 = smul.addr %s30, 8
          %s233 = scalar_lea.hbm %s3, %s232
          %s234 = sshll.u32 %s233, 4
          %s235 = int_to_ptr.hbm [resolvable:$true] %s234
          %s236 = sshll.u32 [#allocation3], 4
          %s237 = int_to_ptr.vmem [resolvable:$true] %s236
          %242 = dma.hbm_to_vmem [thread:$0]  %s235, 2048, %s237, [#allocation4], 128, 128, 8
        $region24: #{transformer_forward.11} parent=11 // pred_fallthru
          _
        // Predicated region
        $region25: #{transformer_forward.11} parent=11 // pred_check
          %p243 = pneg %p152
        $region26: #{transformer_forward.11} parent=11 // pred_check_branch
          %245 = sbr.rel (%p243) target = $region28
        $region27: #{transformer_forward.11} parent=11 // pred_region
          %p246 = scmp.lt.s32.totalorder %s30, 0
          %s247 = scalar_select %p246, %s30, 0
          %s248 = scalar_lea.vmem %s4, %s247
        $region28: #{transformer_forward.11} parent=11 // pred_fallthru
          _
      $region12: #{transformer_forward.11} parent=5 // pred_fallthru
        _
      %p249 = scmp.lt.s32.totalorder %s20, 2
      // Predicated region
      $region29: #{transformer_forward.11} parent=5 // pred_check
        %p250 = pneg %p249
      $region30: #{transformer_forward.11} parent=5 // pred_check_branch
        %252 = sbr.rel (%p250) target = $region32
      $region31: #{transformer_forward.11} parent=5 // pred_region
        // Predicated region
        $region33: #{transformer_forward.11} parent=31 // pred_check
          %p253 = pneg %p52
        $region34: #{transformer_forward.11} parent=31 // pred_check_branch
          %255 = sbr.rel (%p253) target = $region36
        $region35: #{transformer_forward.11} parent=31 // pred_region
          %s256 = smul.u32 2, %s27
          %p257 = scmp.lt.s32.totalorder %s256, 3
          %s258 = scalar_select %p257, %s256, 3
          %s259 = smul.addr %s258, 8
          %s260 = scalar_lea.vmem %s0, %s259
          %s261 = smul.u32 2, %s27
        $region36: #{transformer_forward.11} parent=31 // pred_fallthru
          _
      $region32: #{transformer_forward.11} parent=5 // pred_fallthru
        _
      %p262 = scmp.le.s32.totalorder 1, %s20
      %p263 = scmp.lt.s32.totalorder %s20, 3
      %p264 = pnand %p262, %p263
      %p265 = pneg %p264
      // Predicated region
      $region37: #{transformer_forward.11} parent=5 // pred_check
        _
      $region38: #{transformer_forward.11} parent=5 // pred_check_branch
        %267 = sbr.rel (%p264) target = $region40
      $region39: #{transformer_forward.11} parent=5 // pred_region
        %s268 = ssub.s32 %s20, 1
        // Predicated region
        $region41: #{transformer_forward.11} parent=39 // pred_check
          %p269 = pneg %p126
        $region42: #{transformer_forward.11} parent=39 // pred_check_branch
          %271 = sbr.rel (%p269) target = $region44
        $region43: #{transformer_forward.11} parent=39 // pred_region
          %273 = dma.done [#allocation4], 2048
        $region44: #{transformer_forward.11} parent=39 // pred_fallthru
          _
        %s274 = smul.u32 2, %s29
        %p275 = scmp.lt.s32.totalorder %s274, 3
        %s276 = scalar_select %p275, %s274, 3
        %s277 = smul.addr %s276, 8
        %s278 = scalar_lea.vmem %s0, %s277
        %p279 = pneg %p58
        %p280 = pneg %p55
        %p281 = pneg %p79
        %p282 = pneg %p76
        %p283 = pneg %p100
        %p284 = pneg %p97
        %p285 = pneg %p126
        %p286 = pneg %p123
        %p287 = scmp.lt.s32.totalorder %s30, 0
        %s288 = scalar_select %p287, %s30, 0
        %s289 = scalar_lea.vmem %s4, %s288
        %p290 = pneg %p152
        %p291 = pneg %p149
        %p292 = pneg %p178
        %p293 = pneg %p175
        %s294 = sand.u32 %s165, 1
        %s295 = scalar_lea.sflag [#allocation5], %s294
        %s296 = sand.u32 %s165, 1
        %s297 = smul.addr %s296, 16
        %s298 = scalar_lea.vmem [#allocation6], %s297
        %p299 = pneg %p206
        %p300 = pneg %p203
        %s301 = sand.u32 %s193, 1
        %s302 = scalar_lea.sflag [#allocation8], %s301
        %s303 = sand.u32 %s193, 1
        %s304 = smul.addr %s303, 16
        %s305 = scalar_lea.vmem [#allocation7], %s304
        %s306 = smul.u32 2, %s29
        %p307 = scmp.lt.s32.totalorder %s306, 3
        %s308 = scalar_select %p307, %s306, 3
        %s309 = smul.addr %s308, 8
        %s310 = scalar_lea.vmem %s0, %s309
        %s311 = smul.u32 2, %s29
        %p312 = scmp.lt.s32.totalorder %s30, 0
        %s313 = scalar_select %p312, %s30, 0
        %s314 = scalar_lea.vmem %s4, %s313
        %s315 = smul.u32 2, %s29
        %s316 = smul.u32 2, %s29
        %p317 = scmp.eq.s32.totalorder %s30, 0
        // Predicated region
        $region45: #{transformer_forward.11} parent=39 // pred_check
          %p318 = pneg %p317
        $region46: #{transformer_forward.11} parent=39 // pred_check_branch
          %320 = sbr.rel (%p318) target = $region48
        $region47: #{transformer_forward.11} parent=39 // pred_region
          %v321 = vld [vmem:[%s310] sm:$0xff]
          %v322 = vld [vmem:[%s310 + $0x8] sm:$0xff]
          %v323 = vld [vmem:[%s1] sm:$0x1]
          %v324 = vld [vmem:[%s2] sm:$0x1]
          %325 = vadd.xlane.f32.xlu0 %v321
          %v326 = vpop.xlane.xlu0 %325
          %327 = vadd.xlane.f32.xlu0 %v322
          %v328 = vpop.xlane.xlu0 %327
          %v329 = vrcp.pop 128.0
          %v330 = vmul.f32 128.0, %v329
          %v331 = vsub.f32 1.0, %v330
          %v332 = vmul.f32 %v329, %v331
          %v333 = vadd.f32 %v329, %v332
          %vm334 = vweird.f32 %v329
          %v335 = vsel %vm334, %v329, %v333
          %v336 = vmul.f32 %v326, %v335
          %v337 = vmul.f32 %v328, %v335
          %v338 = vsub.f32 %v321, %v336
          %v339 = vsub.f32 %v322, %v337
          %v340 = vmul.f32 %v338, %v338
          %v341 = vmul.f32 %v339, %v339
          %342 = vadd.xlane.f32.xlu0 %v340
          %v343 = vpop.xlane.xlu0 %342
          %344 = vadd.xlane.f32.xlu0 %v341
          %v345 = vpop.xlane.xlu0 %344
          %v346 = vmul.f32 %v343, %v335
          %v347 = vmul.f32 %v345, %v335
          %v348 = vadd.f32 %v346, 1e-12
          %v349 = vadd.f32 %v347, 1e-12
          %v350 = vrsqrt.pop %v348
          %v351 = vmul.f32 %v350, %v348
          %v352 = vmul.f32 %v351, %v350
          %v353 = vmul.f32 0.5, %v352
          %v354 = vsub.f32 1.5, %v353
          %v355 = vmul.f32 %v350, %v354
          %vm356 = vweird.f32 %v348
          %vm357 = vweird.f32 %v350
          %vm358 = vmor %vm356, %vm357
          %v359 = vsel %vm358, %v350, %v355
          %v360 = vrsqrt.pop %v349
          %v361 = vmul.f32 %v360, %v349
          %v362 = vmul.f32 %v361, %v360
          %v363 = vmul.f32 0.5, %v362
          %v364 = vsub.f32 1.5, %v363
          %v365 = vmul.f32 %v360, %v364
          %vm366 = vweird.f32 %v349
          %vm367 = vweird.f32 %v360
          %vm368 = vmor %vm366, %vm367
          %v369 = vsel %vm368, %v360, %v365
          %v370 = vmul.f32 %v338, %v359
          %v371 = vmul.f32 %v339, %v369
          %v373 = vperm.slane %v323, 0
          %v375 = vmul.f32 %v370, %v373
          %v376 = vmul.f32 %v371, %v373
          %v378 = vperm.slane %v324, 0
          %v380 = vadd.f32 %v375, %v378
          %v381 = vadd.f32 %v376, %v378
          %382 = vst [vmem:[#allocation2] sm:$0xff] %v380
          %383 = vst [vmem:[#allocation2 + $0x8] sm:$0xff] %v381
          %384 = vst [vmem:[%s298] sm:$0xff] %v380
          %385 = vst [vmem:[%s298 + $0x8] sm:$0xff] %v381
        $region48: #{transformer_forward.11} parent=39 // pred_fallthru
          _
        %v386 = vld [vmem:[#allocation2] sm:$0xff]
        %v387 = vld [vmem:[#allocation2 + $0x8] sm:$0xff]
        %v388 = vld [vmem:[#allocation3] sm:$0xff]
        %v389 = vld [vmem:[#allocation3 + $0x8] sm:$0xff]
        %v390 = vld [vmem:[#allocation3 + $0x10] sm:$0xff]
        %v391 = vld [vmem:[#allocation3 + $0x18] sm:$0xff]
        %v392 = vld [vmem:[#allocation3 + $0x20] sm:$0xff]
        %v393 = vld [vmem:[#allocation3 + $0x28] sm:$0xff]
        %v394 = vld [vmem:[#allocation3 + $0x30] sm:$0xff]
        %v395 = vld [vmem:[#allocation3 + $0x38] sm:$0xff]
        %v396 = vld [vmem:[#allocation3 + $0x40] sm:$0xff]
        %v397 = vld [vmem:[#allocation3 + $0x48] sm:$0xff]
        %v398 = vld [vmem:[#allocation3 + $0x50] sm:$0xff]
        %v399 = vld [vmem:[#allocation3 + $0x58] sm:$0xff]
        %v400 = vld [vmem:[#allocation3 + $0x60] sm:$0xff]
        %v401 = vld [vmem:[#allocation3 + $0x68] sm:$0xff]
        %v402 = vld [vmem:[#allocation3 + $0x70] sm:$0xff]
        %v403 = vld [vmem:[#allocation3 + $0x78] sm:$0xff]
        %v404 = vld [vmem:[%s314] sm:$0x1]
        %v406 = vperm.slane %v404, 0
        %408 = vmatpush.msra.mxu0 %v403
        %409 = vmatpush.msra.mxu0 %v402
        %410 = vmatpush.msra.mxu0 %v401
        %411 = vmatpush.msra.mxu0 %v400
        %412 = vmatpush.msra.mxu0 %v399
        %413 = vmatpush.msra.mxu0 %v398
        %414 = vmatpush.msra.mxu0 %v397
        %415 = vmatpush.msra.mxu0 %v396
        %416 = vmatpush.msra.mxu0 %v395
        %417 = vmatpush.msra.mxu0 %v394
        %418 = vmatpush.msra.mxu0 %v393
        %419 = vmatpush.msra.mxu0 %v392
        %420 = vmatpush.msra.mxu0 %v391
        %421 = vmatpush.msra.mxu0 %v390
        %422 = vmatpush.msra.mxu0 %v389
        %423 = vmatpush.msra.mxu0 %v388
        %424 = vmatmul.f32.gmra.mxu0 %v386
        %v425 = vpop.f32.mrf.mxu0
        %v426 = vadd.f32 %v406, %v425
        %427 = vmatmul.f32.gmra.mxu0 %v387
        %v428 = vpop.f32.mrf.mxu0
        %v429 = vadd.f32 %v406, %v428
        %430 = vdwg.mxu0
        %431 = vst [vmem:[%s305] sm:$0xff] %v426
        %432 = vst [vmem:[%s305 + $0x8] sm:$0xff] %v429
        %s433 = sand.u32 %s165, 1
        %s434 = scalar_lea.sflag [#allocation5], %s433
        %s435 = sand.u32 %s165, 1
        %s436 = smul.addr %s435, 16
        %s437 = scalar_lea.vmem [#allocation6], %s436
        %s438 = sand.u32 %s193, 1
        %s439 = scalar_lea.sflag [#allocation8], %s438
        %s440 = sand.u32 %s193, 1
        %s441 = smul.addr %s440, 16
        %s442 = scalar_lea.vmem [#allocation7], %s441
        // Predicated region
        $region49: #{transformer_forward.11} parent=39 // pred_check
          %p443 = pneg %p175
        $region50: #{transformer_forward.11} parent=39 // pred_check_branch
          %445 = sbr.rel (%p443) target = $region52
        $region51: #{transformer_forward.11} parent=39 // pred_region
          %s446 = smul.u32 2, %s29
          %448 = vsyncadd %s434, 0
          %s449 = smul.addr %s446, 8
          %s450 = scalar_lea.hbm %s5, %s449
          %s451 = sshll.u32 %s437, 4
          %s452 = int_to_ptr.vmem [resolvable:$true] %s451
          %s453 = sshll.u32 %s450, 4
          %s454 = int_to_ptr.hbm [resolvable:$true] %s453
          %459 = dma.vmem_to_hbm [thread:$0]  %s452, 256, %s454, %s434, 128, 128, 8
        $region52: #{transformer_forward.11} parent=39 // pred_fallthru
          _
        // Predicated region
        $region53: #{transformer_forward.11} parent=39 // pred_check
          %p460 = pneg %p203
        $region54: #{transformer_forward.11} parent=39 // pred_check_branch
          %462 = sbr.rel (%p460) target = $region56
        $region55: #{transformer_forward.11} parent=39 // pred_region
          %s463 = smul.u32 2, %s29
          %465 = vsyncadd %s439, 0
          %s466 = sadd.s32 %s30, %s463
          %s467 = smul.addr %s466, 8
          %s468 = scalar_lea.hbm %s6, %s467
          %s469 = sshll.u32 %s442, 4
          %s470 = int_to_ptr.vmem [resolvable:$true] %s469
          %s471 = sshll.u32 %s468, 4
          %s472 = int_to_ptr.hbm [resolvable:$true] %s471
          %477 = dma.vmem_to_hbm [thread:$0]  %s470, 256, %s472, %s439, 128, 128, 8
        $region56: #{transformer_forward.11} parent=39 // pred_fallthru
          _
      $region40: #{transformer_forward.11} parent=5 // pred_fallthru
        _
      %p478 = scmp.le.s32.totalorder 2, %s20
      // Predicated region
      $region57: #{transformer_forward.11} parent=5 // pred_check
        %p479 = pneg %p478
      $region58: #{transformer_forward.11} parent=5 // pred_check_branch
        %481 = sbr.rel (%p479) target = $region60
      $region59: #{transformer_forward.11} parent=5 // pred_region
        %s482 = ssub.s32 %s20, 2
        // Predicated region
        $region61: #{transformer_forward.11} parent=59 // pred_check
          %p483 = pneg %p181
        $region62: #{transformer_forward.11} parent=59 // pred_check_branch
          %485 = sbr.rel (%p483) target = $region64
        $region63: #{transformer_forward.11} parent=59 // pred_region
          %s486 = sand.u32 %s166, 1
          %s487 = scalar_lea.sflag [#allocation5], %s486
          %s488 = sand.u32 %s166, 1
          %s489 = smul.addr %s488, 16
          %s490 = scalar_lea.vmem [#allocation6], %s489
          %492 = dma.done %s487, 256
        $region64: #{transformer_forward.11} parent=59 // pred_fallthru
          _
        // Predicated region
        $region65: #{transformer_forward.11} parent=59 // pred_check
          %p493 = pneg %p209
        $region66: #{transformer_forward.11} parent=59 // pred_check_branch
          %495 = sbr.rel (%p493) target = $region68
        $region67: #{transformer_forward.11} parent=59 // pred_region
          %s496 = sand.u32 %s194, 1
          %s497 = scalar_lea.sflag [#allocation8], %s496
          %s498 = sand.u32 %s194, 1
          %s499 = smul.addr %s498, 16
          %s500 = scalar_lea.vmem [#allocation7], %s499
          %502 = dma.done %s497, 256
        $region68: #{transformer_forward.11} parent=59 // pred_fallthru
          _
      $region60: #{transformer_forward.11} parent=5 // pred_fallthru
        _
    $region6: #{transformer_forward.11} parent=1 // loop_footer
      %s24 = sadd.s32 1, %s20
    $region7: #{transformer_forward.11} parent=1 // loop_footer_branch
      %19 = sbr.rel target = $region3
    $region8: #{transformer_forward.11} parent=1 // loop_exit
      _
    %503 = vsyncpa [#allocation4], 1
    %s504 = scalar_lea.sflag [#allocation4], 1
    %505 = vsyncpa %s504, 1
    %506 = vsyncpa [#allocation5], 1
    %s507 = scalar_lea.sflag [#allocation5], 1
    %508 = vsyncpa %s507, 1
    %509 = vsyncpa [#allocation8], 1
    %s510 = scalar_lea.sflag [#allocation8], 1
    %511 = vsyncpa %s510, 1

</llo_original>
